<compile_context>
chip_gen: v6e
topology: v6e:2x2x1
jax: 0.10.0
libtpu: 0.0.40
codegen_flags: <defaults>
</compile_context>

<pallas_src>
import functools
import math

import jax
import jax.numpy as jnp
from jax.experimental import pallas as pl
from jax.experimental.pallas import tpu as pltpu

EPS = 1e-5  # PyTorch LayerNorm default eps


# ----------------------------- kernel helpers -------------------------------

def _layernorm(x, g, b):
    mean = jnp.mean(x, axis=-1, keepdims=True)
    xc = x - mean
    var = jnp.mean(xc * xc, axis=-1, keepdims=True)
    return (xc * jax.lax.rsqrt(var + EPS)) * g + b


def _rep_spec(a):
    """Weight/param block: full array, resident across all grid steps."""
    nd = a.ndim
    return pl.BlockSpec(a.shape, lambda b, _nd=nd: (0,) * _nd)


def _batched_spec(shape):
    """Per-batch activation block: (1, ...) slab, one batch per grid step."""
    return pl.BlockSpec((1,) + tuple(shape[1:]),
                        lambda b, _nd=len(shape): (b,) + (0,) * (_nd - 1))


def _cparams(sem="parallel"):
    return pltpu.CompilerParams(dimension_semantics=(sem,),
                                vmem_limit_bytes=32 * 1024 * 1024)


# ----------------------------- Pallas kernels -------------------------------

def _time_mlp_kernel(t_ref, w1_ref, b1_ref, w2_ref, b2_ref, o_ref):
    """time_mlp: Linear -> ReLU -> (Dropout=id) -> Linear -> (Dropout=id)."""
    t = t_ref[...].astype(jnp.bfloat16)
    h = jnp.dot(t, w1_ref[...], preferred_element_type=jnp.float32) + b1_ref[...]
    h = jnp.maximum(h, 0.0)
    h = jnp.dot(h.astype(jnp.bfloat16), w2_ref[...],
                preferred_element_type=jnp.float32) + b2_ref[...]
    o_ref[...] = h.astype(o_ref.dtype)


def _patch_embed_kernel(p_ref, w_ref, b_ref, pos_ref, t_ref, o_ref):
    """Conv2d(k=stride=patch) as matmul, fused with +pos_embed and +t_embed."""
    p = p_ref[0].astype(jnp.bfloat16)                        # (S, C*P*P)
    y = jnp.dot(p, w_ref[...], preferred_element_type=jnp.float32)
    y = y + b_ref[...] + pos_ref[...] + t_ref[0]
    o_ref[0] = y.astype(o_ref.dtype)


def _attn_block_kernel(x_ref, g1a_ref, b1a_ref, g1b_ref, b1b_ref,
                       wq_ref, wk_ref, wv_ref, bq_ref, bk_ref, bv_ref,
                       wo_ref, bo_ref, o_ref, *, heads, scale):
    """LN -> LN -> MHA (per-head QKV, softmax, out-proj) -> residual add."""
    x = x_ref[0].astype(jnp.float32)                         # (S, E)
    h = _layernorm(x, g1a_ref[...], b1a_ref[...])
    h = _layernorm(h, g1b_ref[...], b1b_ref[...])
    hb = h.astype(jnp.bfloat16)
    out = None
    for i in range(heads):                                   # static unroll
        q = jnp.dot(hb, wq_ref[i], preferred_element_type=jnp.float32) + bq_ref[i]
        k = jnp.dot(hb, wk_ref[i], preferred_element_type=jnp.float32) + bk_ref[i]
        v = jnp.dot(hb, wv_ref[i], preferred_element_type=jnp.float32) + bv_ref[i]
        q = (q * scale).astype(jnp.bfloat16)                 # fold 1/sqrt(Dh) into q
        s = jax.lax.dot_general(q, k.astype(jnp.bfloat16),
                                (((1,), (1,)), ((), ())),
                                preferred_element_type=jnp.float32)   # (S, S)
        s = s - jnp.max(s, axis=-1, keepdims=True)
        p = jnp.exp(s)
        p = p * pl.reciprocal(jnp.sum(p, axis=-1, keepdims=True), approx=True)
        oh = jnp.dot(p.astype(jnp.bfloat16), v.astype(jnp.bfloat16),
                     preferred_element_type=jnp.float32)              # (S, Dh)
        # concat_h(head_h) @ W_out  ==  sum_h head_h @ W_out[h]
        contrib = jnp.dot(oh.astype(jnp.bfloat16), wo_ref[i],
                          preferred_element_type=jnp.float32)         # (S, E)
        out = contrib if out is None else out + contrib
    o_ref[0] = (x + out + bo_ref[...]).astype(o_ref.dtype)


def _mlp_block_kernel(x_ref, g_ref, b_ref, w1_ref, b1_ref, w2_ref, b2_ref, o_ref):
    """LN -> Linear -> ReLU -> Linear -> (Dropout=id) -> residual add."""
    x = x_ref[0].astype(jnp.float32)
    h = _layernorm(x, g_ref[...], b_ref[...])
    m = jnp.dot(h.astype(jnp.bfloat16), w1_ref[...],
                preferred_element_type=jnp.float32) + b1_ref[...]
    m = jnp.maximum(m, 0.0)
    m = jnp.dot(m.astype(jnp.bfloat16), w2_ref[...],
                preferred_element_type=jnp.float32) + b2_ref[...]
    o_ref[0] = (x + m).astype(o_ref.dtype)


def _head_kernel(x_ref, g_ref, b_ref, w_ref, bias_ref, o_ref):
    """Final LayerNorm + fc_out (weights lane-padded to keep stores dense)."""
    x = x_ref[0].astype(jnp.float32)
    h = _layernorm(x, g_ref[...], b_ref[...])
    y = jnp.dot(h.astype(jnp.bfloat16), w_ref[...],
                preferred_element_type=jnp.float32) + bias_ref[...]
    o_ref[0] = y.astype(o_ref.dtype)


# ----------------------------- parameter init -------------------------------

def init_params(key, in_ch, out_ch, img_size, patch, embed, depth, heads):
    hp, wp = img_size[0] // patch, img_size[1] // patch
    num_patches = hp * wp
    hidden = int(embed * 4.0)
    dh = embed // heads
    keys = iter(jax.random.split(key, 16 + 8 * depth))

    def w(shape, scale=0.02):
        return (scale * jax.random.normal(next(keys), shape)).astype(jnp.bfloat16)

    n_out = patch * patch * out_ch
    n_pad = max(128, ((n_out + 127) // 128) * 128)           # lane-dense fc output
    fc_w = jnp.zeros((embed, n_pad), jnp.float32)
    fc_w = fc_w.at[:, :n_out].set(
        0.02 * jax.random.normal(next(keys), (embed, n_out)))

    params = {
        'patch_w': w((in_ch * patch * patch, embed)),
        'patch_b': jnp.zeros((1, embed), jnp.float32),
        'pos_embed': jnp.zeros((num_patches, embed), jnp.float32),
        'time_w1': w((embed, embed)),
        'time_b1': jnp.zeros((1, embed), jnp.float32),
        'time_w2': w((embed, embed)),
        'time_b2': jnp.zeros((1, embed), jnp.float32),
        'norm_g': jnp.ones((1, embed), jnp.float32),
        'norm_b': jnp.zeros((1, embed), jnp.float32),
        'fc_w': fc_w.astype(jnp.bfloat16),                   # zero-padded cols
        'fc_b': jnp.zeros((1, n_pad), jnp.float32),
        'n_out': n_out,
        'blocks': [],
    }
    for _ in range(depth):
        params['blocks'].append({
            'ln1a_g': jnp.ones((1, embed), jnp.float32),
            'ln1a_b': jnp.zeros((1, embed), jnp.float32),
            'ln1b_g': jnp.ones((1, embed), jnp.float32),
            'ln1b_b': jnp.zeros((1, embed), jnp.float32),
            # per-head Q/K/V projections (== PyTorch in_proj_weight split per head)
            'wq': w((heads, embed, dh)),
            'wk': w((heads, embed, dh)),
            'wv': w((heads, embed, dh)),
            'bq': jnp.zeros((heads, 1, dh), jnp.float32),
            'bk': jnp.zeros((heads, 1, dh), jnp.float32),
            'bv': jnp.zeros((heads, 1, dh), jnp.float32),
            # out_proj weight split per head (rows h*Dh:(h+1)*Dh of W_out)
            'wo': w((heads, dh, embed)),
            'bo': jnp.zeros((1, embed), jnp.float32),
            'ln2_g': jnp.ones((1, embed), jnp.float32),
            'ln2_b': jnp.zeros((1, embed), jnp.float32),
            'mlp_w1': w((embed, hidden)),
            'mlp_b1': jnp.zeros((1, hidden), jnp.float32),
            'mlp_w2': w((hidden, embed)),
            'mlp_b2': jnp.zeros((1, embed), jnp.float32),
        })
    return params


# ----------------------------- forward pass ---------------------------------

def diffusion_transformer(x, t_embed, params, *, patch, heads):
    B, C, H, W = x.shape
    hp, wp = H // patch, W // patch
    S = hp * wp
    E = params['patch_w'].shape[1]
    Dh = E // heads
    scale = 1.0 / math.sqrt(Dh)

    # ---- time-conditioning MLP (one tiny fused call) ----
    t = pl.pallas_call(
        _time_mlp_kernel,
        out_shape=jax.ShapeDtypeStruct((B, E), jnp.float32),
        grid=(1,),
        in_specs=[_rep_spec(t_embed), _rep_spec(params['time_w1']),
                  _rep_spec(params['time_b1']), _rep_spec(params['time_w2']),
                  _rep_spec(params['time_b2'])],
        out_specs=pl.BlockSpec((B, E), lambda b: (0, 0)),
        compiler_params=_cparams("arbitrary"),
    )(t_embed, params['time_w1'], params['time_b1'],
      params['time_w2'], params['time_b2'])
    t3 = t.reshape(B, 1, E)

    # ---- patch extraction (layout plumbing only) ----
    patches = (x.reshape(B, C, hp, patch, wp, patch)
                .transpose(0, 2, 4, 1, 3, 5)
                .reshape(B, S, C * patch * patch))

    # ---- fused patch-embed + pos-embed + time-embed add ----
    x3 = pl.pallas_call(
        _patch_embed_kernel,
        out_shape=jax.ShapeDtypeStruct((B, S, E), jnp.float32),
        grid=(B,),
        in_specs=[_batched_spec(patches.shape), _rep_spec(params['patch_w']),
                  _rep_spec(params['patch_b']), _rep_spec(params['pos_embed']),
                  _batched_spec(t3.shape)],
        out_specs=_batched_spec((B, S, E)),
        compiler_params=_cparams(),
    )(patches, params['patch_w'], params['patch_b'], params['pos_embed'], t3)

    Hmlp = params['blocks'][0]['mlp_w1'].shape[1]
    attn_cost = pl.CostEstimate(
        flops=int(B * (8 * S * E * E + 4 * S * S * E)),
        transcendentals=int(B * heads * S * S),
        bytes_accessed=int(2 * B * S * E * 4 + 4 * E * E * 2))
    mlp_cost = pl.CostEstimate(
        flops=int(B * 4 * S * E * Hmlp),
        transcendentals=0,
        bytes_accessed=int(2 * B * S * E * 4 + 2 * E * Hmlp * 2))

    for blk in params['blocks']:
        # ---- fused attention branch (LN, LN, QKV, attention, out-proj, +res) ----
        attn_in = [x3, blk['ln1a_g'], blk['ln1a_b'], blk['ln1b_g'], blk['ln1b_b'],
                   blk['wq'], blk['wk'], blk['wv'], blk['bq'], blk['bk'], blk['bv'],
                   blk['wo'], blk['bo']]
        x3 = pl.pallas_call(
            functools.partial(_attn_block_kernel, heads=heads, scale=scale),
            out_shape=jax.ShapeDtypeStruct((B, S, E), jnp.float32),
            grid=(B,),
            in_specs=[_batched_spec(x3.shape)] + [_rep_spec(a) for a in attn_in[1:]],
            out_specs=_batched_spec((B, S, E)),
            compiler_params=_cparams(),
            cost_estimate=attn_cost,
        )(*attn_in)

        # ---- fused MLP branch (LN, Linear, ReLU, Linear, +res) ----
        mlp_in = [x3, blk['ln2_g'], blk['ln2_b'],
                  blk['mlp_w1'], blk['mlp_b1'], blk['mlp_w2'], blk['mlp_b2']]
        x3 = pl.pallas_call(
            _mlp_block_kernel,
            out_shape=jax.ShapeDtypeStruct((B, S, E), jnp.float32),
            grid=(B,),
            in_specs=[_batched_spec(x3.shape)] + [_rep_spec(a) for a in mlp_in[1:]],
            out_specs=_batched_spec((B, S, E)),
            compiler_params=_cparams(),
            cost_estimate=mlp_cost,
        )(*mlp_in)

    # ---- final LayerNorm + fc_out (lane-padded output) ----
    Npad = params['fc_w'].shape[1]
    out_p = pl.pallas_call(
        _head_kernel,
        out_shape=jax.ShapeDtypeStruct((B, S, Npad), jnp.float32),
        grid=(B,),
        in_specs=[_batched_spec(x3.shape), _rep_spec(params['norm_g']),
                  _rep_spec(params['norm_b']), _rep_spec(params['fc_w']),
                  _rep_spec(params['fc_b'])],
        out_specs=_batched_spec((B, S, Npad)),
        compiler_params=_cparams(),
    )(x3, params['norm_g'], params['norm_b'], params['fc_w'], params['fc_b'])

    # unpatchify: 'b (h w) (p1 p2) -> b 1 (h p1) (w p2)'   (requires out_ch == 1)
    n_out = patch * patch
    out = out_p[:, :, :n_out]
    out = out.reshape(B, hp, wp, patch, patch)
    out = out.transpose(0, 1, 3, 2, 4).reshape(B, 1, hp * patch, wp * patch)
    return out


# ----------------------------- driver ---------------------------------------

if __name__ == "__main__":
    B, IN_CH, OUT_CH = 2, 4, 1           # final rearrange assumes out_ch == 1
    IMG = (16, 16)
    PATCH = 4
    EMBED = 128
    DEPTH = 2
    HEADS = 4
    assert OUT_CH == 1

    key = jax.random.PRNGKey(0)
    kx, kt, kp = jax.random.split(key, 3)

    x = jax.random.normal(kx, (B, IN_CH, IMG[0], IMG[1]), dtype=jnp.float32)
    t_embed = jax.random.normal(kt, (B, EMBED), dtype=jnp.float32)
    params = init_params(kp, IN_CH, OUT_CH, IMG, PATCH, EMBED, DEPTH, HEADS)

    fwd = jax.jit(functools.partial(diffusion_transformer,
                                    patch=PATCH, heads=HEADS))
    out = fwd(x, t_embed, params)
    jax.block_until_ready(out)
    assert out.shape == (B, 1, IMG[0], IMG[1]), out.shape
    assert bool(jnp.all(jnp.isfinite(out)))
    print("KERNEL_OK")
</pallas_src>

<mosaic_0001>
module attributes {stable_mosaic.version = 11 : i64} {
  func.func @_time_mlp_kernel(%arg0: i32, %arg1: memref<2x128xf32, #tpu.memory_space<vmem>>, %arg2: memref<128x128xbf16, #tpu.memory_space<vmem>>, %arg3: memref<1x128xf32, #tpu.memory_space<vmem>>, %arg4: memref<128x128xbf16, #tpu.memory_space<vmem>>, %arg5: memref<1x128xf32, #tpu.memory_space<vmem>>, %arg6: memref<2x128xf32, #tpu.memory_space<vmem>>) attributes {dimension_semantics = [#tpu.dimension_semantics<arbitrary>], iteration_bounds = array<i64: 1>, scalar_prefetch = 0 : i64, scratch_operands = 0 : i64, tpu.core_type = #tpu.core_type<tc>, window_params = [{pipeline_mode = #tpu.pipeline_mode<synchronous>, transform_indices = @transform_0, window_bounds = array<i64: 2, 128>}, {pipeline_mode = #tpu.pipeline_mode<synchronous>, transform_indices = @transform_1, window_bounds = array<i64: 128, 128>}, {pipeline_mode = #tpu.pipeline_mode<synchronous>, transform_indices = @transform_2, window_bounds = array<i64: 1, 128>}, {pipeline_mode = #tpu.pipeline_mode<synchronous>, transform_indices = @transform_3, window_bounds = array<i64: 128, 128>}, {pipeline_mode = #tpu.pipeline_mode<synchronous>, transform_indices = @transform_4, window_bounds = array<i64: 1, 128>}, {pipeline_mode = #tpu.pipeline_mode<synchronous>, transform_indices = @transform_5, window_bounds = array<i64: 2, 128>}]} {
    %c0 = arith.constant 0 : index
    %c0_0 = arith.constant 0 : index
    %0 = vector.load %arg1[%c0, %c0_0] : memref<2x128xf32, #tpu.memory_space<vmem>>, vector<2x128xf32>
    %1 = arith.truncf %0 : vector<2x128xf32> to vector<2x128xbf16>
    %c0_1 = arith.constant 0 : index
    %c0_2 = arith.constant 0 : index
    %2 = vector.load %arg2[%c0_1, %c0_2] : memref<128x128xbf16, #tpu.memory_space<vmem>>, vector<128x128xbf16>
    %cst = arith.constant dense<0.000000e+00> : vector<2x128xf32>
    %3 = tpu.matmul %1, %2, %cst {dimension_numbers = #tpu.dot_dimension_numbers<[1], [0], [0], [1], [0, 0, 1, 1], [], []>} : vector<2x128xbf16>, vector<128x128xbf16>, vector<2x128xf32> -> vector<2x128xf32>
    %c0_3 = arith.constant 0 : index
    %c0_4 = arith.constant 0 : index
    %4 = vector.load %arg3[%c0_3, %c0_4] : memref<1x128xf32, #tpu.memory_space<vmem>>, vector<1x128xf32>
    %5 = vector.broadcast %4 : vector<1x128xf32> to vector<2x128xf32>
    %6 = arith.addf %3, %5 : vector<2x128xf32>
    %cst_5 = arith.constant 0.000000e+00 : f32
    %7 = vector.broadcast %cst_5 : f32 to vector<2x128xf32>
    %8 = arith.maximumf %6, %7 : vector<2x128xf32>
    %9 = arith.truncf %8 : vector<2x128xf32> to vector<2x128xbf16>
    %c0_6 = arith.constant 0 : index
    %c0_7 = arith.constant 0 : index
    %10 = vector.load %arg4[%c0_6, %c0_7] : memref<128x128xbf16, #tpu.memory_space<vmem>>, vector<128x128xbf16>
    %cst_8 = arith.constant dense<0.000000e+00> : vector<2x128xf32>
    %11 = tpu.matmul %9, %10, %cst_8 {dimension_numbers = #tpu.dot_dimension_numbers<[1], [0], [0], [1], [0, 0, 1, 1], [], []>} : vector<2x128xbf16>, vector<128x128xbf16>, vector<2x128xf32> -> vector<2x128xf32>
    %c0_9 = arith.constant 0 : index
    %c0_10 = arith.constant 0 : index
    %12 = vector.load %arg5[%c0_9, %c0_10] : memref<1x128xf32, #tpu.memory_space<vmem>>, vector<1x128xf32>
    %13 = vector.broadcast %12 : vector<1x128xf32> to vector<2x128xf32>
    %14 = arith.addf %11, %13 : vector<2x128xf32>
    %c0_11 = arith.constant 0 : index
    %c0_12 = arith.constant 0 : index
    %15 = vector.load %arg6[%c0_11, %c0_12] : memref<2x128xf32, #tpu.memory_space<vmem>>, vector<2x128xf32>
    tpu.vector_store %arg6[%c0_11, %c0_12], %14 {strides = array<i32>} : memref<2x128xf32, #tpu.memory_space<vmem>>, vector<2x128xf32>,
    return
  }
  func.func @transform_0(%arg0: i32) -> (i32, i32) {
    %c0_i32 = arith.constant 0 : i32
    %c0_i32_0 = arith.constant 0 : i32
    %c0_i32_1 = arith.constant 0 : i32
    return %c0_i32, %c0_i32_0 : i32, i32
  }
  func.func @transform_1(%arg0: i32) -> (i32, i32) {
    %c0_i32 = arith.constant 0 : i32
    %c0_i32_0 = arith.constant 0 : i32
    %c0_i32_1 = arith.constant 0 : i32
    return %c0_i32, %c0_i32_0 : i32, i32
  }
  func.func @transform_2(%arg0: i32) -> (i32, i32) {
    %c0_i32 = arith.constant 0 : i32
    %c0_i32_0 = arith.constant 0 : i32
    %c0_i32_1 = arith.constant 0 : i32
    return %c0_i32, %c0_i32_0 : i32, i32
  }
  func.func @transform_3(%arg0: i32) -> (i32, i32) {
    %c0_i32 = arith.constant 0 : i32
    %c0_i32_0 = arith.constant 0 : i32
    %c0_i32_1 = arith.constant 0 : i32
    return %c0_i32, %c0_i32_0 : i32, i32
  }
  func.func @transform_4(%arg0: i32) -> (i32, i32) {
    %c0_i32 = arith.constant 0 : i32
    %c0_i32_0 = arith.constant 0 : i32
    %c0_i32_1 = arith.constant 0 : i32
    return %c0_i32, %c0_i32_0 : i32, i32
  }
  func.func @transform_5(%arg0: i32) -> (i32, i32) {
    %c0_i32 = arith.constant 0 : i32
    %c0_i32_0 = arith.constant 0 : i32
    %c0_i32_1 = arith.constant 0 : i32
    return %c0_i32, %c0_i32_0 : i32, i32
  }
}

module attributes {stable_mosaic.version = 11 : i64} {
  func.func @_patch_embed_kernel(%arg0: i32, %arg1: memref<1x16x64xf32, #tpu.memory_space<vmem>>, %arg2: memref<64x128xbf16, #tpu.memory_space<vmem>>, %arg3: memref<1x128xf32, #tpu.memory_space<vmem>>, %arg4: memref<16x128xf32, #tpu.memory_space<vmem>>, %arg5: memref<1x1x128xf32, #tpu.memory_space<vmem>>, %arg6: memref<1x16x128xf32, #tpu.memory_space<vmem>>) attributes {dimension_semantics = [#tpu.dimension_semantics<parallel>], iteration_bounds = array<i64: 2>, scalar_prefetch = 0 : i64, scratch_operands = 0 : i64, tpu.core_type = #tpu.core_type<tc>, window_params = [{transform_indices = @transform_0, window_bounds = array<i64: 1, 16, 64>}, {pipeline_mode = #tpu.pipeline_mode<synchronous>, transform_indices = @transform_1, window_bounds = array<i64: 64, 128>}, {pipeline_mode = #tpu.pipeline_mode<synchronous>, transform_indices = @transform_2, window_bounds = array<i64: 1, 128>}, {pipeline_mode = #tpu.pipeline_mode<synchronous>, transform_indices = @transform_3, window_bounds = array<i64: 16, 128>}, {transform_indices = @transform_4, window_bounds = array<i64: 1, 1, 128>}, {transform_indices = @transform_5, window_bounds = array<i64: 1, 16, 128>}]} {
    %c0 = arith.constant 0 : index
    %c0_0 = arith.constant 0 : index
    %c0_1 = arith.constant 0 : index
    %0 = vector.load %arg1[%c0, %c0_0, %c0_1] : memref<1x16x64xf32, #tpu.memory_space<vmem>>, vector<1x16x64xf32>
    %1 = vector.shape_cast %0 : vector<1x16x64xf32> to vector<16x64xf32>
    %2 = arith.truncf %1 : vector<16x64xf32> to vector<16x64xbf16>
    %c0_2 = arith.constant 0 : index
    %c0_3 = arith.constant 0 : index
    %3 = vector.load %arg2[%c0_2, %c0_3] : memref<64x128xbf16, #tpu.memory_space<vmem>>, vector<64x128xbf16>
    %cst = arith.constant dense<0.000000e+00> : vector<16x128xf32>
    %4 = tpu.matmul %2, %3, %cst {dimension_numbers = #tpu.dot_dimension_numbers<[1], [0], [0], [1], [0, 0, 1, 1], [], []>} : vector<16x64xbf16>, vector<64x128xbf16>, vector<16x128xf32> -> vector<16x128xf32>
    %c0_4 = arith.constant 0 : index
    %c0_5 = arith.constant 0 : index
    %5 = vector.load %arg3[%c0_4, %c0_5] : memref<1x128xf32, #tpu.memory_space<vmem>>, vector<1x128xf32>
    %6 = vector.broadcast %5 : vector<1x128xf32> to vector<16x128xf32>
    %7 = arith.addf %4, %6 : vector<16x128xf32>
    %c0_6 = arith.constant 0 : index
    %c0_7 = arith.constant 0 : index
    %8 = vector.load %arg4[%c0_6, %c0_7] : memref<16x128xf32, #tpu.memory_space<vmem>>, vector<16x128xf32>
    %9 = arith.addf %7, %8 : vector<16x128xf32>
    %c0_8 = arith.constant 0 : index
    %c0_9 = arith.constant 0 : index
    %c0_10 = arith.constant 0 : index
    %10 = vector.load %arg5[%c0_8, %c0_9, %c0_10] : memref<1x1x128xf32, #tpu.memory_space<vmem>>, vector<1x1x128xf32>
    %11 = vector.shape_cast %10 : vector<1x1x128xf32> to vector<1x128xf32>
    %12 = vector.broadcast %11 : vector<1x128xf32> to vector<16x128xf32>
    %13 = arith.addf %9, %12 : vector<16x128xf32>
    %c0_11 = arith.constant 0 : index
    %c0_12 = arith.constant 0 : index
    %c0_13 = arith.constant 0 : index
    %14 = vector.load %arg6[%c0_11, %c0_12, %c0_13] : memref<1x16x128xf32, #tpu.memory_space<vmem>>, vector<1x16x128xf32>
    %15 = vector.shape_cast %14 : vector<1x16x128xf32> to vector<16x128xf32>
    %16 = vector.shape_cast %13 : vector<16x128xf32> to vector<1x16x128xf32>
    tpu.vector_store %arg6[%c0_11, %c0_12, %c0_13], %16 {strides = array<i32>} : memref<1x16x128xf32, #tpu.memory_space<vmem>>, vector<1x16x128xf32>,
    return
  }
  func.func @transform_0(%arg0: i32) -> (i32, i32, i32) {
    %c0_i32 = arith.constant 0 : i32
    %c0_i32_0 = arith.constant 0 : i32
    %c0_i32_1 = arith.constant 0 : i32
    return %arg0, %c0_i32, %c0_i32_0 : i32, i32, i32
  }
  func.func @transform_1(%arg0: i32) -> (i32, i32) {
    %c0_i32 = arith.constant 0 : i32
    %c0_i32_0 = arith.constant 0 : i32
    %c0_i32_1 = arith.constant 0 : i32
    return %c0_i32, %c0_i32_0 : i32, i32
  }
  func.func @transform_2(%arg0: i32) -> (i32, i32) {
    %c0_i32 = arith.constant 0 : i32
    %c0_i32_0 = arith.constant 0 : i32
    %c0_i32_1 = arith.constant 0 : i32
    return %c0_i32, %c0_i32_0 : i32, i32
  }
  func.func @transform_3(%arg0: i32) -> (i32, i32) {
    %c0_i32 = arith.constant 0 : i32
    %c0_i32_0 = arith.constant 0 : i32
    %c0_i32_1 = arith.constant 0 : i32
    return %c0_i32, %c0_i32_0 : i32, i32
  }
  func.func @transform_4(%arg0: i32) -> (i32, i32, i32) {
    %c0_i32 = arith.constant 0 : i32
    %c0_i32_0 = arith.constant 0 : i32
    %c0_i32_1 = arith.constant 0 : i32
    return %arg0, %c0_i32, %c0_i32_0 : i32, i32, i32
  }
  func.func @transform_5(%arg0: i32) -> (i32, i32, i32) {
    %c0_i32 = arith.constant 0 : i32
    %c0_i32_0 = arith.constant 0 : i32
    %c0_i32_1 = arith.constant 0 : i32
    return %arg0, %c0_i32, %c0_i32_0 : i32, i32, i32
  }
}

module attributes {stable_mosaic.version = 11 : i64} {
  func.func @_attn_block_kernel(%arg0: i32, %arg1: memref<1x16x128xf32, #tpu.memory_space<vmem>>, %arg2: memref<1x128xf32, #tpu.memory_space<vmem>>, %arg3: memref<1x128xf32, #tpu.memory_space<vmem>>, %arg4: memref<1x128xf32, #tpu.memory_space<vmem>>, %arg5: memref<1x128xf32, #tpu.memory_space<vmem>>, %arg6: memref<4x128x32xbf16, #tpu.memory_space<vmem>>, %arg7: memref<4x128x32xbf16, #tpu.memory_space<vmem>>, %arg8: memref<4x128x32xbf16, #tpu.memory_space<vmem>>, %arg9: memref<4x1x32xf32, #tpu.memory_space<vmem>>, %arg10: memref<4x1x32xf32, #tpu.memory_space<vmem>>, %arg11: memref<4x1x32xf32, #tpu.memory_space<vmem>>, %arg12: memref<4x32x128xbf16, #tpu.memory_space<vmem>>, %arg13: memref<1x128xf32, #tpu.memory_space<vmem>>, %arg14: memref<1x16x128xf32, #tpu.memory_space<vmem>>) attributes {dimension_semantics = [#tpu.dimension_semantics<parallel>], iteration_bounds = array<i64: 2>, scalar_prefetch = 0 : i64, scratch_operands = 0 : i64, tpu.core_type = #tpu.core_type<tc>, window_params = [{transform_indices = @transform_0, window_bounds = array<i64: 1, 16, 128>}, {pipeline_mode = #tpu.pipeline_mode<synchronous>, transform_indices = @transform_1, window_bounds = array<i64: 1, 128>}, {pipeline_mode = #tpu.pipeline_mode<synchronous>, transform_indices = @transform_2, window_bounds = array<i64: 1, 128>}, {pipeline_mode = #tpu.pipeline_mode<synchronous>, transform_indices = @transform_3, window_bounds = array<i64: 1, 128>}, {pipeline_mode = #tpu.pipeline_mode<synchronous>, transform_indices = @transform_4, window_bounds = array<i64: 1, 128>}, {pipeline_mode = #tpu.pipeline_mode<synchronous>, transform_indices = @transform_5, window_bounds = array<i64: 4, 128, 32>}, {pipeline_mode = #tpu.pipeline_mode<synchronous>, transform_indices = @transform_6, window_bounds = array<i64: 4, 128, 32>}, {pipeline_mode = #tpu.pipeline_mode<synchronous>, transform_indices = @transform_7, window_bounds = array<i64: 4, 128, 32>}, {pipeline_mode = #tpu.pipeline_mode<synchronous>, transform_indices = @transform_8, window_bounds = array<i64: 4, 1, 32>}, {pipeline_mode = #tpu.pipeline_mode<synchronous>, transform_indices = @transform_9, window_bounds = array<i64: 4, 1, 32>}, {pipeline_mode = #tpu.pipeline_mode<synchronous>, transform_indices = @transform_10, window_bounds = array<i64: 4, 1, 32>}, {pipeline_mode = #tpu.pipeline_mode<synchronous>, transform_indices = @transform_11, window_bounds = array<i64: 4, 32, 128>}, {pipeline_mode = #tpu.pipeline_mode<synchronous>, transform_indices = @transform_12, window_bounds = array<i64: 1, 128>}, {transform_indices = @transform_13, window_bounds = array<i64: 1, 16, 128>}]} {
    %c0 = arith.constant 0 : index
    %c0_0 = arith.constant 0 : index
    %c0_1 = arith.constant 0 : index
    %0 = vector.load %arg1[%c0, %c0_0, %c0_1] : memref<1x16x128xf32, #tpu.memory_space<vmem>>, vector<1x16x128xf32>
    %1 = vector.shape_cast %0 : vector<1x16x128xf32> to vector<16x128xf32>
    %c0_2 = arith.constant 0 : index
    %c0_3 = arith.constant 0 : index
    %2 = vector.load %arg2[%c0_2, %c0_3] : memref<1x128xf32, #tpu.memory_space<vmem>>, vector<1x128xf32>
    %c0_4 = arith.constant 0 : index
    %c0_5 = arith.constant 0 : index
    %3 = vector.load %arg3[%c0_4, %c0_5] : memref<1x128xf32, #tpu.memory_space<vmem>>, vector<1x128xf32>
    %cst = arith.constant dense<0.000000e+00> : vector<16xf32>
    %4 = vector.multi_reduction <add>, %1, %cst [1] : vector<16x128xf32> to vector<16xf32>
    %5 = vector.shape_cast %4 : vector<16xf32> to vector<16x1xf32>
    %cst_6 = arith.constant 1.280000e+02 : f32
    %6 = vector.broadcast %cst_6 : f32 to vector<16x1xf32>
    %7 = arith.divf %5, %6 : vector<16x1xf32>
    %8 = vector.broadcast %7 : vector<16x1xf32> to vector<16x128xf32>
    %9 = arith.subf %1, %8 : vector<16x128xf32>
    %10 = arith.mulf %9, %9 : vector<16x128xf32>
    %cst_7 = arith.constant dense<0.000000e+00> : vector<16xf32>
    %11 = vector.multi_reduction <add>, %10, %cst_7 [1] : vector<16x128xf32> to vector<16xf32>
    %12 = vector.shape_cast %11 : vector<16xf32> to vector<16x1xf32>
    %cst_8 = arith.constant 1.280000e+02 : f32
    %13 = vector.broadcast %cst_8 : f32 to vector<16x1xf32>
    %14 = arith.divf %12, %13 : vector<16x1xf32>
    %cst_9 = arith.constant 9.99999974E-6 : f32
    %15 = vector.broadcast %cst_9 : f32 to vector<16x1xf32>
    %16 = arith.addf %14, %15 : vector<16x1xf32>
    %17 = math.rsqrt %16 : vector<16x1xf32>
    %18 = vector.broadcast %17 : vector<16x1xf32> to vector<16x128xf32>
    %19 = arith.mulf %9, %18 : vector<16x128xf32>
    %20 = vector.broadcast %2 : vector<1x128xf32> to vector<16x128xf32>
    %21 = arith.mulf %19, %20 : vector<16x128xf32>
    %22 = vector.broadcast %3 : vector<1x128xf32> to vector<16x128xf32>
    %23 = arith.addf %21, %22 : vector<16x128xf32>
    %c0_10 = arith.constant 0 : index
    %c0_11 = arith.constant 0 : index
    %24 = vector.load %arg4[%c0_10, %c0_11] : memref<1x128xf32, #tpu.memory_space<vmem>>, vector<1x128xf32>
    %c0_12 = arith.constant 0 : index
    %c0_13 = arith.constant 0 : index
    %25 = vector.load %arg5[%c0_12, %c0_13] : memref<1x128xf32, #tpu.memory_space<vmem>>, vector<1x128xf32>
    %cst_14 = arith.constant dense<0.000000e+00> : vector<16xf32>
    %26 = vector.multi_reduction <add>, %23, %cst_14 [1] : vector<16x128xf32> to vector<16xf32>
    %27 = vector.shape_cast %26 : vector<16xf32> to vector<16x1xf32>
    %cst_15 = arith.constant 1.280000e+02 : f32
    %28 = vector.broadcast %cst_15 : f32 to vector<16x1xf32>
    %29 = arith.divf %27, %28 : vector<16x1xf32>
    %30 = vector.broadcast %29 : vector<16x1xf32> to vector<16x128xf32>
    %31 = arith.subf %23, %30 : vector<16x128xf32>
    %32 = arith.mulf %31, %31 : vector<16x128xf32>
    %cst_16 = arith.constant dense<0.000000e+00> : vector<16xf32>
    %33 = vector.multi_reduction <add>, %32, %cst_16 [1] : vector<16x128xf32> to vector<16xf32>
    %34 = vector.shape_cast %33 : vector<16xf32> to vector<16x1xf32>
    %cst_17 = arith.constant 1.280000e+02 : f32
    %35 = vector.broadcast %cst_17 : f32 to vector<16x1xf32>
    %36 = arith.divf %34, %35 : vector<16x1xf32>
    %cst_18 = arith.constant 9.99999974E-6 : f32
    %37 = vector.broadcast %cst_18 : f32 to vector<16x1xf32>
    %38 = arith.addf %36, %37 : vector<16x1xf32>
    %39 = math.rsqrt %38 : vector<16x1xf32>
    %40 = vector.broadcast %39 : vector<16x1xf32> to vector<16x128xf32>
    %41 = arith.mulf %31, %40 : vector<16x128xf32>
    %42 = vector.broadcast %24 : vector<1x128xf32> to vector<16x128xf32>
    %43 = arith.mulf %41, %42 : vector<16x128xf32>
    %44 = vector.broadcast %25 : vector<1x128xf32> to vector<16x128xf32>
    %45 = arith.addf %43, %44 : vector<16x128xf32>
    %46 = arith.truncf %45 : vector<16x128xf32> to vector<16x128xbf16>
    %c0_19 = arith.constant 0 : index
    %c0_20 = arith.constant 0 : index
    %c0_21 = arith.constant 0 : index
    %47 = vector.load %arg6[%c0_19, %c0_20, %c0_21] : memref<4x128x32xbf16, #tpu.memory_space<vmem>>, vector<1x128x32xbf16>
    %48 = vector.shape_cast %47 : vector<1x128x32xbf16> to vector<128x32xbf16>
    %cst_22 = arith.constant dense<0.000000e+00> : vector<16x32xf32>
    %49 = tpu.matmul %46, %48, %cst_22 {dimension_numbers = #tpu.dot_dimension_numbers<[1], [0], [0], [1], [0, 0, 1, 1], [], []>} : vector<16x128xbf16>, vector<128x32xbf16>, vector<16x32xf32> -> vector<16x32xf32>
    %c0_23 = arith.constant 0 : index
    %c0_24 = arith.constant 0 : index
    %c0_25 = arith.constant 0 : index
    %50 = vector.load %arg9[%c0_23, %c0_24, %c0_25] : memref<4x1x32xf32, #tpu.memory_space<vmem>>, vector<1x1x32xf32>
    %51 = vector.shape_cast %50 : vector<1x1x32xf32> to vector<1x32xf32>
    %52 = vector.broadcast %51 : vector<1x32xf32> to vector<16x32xf32>
    %53 = arith.addf %49, %52 : vector<16x32xf32>
    %c0_26 = arith.constant 0 : index
    %c0_27 = arith.constant 0 : index
    %c0_28 = arith.constant 0 : index
    %54 = vector.load %arg7[%c0_26, %c0_27, %c0_28] : memref<4x128x32xbf16, #tpu.memory_space<vmem>>, vector<1x128x32xbf16>
    %55 = vector.shape_cast %54 : vector<1x128x32xbf16> to vector<128x32xbf16>
    %cst_29 = arith.constant dense<0.000000e+00> : vector<16x32xf32>
    %56 = tpu.matmul %46, %55, %cst_29 {dimension_numbers = #tpu.dot_dimension_numbers<[1], [0], [0], [1], [0, 0, 1, 1], [], []>} : vector<16x128xbf16>, vector<128x32xbf16>, vector<16x32xf32> -> vector<16x32xf32>
    %c0_30 = arith.constant 0 : index
    %c0_31 = arith.constant 0 : index
    %c0_32 = arith.constant 0 : index
    %57 = vector.load %arg10[%c0_30, %c0_31, %c0_32] : memref<4x1x32xf32, #tpu.memory_space<vmem>>, vector<1x1x32xf32>
    %58 = vector.shape_cast %57 : vector<1x1x32xf32> to vector<1x32xf32>
    %59 = vector.broadcast %58 : vector<1x32xf32> to vector<16x32xf32>
    %60 = arith.addf %56, %59 : vector<16x32xf32>
    %c0_33 = arith.constant 0 : index
    %c0_34 = arith.constant 0 : index
    %c0_35 = arith.constant 0 : index
    %61 = vector.load %arg8[%c0_33, %c0_34, %c0_35] : memref<4x128x32xbf16, #tpu.memory_space<vmem>>, vector<1x128x32xbf16>
    %62 = vector.shape_cast %61 : vector<1x128x32xbf16> to vector<128x32xbf16>
    %cst_36 = arith.constant dense<0.000000e+00> : vector<16x32xf32>
    %63 = tpu.matmul %46, %62, %cst_36 {dimension_numbers = #tpu.dot_dimension_numbers<[1], [0], [0], [1], [0, 0, 1, 1], [], []>} : vector<16x128xbf16>, vector<128x32xbf16>, vector<16x32xf32> -> vector<16x32xf32>
    %c0_37 = arith.constant 0 : index
    %c0_38 = arith.constant 0 : index
    %c0_39 = arith.constant 0 : index
    %64 = vector.load %arg11[%c0_37, %c0_38, %c0_39] : memref<4x1x32xf32, #tpu.memory_space<vmem>>, vector<1x1x32xf32>
    %65 = vector.shape_cast %64 : vector<1x1x32xf32> to vector<1x32xf32>
    %66 = vector.broadcast %65 : vector<1x32xf32> to vector<16x32xf32>
    %67 = arith.addf %63, %66 : vector<16x32xf32>
    %cst_40 = arith.constant 0.176776692 : f32
    %68 = vector.broadcast %cst_40 : f32 to vector<16x32xf32>
    %69 = arith.mulf %53, %68 : vector<16x32xf32>
    %70 = arith.truncf %69 : vector<16x32xf32> to vector<16x32xbf16>
    %71 = arith.truncf %60 : vector<16x32xf32> to vector<16x32xbf16>
    %cst_41 = arith.constant dense<0.000000e+00> : vector<16x16xf32>
    %72 = tpu.matmul %70, %71, %cst_41 {dimension_numbers = #tpu.dot_dimension_numbers<[1], [1], [0], [0], [0, 0, 1, 0], [], []>} : vector<16x32xbf16>, vector<16x32xbf16>, vector<16x16xf32> -> vector<16x16xf32>
    %cst_42 = arith.constant dense<0xFF800000> : vector<16xf32>
    %73 = vector.multi_reduction <maximumf>, %72, %cst_42 [1] : vector<16x16xf32> to vector<16xf32>
    %74 = vector.shape_cast %73 : vector<16xf32> to vector<16x1xf32>
    %75 = vector.broadcast %74 : vector<16x1xf32> to vector<16x16xf32>
    %76 = arith.subf %72, %75 : vector<16x16xf32>
    %77 = math.exp %76 : vector<16x16xf32>
    %cst_43 = arith.constant dense<0.000000e+00> : vector<16xf32>
    %78 = vector.multi_reduction <add>, %77, %cst_43 [1] : vector<16x16xf32> to vector<16xf32>
    %79 = vector.shape_cast %78 : vector<16xf32> to vector<16x1xf32>
    %80 = tpu.reciprocal %79 {approx = true} : vector<16x1xf32> -> vector<16x1xf32>
    %81 = vector.broadcast %80 : vector<16x1xf32> to vector<16x16xf32>
    %82 = arith.mulf %77, %81 : vector<16x16xf32>
    %83 = arith.truncf %82 : vector<16x16xf32> to vector<16x16xbf16>
    %84 = arith.truncf %67 : vector<16x32xf32> to vector<16x32xbf16>
    %cst_44 = arith.constant dense<0.000000e+00> : vector<16x32xf32>
    %85 = tpu.matmul %83, %84, %cst_44 {dimension_numbers = #tpu.dot_dimension_numbers<[1], [0], [0], [1], [0, 0, 1, 1], [], []>} : vector<16x16xbf16>, vector<16x32xbf16>, vector<16x32xf32> -> vector<16x32xf32>
    %86 = arith.truncf %85 : vector<16x32xf32> to vector<16x32xbf16>
    %c0_45 = arith.constant 0 : index
    %c0_46 = arith.constant 0 : index
    %c0_47 = arith.constant 0 : index
    %87 = vector.load %arg12[%c0_45, %c0_46, %c0_47] : memref<4x32x128xbf16, #tpu.memory_space<vmem>>, vector<1x32x128xbf16>
    %88 = vector.shape_cast %87 : vector<1x32x128xbf16> to vector<32x128xbf16>
    %cst_48 = arith.constant dense<0.000000e+00> : vector<16x128xf32>
    %89 = tpu.matmul %86, %88, %cst_48 {dimension_numbers = #tpu.dot_dimension_numbers<[1], [0], [0], [1], [0, 0, 1, 1], [], []>} : vector<16x32xbf16>, vector<32x128xbf16>, vector<16x128xf32> -> vector<16x128xf32>
    %c1 = arith.constant 1 : index
    %c0_49 = arith.constant 0 : index
    %c0_50 = arith.constant 0 : index
    %90 = vector.load %arg6[%c1, %c0_49, %c0_50] : memref<4x128x32xbf16, #tpu.memory_space<vmem>>, vector<1x128x32xbf16>
    %91 = vector.shape_cast %90 : vector<1x128x32xbf16> to vector<128x32xbf16>
    %cst_51 = arith.constant dense<0.000000e+00> : vector<16x32xf32>
    %92 = tpu.matmul %46, %91, %cst_51 {dimension_numbers = #tpu.dot_dimension_numbers<[1], [0], [0], [1], [0, 0, 1, 1], [], []>} : vector<16x128xbf16>, vector<128x32xbf16>, vector<16x32xf32> -> vector<16x32xf32>
    %c1_52 = arith.constant 1 : index
    %c0_53 = arith.constant 0 : index
    %c0_54 = arith.constant 0 : index
    %93 = vector.load %arg9[%c1_52, %c0_53, %c0_54] : memref<4x1x32xf32, #tpu.memory_space<vmem>>, vector<1x1x32xf32>
    %94 = vector.shape_cast %93 : vector<1x1x32xf32> to vector<1x32xf32>
    %95 = vector.broadcast %94 : vector<1x32xf32> to vector<16x32xf32>
    %96 = arith.addf %92, %95 : vector<16x32xf32>
    %c1_55 = arith.constant 1 : index
    %c0_56 = arith.constant 0 : index
    %c0_57 = arith.constant 0 : index
    %97 = vector.load %arg7[%c1_55, %c0_56, %c0_57] : memref<4x128x32xbf16, #tpu.memory_space<vmem>>, vector<1x128x32xbf16>
    %98 = vector.shape_cast %97 : vector<1x128x32xbf16> to vector<128x32xbf16>
    %cst_58 = arith.constant dense<0.000000e+00> : vector<16x32xf32>
    %99 = tpu.matmul %46, %98, %cst_58 {dimension_numbers = #tpu.dot_dimension_numbers<[1], [0], [0], [1], [0, 0, 1, 1], [], []>} : vector<16x128xbf16>, vector<128x32xbf16>, vector<16x32xf32> -> vector<16x32xf32>
    %c1_59 = arith.constant 1 : index
    %c0_60 = arith.constant 0 : index
    %c0_61 = arith.constant 0 : index
    %100 = vector.load %arg10[%c1_59, %c0_60, %c0_61] : memref<4x1x32xf32, #tpu.memory_space<vmem>>, vector<1x1x32xf32>
    %101 = vector.shape_cast %100 : vector<1x1x32xf32> to vector<1x32xf32>
    %102 = vector.broadcast %101 : vector<1x32xf32> to vector<16x32xf32>
    %103 = arith.addf %99, %102 : vector<16x32xf32>
    %c1_62 = arith.constant 1 : index
    %c0_63 = arith.constant 0 : index
    %c0_64 = arith.constant 0 : index
    %104 = vector.load %arg8[%c1_62, %c0_63, %c0_64] : memref<4x128x32xbf16, #tpu.memory_space<vmem>>, vector<1x128x32xbf16>
    %105 = vector.shape_cast %104 : vector<1x128x32xbf16> to vector<128x32xbf16>
    %cst_65 = arith.constant dense<0.000000e+00> : vector<16x32xf32>
    %106 = tpu.matmul %46, %105, %cst_65 {dimension_numbers = #tpu.dot_dimension_numbers<[1], [0], [0], [1], [0, 0, 1, 1], [], []>} : vector<16x128xbf16>, vector<128x32xbf16>, vector<16x32xf32> -> vector<16x32xf32>
    %c1_66 = arith.constant 1 : index
    %c0_67 = arith.constant 0 : index
    %c0_68 = arith.constant 0 : index
    %107 = vector.load %arg11[%c1_66, %c0_67, %c0_68] : memref<4x1x32xf32, #tpu.memory_space<vmem>>, vector<1x1x32xf32>
    %108 = vector.shape_cast %107 : vector<1x1x32xf32> to vector<1x32xf32>
    %109 = vector.broadcast %108 : vector<1x32xf32> to vector<16x32xf32>
    %110 = arith.addf %106, %109 : vector<16x32xf32>
    %cst_69 = arith.constant 0.176776692 : f32
    %111 = vector.broadcast %cst_69 : f32 to vector<16x32xf32>
    %112 = arith.mulf %96, %111 : vector<16x32xf32>
    %113 = arith.truncf %112 : vector<16x32xf32> to vector<16x32xbf16>
    %114 = arith.truncf %103 : vector<16x32xf32> to vector<16x32xbf16>
    %cst_70 = arith.constant dense<0.000000e+00> : vector<16x16xf32>
    %115 = tpu.matmul %113, %114, %cst_70 {dimension_numbers = #tpu.dot_dimension_numbers<[1], [1], [0], [0], [0, 0, 1, 0], [], []>} : vector<16x32xbf16>, vector<16x32xbf16>, vector<16x16xf32> -> vector<16x16xf32>
    %cst_71 = arith.constant dense<0xFF800000> : vector<16xf32>
    %116 = vector.multi_reduction <maximumf>, %115, %cst_71 [1] : vector<16x16xf32> to vector<16xf32>
    %117 = vector.shape_cast %116 : vector<16xf32> to vector<16x1xf32>
    %118 = vector.broadcast %117 : vector<16x1xf32> to vector<16x16xf32>
    %119 = arith.subf %115, %118 : vector<16x16xf32>
    %120 = math.exp %119 : vector<16x16xf32>
    %cst_72 = arith.constant dense<0.000000e+00> : vector<16xf32>
    %121 = vector.multi_reduction <add>, %120, %cst_72 [1] : vector<16x16xf32> to vector<16xf32>
    %122 = vector.shape_cast %121 : vector<16xf32> to vector<16x1xf32>
    %123 = tpu.reciprocal %122 {approx = true} : vector<16x1xf32> -> vector<16x1xf32>
    %124 = vector.broadcast %123 : vector<16x1xf32> to vector<16x16xf32>
    %125 = arith.mulf %120, %124 : vector<16x16xf32>
    %126 = arith.truncf %125 : vector<16x16xf32> to vector<16x16xbf16>
    %127 = arith.truncf %110 : vector<16x32xf32> to vector<16x32xbf16>
    %cst_73 = arith.constant dense<0.000000e+00> : vector<16x32xf32>
    %128 = tpu.matmul %126, %127, %cst_73 {dimension_numbers = #tpu.dot_dimension_numbers<[1], [0], [0], [1], [0, 0, 1, 1], [], []>} : vector<16x16xbf16>, vector<16x32xbf16>, vector<16x32xf32> -> vector<16x32xf32>
    %129 = arith.truncf %128 : vector<16x32xf32> to vector<16x32xbf16>
    %c1_74 = arith.constant 1 : index
    %c0_75 = arith.constant 0 : index
    %c0_76 = arith.constant 0 : index
    %130 = vector.load %arg12[%c1_74, %c0_75, %c0_76] : memref<4x32x128xbf16, #tpu.memory_space<vmem>>, vector<1x32x128xbf16>
    %131 = vector.shape_cast %130 : vector<1x32x128xbf16> to vector<32x128xbf16>
    %cst_77 = arith.constant dense<0.000000e+00> : vector<16x128xf32>
    %132 = tpu.matmul %129, %131, %cst_77 {dimension_numbers = #tpu.dot_dimension_numbers<[1], [0], [0], [1], [0, 0, 1, 1], [], []>} : vector<16x32xbf16>, vector<32x128xbf16>, vector<16x128xf32> -> vector<16x128xf32>
    %133 = arith.addf %89, %132 : vector<16x128xf32>
    %c2 = arith.constant 2 : index
    %c0_78 = arith.constant 0 : index
    %c0_79 = arith.constant 0 : index
    %134 = vector.load %arg6[%c2, %c0_78, %c0_79] : memref<4x128x32xbf16, #tpu.memory_space<vmem>>, vector<1x128x32xbf16>
    %135 = vector.shape_cast %134 : vector<1x128x32xbf16> to vector<128x32xbf16>
    %cst_80 = arith.constant dense<0.000000e+00> : vector<16x32xf32>
    %136 = tpu.matmul %46, %135, %cst_80 {dimension_numbers = #tpu.dot_dimension_numbers<[1], [0], [0], [1], [0, 0, 1, 1], [], []>} : vector<16x128xbf16>, vector<128x32xbf16>, vector<16x32xf32> -> vector<16x32xf32>
    %c2_81 = arith.constant 2 : index
    %c0_82 = arith.constant 0 : index
    %c0_83 = arith.constant 0 : index
    %137 = vector.load %arg9[%c2_81, %c0_82, %c0_83] : memref<4x1x32xf32, #tpu.memory_space<vmem>>, vector<1x1x32xf32>
    %138 = vector.shape_cast %137 : vector<1x1x32xf32> to vector<1x32xf32>
    %139 = vector.broadcast %138 : vector<1x32xf32> to vector<16x32xf32>
    %140 = arith.addf %136, %139 : vector<16x32xf32>
    %c2_84 = arith.constant 2 : index
    %c0_85 = arith.constant 0 : index
    %c0_86 = arith.constant 0 : index
    %141 = vector.load %arg7[%c2_84, %c0_85, %c0_86] : memref<4x128x32xbf16, #tpu.memory_space<vmem>>, vector<1x128x32xbf16>
    %142 = vector.shape_cast %141 : vector<1x128x32xbf16> to vector<128x32xbf16>
    %cst_87 = arith.constant dense<0.000000e+00> : vector<16x32xf32>
    %143 = tpu.matmul %46, %142, %cst_87 {dimension_numbers = #tpu.dot_dimension_numbers<[1], [0], [0], [1], [0, 0, 1, 1], [], []>} : vector<16x128xbf16>, vector<128x32xbf16>, vector<16x32xf32> -> vector<16x32xf32>
    %c2_88 = arith.constant 2 : index
    %c0_89 = arith.constant 0 : index
    %c0_90 = arith.constant 0 : index
    %144 = vector.load %arg10[%c2_88, %c0_89, %c0_90] : memref<4x1x32xf32, #tpu.memory_space<vmem>>, vector<1x1x32xf32>
    %145 = vector.shape_cast %144 : vector<1x1x32xf32> to vector<1x32xf32>
    %146 = vector.broadcast %145 : vector<1x32xf32> to vector<16x32xf32>
    %147 = arith.addf %143, %146 : vector<16x32xf32>
    %c2_91 = arith.constant 2 : index
    %c0_92 = arith.constant 0 : index
    %c0_93 = arith.constant 0 : index
    %148 = vector.load %arg8[%c2_91, %c0_92, %c0_93] : memref<4x128x32xbf16, #tpu.memory_space<vmem>>, vector<1x128x32xbf16>
    %149 = vector.shape_cast %148 : vector<1x128x32xbf16> to vector<128x32xbf16>
    %cst_94 = arith.constant dense<0.000000e+00> : vector<16x32xf32>
    %150 = tpu.matmul %46, %149, %cst_94 {dimension_numbers = #tpu.dot_dimension_numbers<[1], [0], [0], [1], [0, 0, 1, 1], [], []>} : vector<16x128xbf16>, vector<128x32xbf16>, vector<16x32xf32> -> vector<16x32xf32>
    %c2_95 = arith.constant 2 : index
    %c0_96 = arith.constant 0 : index
    %c0_97 = arith.constant 0 : index
    %151 = vector.load %arg11[%c2_95, %c0_96, %c0_97] : memref<4x1x32xf32, #tpu.memory_space<vmem>>, vector<1x1x32xf32>
    %152 = vector.shape_cast %151 : vector<1x1x32xf32> to vector<1x32xf32>
    %153 = vector.broadcast %152 : vector<1x32xf32> to vector<16x32xf32>
    %154 = arith.addf %150, %153 : vector<16x32xf32>
    %cst_98 = arith.constant 0.176776692 : f32
    %155 = vector.broadcast %cst_98 : f32 to vector<16x32xf32>
    %156 = arith.mulf %140, %155 : vector<16x32xf32>
    %157 = arith.truncf %156 : vector<16x32xf32> to vector<16x32xbf16>
    %158 = arith.truncf %147 : vector<16x32xf32> to vector<16x32xbf16>
    %cst_99 = arith.constant dense<0.000000e+00> : vector<16x16xf32>
    %159 = tpu.matmul %157, %158, %cst_99 {dimension_numbers = #tpu.dot_dimension_numbers<[1], [1], [0], [0], [0, 0, 1, 0], [], []>} : vector<16x32xbf16>, vector<16x32xbf16>, vector<16x16xf32> -> vector<16x16xf32>
    %cst_100 = arith.constant dense<0xFF800000> : vector<16xf32>
    %160 = vector.multi_reduction <maximumf>, %159, %cst_100 [1] : vector<16x16xf32> to vector<16xf32>
    %161 = vector.shape_cast %160 : vector<16xf32> to vector<16x1xf32>
    %162 = vector.broadcast %161 : vector<16x1xf32> to vector<16x16xf32>
    %163 = arith.subf %159, %162 : vector<16x16xf32>
    %164 = math.exp %163 : vector<16x16xf32>
    %cst_101 = arith.constant dense<0.000000e+00> : vector<16xf32>
    %165 = vector.multi_reduction <add>, %164, %cst_101 [1] : vector<16x16xf32> to vector<16xf32>
    %166 = vector.shape_cast %165 : vector<16xf32> to vector<16x1xf32>
    %167 = tpu.reciprocal %166 {approx = true} : vector<16x1xf32> -> vector<16x1xf32>
    %168 = vector.broadcast %167 : vector<16x1xf32> to vector<16x16xf32>
    %169 = arith.mulf %164, %168 : vector<16x16xf32>
    %170 = arith.truncf %169 : vector<16x16xf32> to vector<16x16xbf16>
    %171 = arith.truncf %154 : vector<16x32xf32> to vector<16x32xbf16>
    %cst_102 = arith.constant dense<0.000000e+00> : vector<16x32xf32>
    %172 = tpu.matmul %170, %171, %cst_102 {dimension_numbers = #tpu.dot_dimension_numbers<[1], [0], [0], [1], [0, 0, 1, 1], [], []>} : vector<16x16xbf16>, vector<16x32xbf16>, vector<16x32xf32> -> vector<16x32xf32>
    %173 = arith.truncf %172 : vector<16x32xf32> to vector<16x32xbf16>
    %c2_103 = arith.constant 2 : index
    %c0_104 = arith.constant 0 : index
    %c0_105 = arith.constant 0 : index
    %174 = vector.load %arg12[%c2_103, %c0_104, %c0_105] : memref<4x32x128xbf16, #tpu.memory_space<vmem>>, vector<1x32x128xbf16>
    %175 = vector.shape_cast %174 : vector<1x32x128xbf16> to vector<32x128xbf16>
    %cst_106 = arith.constant dense<0.000000e+00> : vector<16x128xf32>
    %176 = tpu.matmul %173, %175, %cst_106 {dimension_numbers = #tpu.dot_dimension_numbers<[1], [0], [0], [1], [0, 0, 1, 1], [], []>} : vector<16x32xbf16>, vector<32x128xbf16>, vector<16x128xf32> -> vector<16x128xf32>
    %177 = arith.addf %133, %176 : vector<16x128xf32>
    %c3 = arith.constant 3 : index
    %c0_107 = arith.constant 0 : index
    %c0_108 = arith.constant 0 : index
    %178 = vector.load %arg6[%c3, %c0_107, %c0_108] : memref<4x128x32xbf16, #tpu.memory_space<vmem>>, vector<1x128x32xbf16>
    %179 = vector.shape_cast %178 : vector<1x128x32xbf16> to vector<128x32xbf16>
    %cst_109 = arith.constant dense<0.000000e+00> : vector<16x32xf32>
    %180 = tpu.matmul %46, %179, %cst_109 {dimension_numbers = #tpu.dot_dimension_numbers<[1], [0], [0], [1], [0, 0, 1, 1], [], []>} : vector<16x128xbf16>, vector<128x32xbf16>, vector<16x32xf32> -> vector<16x32xf32>
    %c3_110 = arith.constant 3 : index
    %c0_111 = arith.constant 0 : index
    %c0_112 = arith.constant 0 : index
    %181 = vector.load %arg9[%c3_110, %c0_111, %c0_112] : memref<4x1x32xf32, #tpu.memory_space<vmem>>, vector<1x1x32xf32>
    %182 = vector.shape_cast %181 : vector<1x1x32xf32> to vector<1x32xf32>
    %183 = vector.broadcast %182 : vector<1x32xf32> to vector<16x32xf32>
    %184 = arith.addf %180, %183 : vector<16x32xf32>
    %c3_113 = arith.constant 3 : index
    %c0_114 = arith.constant 0 : index
    %c0_115 = arith.constant 0 : index
    %185 = vector.load %arg7[%c3_113, %c0_114, %c0_115] : memref<4x128x32xbf16, #tpu.memory_space<vmem>>, vector<1x128x32xbf16>
    %186 = vector.shape_cast %185 : vector<1x128x32xbf16> to vector<128x32xbf16>
    %cst_116 = arith.constant dense<0.000000e+00> : vector<16x32xf32>
    %187 = tpu.matmul %46, %186, %cst_116 {dimension_numbers = #tpu.dot_dimension_numbers<[1], [0], [0], [1], [0, 0, 1, 1], [], []>} : vector<16x128xbf16>, vector<128x32xbf16>, vector<16x32xf32> -> vector<16x32xf32>
    %c3_117 = arith.constant 3 : index
    %c0_118 = arith.constant 0 : index
    %c0_119 = arith.constant 0 : index
    %188 = vector.load %arg10[%c3_117, %c0_118, %c0_119] : memref<4x1x32xf32, #tpu.memory_space<vmem>>, vector<1x1x32xf32>
    %189 = vector.shape_cast %188 : vector<1x1x32xf32> to vector<1x32xf32>
    %190 = vector.broadcast %189 : vector<1x32xf32> to vector<16x32xf32>
    %191 = arith.addf %187, %190 : vector<16x32xf32>
    %c3_120 = arith.constant 3 : index
    %c0_121 = arith.constant 0 : index
    %c0_122 = arith.constant 0 : index
    %192 = vector.load %arg8[%c3_120, %c0_121, %c0_122] : memref<4x128x32xbf16, #tpu.memory_space<vmem>>, vector<1x128x32xbf16>
    %193 = vector.shape_cast %192 : vector<1x128x32xbf16> to vector<128x32xbf16>
    %cst_123 = arith.constant dense<0.000000e+00> : vector<16x32xf32>
    %194 = tpu.matmul %46, %193, %cst_123 {dimension_numbers = #tpu.dot_dimension_numbers<[1], [0], [0], [1], [0, 0, 1, 1], [], []>} : vector<16x128xbf16>, vector<128x32xbf16>, vector<16x32xf32> -> vector<16x32xf32>
    %c3_124 = arith.constant 3 : index
    %c0_125 = arith.constant 0 : index
    %c0_126 = arith.constant 0 : index
    %195 = vector.load %arg11[%c3_124, %c0_125, %c0_126] : memref<4x1x32xf32, #tpu.memory_space<vmem>>, vector<1x1x32xf32>
    %196 = vector.shape_cast %195 : vector<1x1x32xf32> to vector<1x32xf32>
    %197 = vector.broadcast %196 : vector<1x32xf32> to vector<16x32xf32>
    %198 = arith.addf %194, %197 : vector<16x32xf32>
    %cst_127 = arith.constant 0.176776692 : f32
    %199 = vector.broadcast %cst_127 : f32 to vector<16x32xf32>
    %200 = arith.mulf %184, %199 : vector<16x32xf32>
    %201 = arith.truncf %200 : vector<16x32xf32> to vector<16x32xbf16>
    %202 = arith.truncf %191 : vector<16x32xf32> to vector<16x32xbf16>
    %cst_128 = arith.constant dense<0.000000e+00> : vector<16x16xf32>
    %203 = tpu.matmul %201, %202, %cst_128 {dimension_numbers = #tpu.dot_dimension_numbers<[1], [1], [0], [0], [0, 0, 1, 0], [], []>} : vector<16x32xbf16>, vector<16x32xbf16>, vector<16x16xf32> -> vector<16x16xf32>
    %cst_129 = arith.constant dense<0xFF800000> : vector<16xf32>
    %204 = vector.multi_reduction <maximumf>, %203, %cst_129 [1] : vector<16x16xf32> to vector<16xf32>
    %205 = vector.shape_cast %204 : vector<16xf32> to vector<16x1xf32>
    %206 = vector.broadcast %205 : vector<16x1xf32> to vector<16x16xf32>
    %207 = arith.subf %203, %206 : vector<16x16xf32>
    %208 = math.exp %207 : vector<16x16xf32>
    %cst_130 = arith.constant dense<0.000000e+00> : vector<16xf32>
    %209 = vector.multi_reduction <add>, %208, %cst_130 [1] : vector<16x16xf32> to vector<16xf32>
    %210 = vector.shape_cast %209 : vector<16xf32> to vector<16x1xf32>
    %211 = tpu.reciprocal %210 {approx = true} : vector<16x1xf32> -> vector<16x1xf32>
    %212 = vector.broadcast %211 : vector<16x1xf32> to vector<16x16xf32>
    %213 = arith.mulf %208, %212 : vector<16x16xf32>
    %214 = arith.truncf %213 : vector<16x16xf32> to vector<16x16xbf16>
    %215 = arith.truncf %198 : vector<16x32xf32> to vector<16x32xbf16>
    %cst_131 = arith.constant dense<0.000000e+00> : vector<16x32xf32>
    %216 = tpu.matmul %214, %215, %cst_131 {dimension_numbers = #tpu.dot_dimension_numbers<[1], [0], [0], [1], [0, 0, 1, 1], [], []>} : vector<16x16xbf16>, vector<16x32xbf16>, vector<16x32xf32> -> vector<16x32xf32>
    %217 = arith.truncf %216 : vector<16x32xf32> to vector<16x32xbf16>
    %c3_132 = arith.constant 3 : index
    %c0_133 = arith.constant 0 : index
    %c0_134 = arith.constant 0 : index
    %218 = vector.load %arg12[%c3_132, %c0_133, %c0_134] : memref<4x32x128xbf16, #tpu.memory_space<vmem>>, vector<1x32x128xbf16>
    %219 = vector.shape_cast %218 : vector<1x32x128xbf16> to vector<32x128xbf16>
    %cst_135 = arith.constant dense<0.000000e+00> : vector<16x128xf32>
    %220 = tpu.matmul %217, %219, %cst_135 {dimension_numbers = #tpu.dot_dimension_numbers<[1], [0], [0], [1], [0, 0, 1, 1], [], []>} : vector<16x32xbf16>, vector<32x128xbf16>, vector<16x128xf32> -> vector<16x128xf32>
    %221 = arith.addf %177, %220 : vector<16x128xf32>
    %222 = arith.addf %1, %221 : vector<16x128xf32>
    %c0_136 = arith.constant 0 : index
    %c0_137 = arith.constant 0 : index
    %223 = vector.load %arg13[%c0_136, %c0_137] : memref<1x128xf32, #tpu.memory_space<vmem>>, vector<1x128xf32>
    %224 = vector.broadcast %223 : vector<1x128xf32> to vector<16x128xf32>
    %225 = arith.addf %222, %224 : vector<16x128xf32>
    %c0_138 = arith.constant 0 : index
    %c0_139 = arith.constant 0 : index
    %c0_140 = arith.constant 0 : index
    %226 = vector.load %arg14[%c0_138, %c0_139, %c0_140] : memref<1x16x128xf32, #tpu.memory_space<vmem>>, vector<1x16x128xf32>
    %227 = vector.shape_cast %226 : vector<1x16x128xf32> to vector<16x128xf32>
    %228 = vector.shape_cast %225 : vector<16x128xf32> to vector<1x16x128xf32>
    tpu.vector_store %arg14[%c0_138, %c0_139, %c0_140], %228 {strides = array<i32>} : memref<1x16x128xf32, #tpu.memory_space<vmem>>, vector<1x16x128xf32>,
    return
  }
  func.func @transform_0(%arg0: i32) -> (i32, i32, i32) {
    %c0_i32 = arith.constant 0 : i32
    %c0_i32_0 = arith.constant 0 : i32
    %c0_i32_1 = arith.constant 0 : i32
    return %arg0, %c0_i32, %c0_i32_0 : i32, i32, i32
  }
  func.func @transform_1(%arg0: i32) -> (i32, i32) {
    %c0_i32 = arith.constant 0 : i32
    %c0_i32_0 = arith.constant 0 : i32
    %c0_i32_1 = arith.constant 0 : i32
    return %c0_i32, %c0_i32_0 : i32, i32
  }
  func.func @transform_2(%arg0: i32) -> (i32, i32) {
    %c0_i32 = arith.constant 0 : i32
    %c0_i32_0 = arith.constant 0 : i32
    %c0_i32_1 = arith.constant 0 : i32
    return %c0_i32, %c0_i32_0 : i32, i32
  }
  func.func @transform_3(%arg0: i32) -> (i32, i32) {
    %c0_i32 = arith.constant 0 : i32
    %c0_i32_0 = arith.constant 0 : i32
    %c0_i32_1 = arith.constant 0 : i32
    return %c0_i32, %c0_i32_0 : i32, i32
  }
  func.func @transform_4(%arg0: i32) -> (i32, i32) {
    %c0_i32 = arith.constant 0 : i32
    %c0_i32_0 = arith.constant 0 : i32
    %c0_i32_1 = arith.constant 0 : i32
    return %c0_i32, %c0_i32_0 : i32, i32
  }
  func.func @transform_5(%arg0: i32) -> (i32, i32, i32) {
    %c0_i32 = arith.constant 0 : i32
    %c0_i32_0 = arith.constant 0 : i32
    %c0_i32_1 = arith.constant 0 : i32
    %c0_i32_2 = arith.constant 0 : i32
    return %c0_i32, %c0_i32_0, %c0_i32_1 : i32, i32, i32
  }
  func.func @transform_6(%arg0: i32) -> (i32, i32, i32) {
    %c0_i32 = arith.constant 0 : i32
    %c0_i32_0 = arith.constant 0 : i32
    %c0_i32_1 = arith.constant 0 : i32
    %c0_i32_2 = arith.constant 0 : i32
    return %c0_i32, %c0_i32_0, %c0_i32_1 : i32, i32, i32
  }
  func.func @transform_7(%arg0: i32) -> (i32, i32, i32) {
    %c0_i32 = arith.constant 0 : i32
    %c0_i32_0 = arith.constant 0 : i32
    %c0_i32_1 = arith.constant 0 : i32
    %c0_i32_2 = arith.constant 0 : i32
    return %c0_i32, %c0_i32_0, %c0_i32_1 : i32, i32, i32
  }
  func.func @transform_8(%arg0: i32) -> (i32, i32, i32) {
    %c0_i32 = arith.constant 0 : i32
    %c0_i32_0 = arith.constant 0 : i32
    %c0_i32_1 = arith.constant 0 : i32
    %c0_i32_2 = arith.constant 0 : i32
    return %c0_i32, %c0_i32_0, %c0_i32_1 : i32, i32, i32
  }
  func.func @transform_9(%arg0: i32) -> (i32, i32, i32) {
    %c0_i32 = arith.constant 0 : i32
    %c0_i32_0 = arith.constant 0 : i32
    %c0_i32_1 = arith.constant 0 : i32
    %c0_i32_2 = arith.constant 0 : i32
    return %c0_i32, %c0_i32_0, %c0_i32_1 : i32, i32, i32
  }
  func.func @transform_10(%arg0: i32) -> (i32, i32, i32) {
    %c0_i32 = arith.constant 0 : i32
    %c0_i32_0 = arith.constant 0 : i32
    %c0_i32_1 = arith.constant 0 : i32
    %c0_i32_2 = arith.constant 0 : i32
    return %c0_i32, %c0_i32_0, %c0_i32_1 : i32, i32, i32
  }
  func.func @transform_11(%arg0: i32) -> (i32, i32, i32) {
    %c0_i32 = arith.constant 0 : i32
    %c0_i32_0 = arith.constant 0 : i32
    %c0_i32_1 = arith.constant 0 : i32
    %c0_i32_2 = arith.constant 0 : i32
    return %c0_i32, %c0_i32_0, %c0_i32_1 : i32, i32, i32
  }
  func.func @transform_12(%arg0: i32) -> (i32, i32) {
    %c0_i32 = arith.constant 0 : i32
    %c0_i32_0 = arith.constant 0 : i32
    %c0_i32_1 = arith.constant 0 : i32
    return %c0_i32, %c0_i32_0 : i32, i32
  }
  func.func @transform_13(%arg0: i32) -> (i32, i32, i32) {
    %c0_i32 = arith.constant 0 : i32
    %c0_i32_0 = arith.constant 0 : i32
    %c0_i32_1 = arith.constant 0 : i32
    return %arg0, %c0_i32, %c0_i32_0 : i32, i32, i32
  }
}

module attributes {stable_mosaic.version = 11 : i64} {
  func.func @_mlp_block_kernel(%arg0: i32, %arg1: memref<1x16x128xf32, #tpu.memory_space<vmem>>, %arg2: memref<1x128xf32, #tpu.memory_space<vmem>>, %arg3: memref<1x128xf32, #tpu.memory_space<vmem>>, %arg4: memref<128x512xbf16, #tpu.memory_space<vmem>>, %arg5: memref<1x512xf32, #tpu.memory_space<vmem>>, %arg6: memref<512x128xbf16, #tpu.memory_space<vmem>>, %arg7: memref<1x128xf32, #tpu.memory_space<vmem>>, %arg8: memref<1x16x128xf32, #tpu.memory_space<vmem>>) attributes {dimension_semantics = [#tpu.dimension_semantics<parallel>], iteration_bounds = array<i64: 2>, scalar_prefetch = 0 : i64, scratch_operands = 0 : i64, tpu.core_type = #tpu.core_type<tc>, window_params = [{transform_indices = @transform_0, window_bounds = array<i64: 1, 16, 128>}, {pipeline_mode = #tpu.pipeline_mode<synchronous>, transform_indices = @transform_1, window_bounds = array<i64: 1, 128>}, {pipeline_mode = #tpu.pipeline_mode<synchronous>, transform_indices = @transform_2, window_bounds = array<i64: 1, 128>}, {pipeline_mode = #tpu.pipeline_mode<synchronous>, transform_indices = @transform_3, window_bounds = array<i64: 128, 512>}, {pipeline_mode = #tpu.pipeline_mode<synchronous>, transform_indices = @transform_4, window_bounds = array<i64: 1, 512>}, {pipeline_mode = #tpu.pipeline_mode<synchronous>, transform_indices = @transform_5, window_bounds = array<i64: 512, 128>}, {pipeline_mode = #tpu.pipeline_mode<synchronous>, transform_indices = @transform_6, window_bounds = array<i64: 1, 128>}, {transform_indices = @transform_7, window_bounds = array<i64: 1, 16, 128>}]} {
    %c0 = arith.constant 0 : index
    %c0_0 = arith.constant 0 : index
    %c0_1 = arith.constant 0 : index
    %0 = vector.load %arg1[%c0, %c0_0, %c0_1] : memref<1x16x128xf32, #tpu.memory_space<vmem>>, vector<1x16x128xf32>
    %1 = vector.shape_cast %0 : vector<1x16x128xf32> to vector<16x128xf32>
    %c0_2 = arith.constant 0 : index
    %c0_3 = arith.constant 0 : index
    %2 = vector.load %arg2[%c0_2, %c0_3] : memref<1x128xf32, #tpu.memory_space<vmem>>, vector<1x128xf32>
    %c0_4 = arith.constant 0 : index
    %c0_5 = arith.constant 0 : index
    %3 = vector.load %arg3[%c0_4, %c0_5] : memref<1x128xf32, #tpu.memory_space<vmem>>, vector<1x128xf32>
    %cst = arith.constant dense<0.000000e+00> : vector<16xf32>
    %4 = vector.multi_reduction <add>, %1, %cst [1] : vector<16x128xf32> to vector<16xf32>
    %5 = vector.shape_cast %4 : vector<16xf32> to vector<16x1xf32>
    %cst_6 = arith.constant 1.280000e+02 : f32
    %6 = vector.broadcast %cst_6 : f32 to vector<16x1xf32>
    %7 = arith.divf %5, %6 : vector<16x1xf32>
    %8 = vector.broadcast %7 : vector<16x1xf32> to vector<16x128xf32>
    %9 = arith.subf %1, %8 : vector<16x128xf32>
    %10 = arith.mulf %9, %9 : vector<16x128xf32>
    %cst_7 = arith.constant dense<0.000000e+00> : vector<16xf32>
    %11 = vector.multi_reduction <add>, %10, %cst_7 [1] : vector<16x128xf32> to vector<16xf32>
    %12 = vector.shape_cast %11 : vector<16xf32> to vector<16x1xf32>
    %cst_8 = arith.constant 1.280000e+02 : f32
    %13 = vector.broadcast %cst_8 : f32 to vector<16x1xf32>
    %14 = arith.divf %12, %13 : vector<16x1xf32>
    %cst_9 = arith.constant 9.99999974E-6 : f32
    %15 = vector.broadcast %cst_9 : f32 to vector<16x1xf32>
    %16 = arith.addf %14, %15 : vector<16x1xf32>
    %17 = math.rsqrt %16 : vector<16x1xf32>
    %18 = vector.broadcast %17 : vector<16x1xf32> to vector<16x128xf32>
    %19 = arith.mulf %9, %18 : vector<16x128xf32>
    %20 = vector.broadcast %2 : vector<1x128xf32> to vector<16x128xf32>
    %21 = arith.mulf %19, %20 : vector<16x128xf32>
    %22 = vector.broadcast %3 : vector<1x128xf32> to vector<16x128xf32>
    %23 = arith.addf %21, %22 : vector<16x128xf32>
    %24 = arith.truncf %23 : vector<16x128xf32> to vector<16x128xbf16>
    %c0_10 = arith.constant 0 : index
    %c0_11 = arith.constant 0 : index
    %25 = vector.load %arg4[%c0_10, %c0_11] : memref<128x512xbf16, #tpu.memory_space<vmem>>, vector<128x512xbf16>
    %cst_12 = arith.constant dense<0.000000e+00> : vector<16x512xf32>
    %26 = tpu.matmul %24, %25, %cst_12 {dimension_numbers = #tpu.dot_dimension_numbers<[1], [0], [0], [1], [0, 0, 1, 1], [], []>} : vector<16x128xbf16>, vector<128x512xbf16>, vector<16x512xf32> -> vector<16x512xf32>
    %c0_13 = arith.constant 0 : index
    %c0_14 = arith.constant 0 : index
    %27 = vector.load %arg5[%c0_13, %c0_14] : memref<1x512xf32, #tpu.memory_space<vmem>>, vector<1x512xf32>
    %28 = vector.broadcast %27 : vector<1x512xf32> to vector<16x512xf32>
    %29 = arith.addf %26, %28 : vector<16x512xf32>
    %cst_15 = arith.constant 0.000000e+00 : f32
    %30 = vector.broadcast %cst_15 : f32 to vector<16x512xf32>
    %31 = arith.maximumf %29, %30 : vector<16x512xf32>
    %32 = arith.truncf %31 : vector<16x512xf32> to vector<16x512xbf16>
    %c0_16 = arith.constant 0 : index
    %c0_17 = arith.constant 0 : index
    %33 = vector.load %arg6[%c0_16, %c0_17] : memref<512x128xbf16, #tpu.memory_space<vmem>>, vector<512x128xbf16>
    %cst_18 = arith.constant dense<0.000000e+00> : vector<16x128xf32>
    %34 = tpu.matmul %32, %33, %cst_18 {dimension_numbers = #tpu.dot_dimension_numbers<[1], [0], [0], [1], [0, 0, 1, 1], [], []>} : vector<16x512xbf16>, vector<512x128xbf16>, vector<16x128xf32> -> vector<16x128xf32>
    %c0_19 = arith.constant 0 : index
    %c0_20 = arith.constant 0 : index
    %35 = vector.load %arg7[%c0_19, %c0_20] : memref<1x128xf32, #tpu.memory_space<vmem>>, vector<1x128xf32>
    %36 = vector.broadcast %35 : vector<1x128xf32> to vector<16x128xf32>
    %37 = arith.addf %34, %36 : vector<16x128xf32>
    %38 = arith.addf %1, %37 : vector<16x128xf32>
    %c0_21 = arith.constant 0 : index
    %c0_22 = arith.constant 0 : index
    %c0_23 = arith.constant 0 : index
    %39 = vector.load %arg8[%c0_21, %c0_22, %c0_23] : memref<1x16x128xf32, #tpu.memory_space<vmem>>, vector<1x16x128xf32>
    %40 = vector.shape_cast %39 : vector<1x16x128xf32> to vector<16x128xf32>
    %41 = vector.shape_cast %38 : vector<16x128xf32> to vector<1x16x128xf32>
    tpu.vector_store %arg8[%c0_21, %c0_22, %c0_23], %41 {strides = array<i32>} : memref<1x16x128xf32, #tpu.memory_space<vmem>>, vector<1x16x128xf32>,
    return
  }
  func.func @transform_0(%arg0: i32) -> (i32, i32, i32) {
    %c0_i32 = arith.constant 0 : i32
    %c0_i32_0 = arith.constant 0 : i32
    %c0_i32_1 = arith.constant 0 : i32
    return %arg0, %c0_i32, %c0_i32_0 : i32, i32, i32
  }
  func.func @transform_1(%arg0: i32) -> (i32, i32) {
    %c0_i32 = arith.constant 0 : i32
    %c0_i32_0 = arith.constant 0 : i32
    %c0_i32_1 = arith.constant 0 : i32
    return %c0_i32, %c0_i32_0 : i32, i32
  }
  func.func @transform_2(%arg0: i32) -> (i32, i32) {
    %c0_i32 = arith.constant 0 : i32
    %c0_i32_0 = arith.constant 0 : i32
    %c0_i32_1 = arith.constant 0 : i32
    return %c0_i32, %c0_i32_0 : i32, i32
  }
  func.func @transform_3(%arg0: i32) -> (i32, i32) {
    %c0_i32 = arith.constant 0 : i32
    %c0_i32_0 = arith.constant 0 : i32
    %c0_i32_1 = arith.constant 0 : i32
    return %c0_i32, %c0_i32_0 : i32, i32
  }
  func.func @transform_4(%arg0: i32) -> (i32, i32) {
    %c0_i32 = arith.constant 0 : i32
    %c0_i32_0 = arith.constant 0 : i32
    %c0_i32_1 = arith.constant 0 : i32
    return %c0_i32, %c0_i32_0 : i32, i32
  }
  func.func @transform_5(%arg0: i32) -> (i32, i32) {
    %c0_i32 = arith.constant 0 : i32
    %c0_i32_0 = arith.constant 0 : i32
    %c0_i32_1 = arith.constant 0 : i32
    return %c0_i32, %c0_i32_0 : i32, i32
  }
  func.func @transform_6(%arg0: i32) -> (i32, i32) {
    %c0_i32 = arith.constant 0 : i32
    %c0_i32_0 = arith.constant 0 : i32
    %c0_i32_1 = arith.constant 0 : i32
    return %c0_i32, %c0_i32_0 : i32, i32
  }
  func.func @transform_7(%arg0: i32) -> (i32, i32, i32) {
    %c0_i32 = arith.constant 0 : i32
    %c0_i32_0 = arith.constant 0 : i32
    %c0_i32_1 = arith.constant 0 : i32
    return %arg0, %c0_i32, %c0_i32_0 : i32, i32, i32
  }
}

module attributes {stable_mosaic.version = 11 : i64} {
  func.func @_head_kernel(%arg0: i32, %arg1: memref<1x16x128xf32, #tpu.memory_space<vmem>>, %arg2: memref<1x128xf32, #tpu.memory_space<vmem>>, %arg3: memref<1x128xf32, #tpu.memory_space<vmem>>, %arg4: memref<128x128xbf16, #tpu.memory_space<vmem>>, %arg5: memref<1x128xf32, #tpu.memory_space<vmem>>, %arg6: memref<1x16x128xf32, #tpu.memory_space<vmem>>) attributes {dimension_semantics = [#tpu.dimension_semantics<parallel>], iteration_bounds = array<i64: 2>, scalar_prefetch = 0 : i64, scratch_operands = 0 : i64, tpu.core_type = #tpu.core_type<tc>, window_params = [{transform_indices = @transform_0, window_bounds = array<i64: 1, 16, 128>}, {pipeline_mode = #tpu.pipeline_mode<synchronous>, transform_indices = @transform_1, window_bounds = array<i64: 1, 128>}, {pipeline_mode = #tpu.pipeline_mode<synchronous>, transform_indices = @transform_2, window_bounds = array<i64: 1, 128>}, {pipeline_mode = #tpu.pipeline_mode<synchronous>, transform_indices = @transform_3, window_bounds = array<i64: 128, 128>}, {pipeline_mode = #tpu.pipeline_mode<synchronous>, transform_indices = @transform_4, window_bounds = array<i64: 1, 128>}, {transform_indices = @transform_5, window_bounds = array<i64: 1, 16, 128>}]} {
    %c0 = arith.constant 0 : index
    %c0_0 = arith.constant 0 : index
    %c0_1 = arith.constant 0 : index
    %0 = vector.load %arg1[%c0, %c0_0, %c0_1] : memref<1x16x128xf32, #tpu.memory_space<vmem>>, vector<1x16x128xf32>
    %1 = vector.shape_cast %0 : vector<1x16x128xf32> to vector<16x128xf32>
    %c0_2 = arith.constant 0 : index
    %c0_3 = arith.constant 0 : index
    %2 = vector.load %arg2[%c0_2, %c0_3] : memref<1x128xf32, #tpu.memory_space<vmem>>, vector<1x128xf32>
    %c0_4 = arith.constant 0 : index
    %c0_5 = arith.constant 0 : index
    %3 = vector.load %arg3[%c0_4, %c0_5] : memref<1x128xf32, #tpu.memory_space<vmem>>, vector<1x128xf32>
    %cst = arith.constant dense<0.000000e+00> : vector<16xf32>
    %4 = vector.multi_reduction <add>, %1, %cst [1] : vector<16x128xf32> to vector<16xf32>
    %5 = vector.shape_cast %4 : vector<16xf32> to vector<16x1xf32>
    %cst_6 = arith.constant 1.280000e+02 : f32
    %6 = vector.broadcast %cst_6 : f32 to vector<16x1xf32>
    %7 = arith.divf %5, %6 : vector<16x1xf32>
    %8 = vector.broadcast %7 : vector<16x1xf32> to vector<16x128xf32>
    %9 = arith.subf %1, %8 : vector<16x128xf32>
    %10 = arith.mulf %9, %9 : vector<16x128xf32>
    %cst_7 = arith.constant dense<0.000000e+00> : vector<16xf32>
    %11 = vector.multi_reduction <add>, %10, %cst_7 [1] : vector<16x128xf32> to vector<16xf32>
    %12 = vector.shape_cast %11 : vector<16xf32> to vector<16x1xf32>
    %cst_8 = arith.constant 1.280000e+02 : f32
    %13 = vector.broadcast %cst_8 : f32 to vector<16x1xf32>
    %14 = arith.divf %12, %13 : vector<16x1xf32>
    %cst_9 = arith.constant 9.99999974E-6 : f32
    %15 = vector.broadcast %cst_9 : f32 to vector<16x1xf32>
    %16 = arith.addf %14, %15 : vector<16x1xf32>
    %17 = math.rsqrt %16 : vector<16x1xf32>
    %18 = vector.broadcast %17 : vector<16x1xf32> to vector<16x128xf32>
    %19 = arith.mulf %9, %18 : vector<16x128xf32>
    %20 = vector.broadcast %2 : vector<1x128xf32> to vector<16x128xf32>
    %21 = arith.mulf %19, %20 : vector<16x128xf32>
    %22 = vector.broadcast %3 : vector<1x128xf32> to vector<16x128xf32>
    %23 = arith.addf %21, %22 : vector<16x128xf32>
    %24 = arith.truncf %23 : vector<16x128xf32> to vector<16x128xbf16>
    %c0_10 = arith.constant 0 : index
    %c0_11 = arith.constant 0 : index
    %25 = vector.load %arg4[%c0_10, %c0_11] : memref<128x128xbf16, #tpu.memory_space<vmem>>, vector<128x128xbf16>
    %cst_12 = arith.constant dense<0.000000e+00> : vector<16x128xf32>
    %26 = tpu.matmul %24, %25, %cst_12 {dimension_numbers = #tpu.dot_dimension_numbers<[1], [0], [0], [1], [0, 0, 1, 1], [], []>} : vector<16x128xbf16>, vector<128x128xbf16>, vector<16x128xf32> -> vector<16x128xf32>
    %c0_13 = arith.constant 0 : index
    %c0_14 = arith.constant 0 : index
    %27 = vector.load %arg5[%c0_13, %c0_14] : memref<1x128xf32, #tpu.memory_space<vmem>>, vector<1x128xf32>
    %28 = vector.broadcast %27 : vector<1x128xf32> to vector<16x128xf32>
    %29 = arith.addf %26, %28 : vector<16x128xf32>
    %c0_15 = arith.constant 0 : index
    %c0_16 = arith.constant 0 : index
    %c0_17 = arith.constant 0 : index
    %30 = vector.load %arg6[%c0_15, %c0_16, %c0_17] : memref<1x16x128xf32, #tpu.memory_space<vmem>>, vector<1x16x128xf32>
    %31 = vector.shape_cast %30 : vector<1x16x128xf32> to vector<16x128xf32>
    %32 = vector.shape_cast %29 : vector<16x128xf32> to vector<1x16x128xf32>
    tpu.vector_store %arg6[%c0_15, %c0_16, %c0_17], %32 {strides = array<i32>} : memref<1x16x128xf32, #tpu.memory_space<vmem>>, vector<1x16x128xf32>,
    return
  }
  func.func @transform_0(%arg0: i32) -> (i32, i32, i32) {
    %c0_i32 = arith.constant 0 : i32
    %c0_i32_0 = arith.constant 0 : i32
    %c0_i32_1 = arith.constant 0 : i32
    return %arg0, %c0_i32, %c0_i32_0 : i32, i32, i32
  }
  func.func @transform_1(%arg0: i32) -> (i32, i32) {
    %c0_i32 = arith.constant 0 : i32
    %c0_i32_0 = arith.constant 0 : i32
    %c0_i32_1 = arith.constant 0 : i32
    return %c0_i32, %c0_i32_0 : i32, i32
  }
  func.func @transform_2(%arg0: i32) -> (i32, i32) {
    %c0_i32 = arith.constant 0 : i32
    %c0_i32_0 = arith.constant 0 : i32
    %c0_i32_1 = arith.constant 0 : i32
    return %c0_i32, %c0_i32_0 : i32, i32
  }
  func.func @transform_3(%arg0: i32) -> (i32, i32) {
    %c0_i32 = arith.constant 0 : i32
    %c0_i32_0 = arith.constant 0 : i32
    %c0_i32_1 = arith.constant 0 : i32
    return %c0_i32, %c0_i32_0 : i32, i32
  }
  func.func @transform_4(%arg0: i32) -> (i32, i32) {
    %c0_i32 = arith.constant 0 : i32
    %c0_i32_0 = arith.constant 0 : i32
    %c0_i32_1 = arith.constant 0 : i32
    return %c0_i32, %c0_i32_0 : i32, i32
  }
  func.func @transform_5(%arg0: i32) -> (i32, i32, i32) {
    %c0_i32 = arith.constant 0 : i32
    %c0_i32_0 = arith.constant 0 : i32
    %c0_i32_1 = arith.constant 0 : i32
    return %arg0, %c0_i32, %c0_i32_0 : i32, i32, i32
  }
}

</mosaic_0001>

<llo_original>
// kernel: diffusion_transformer.8
$region0: #{diffusion_transformer.8}
  #allocation0 [shape = 'u32[]', space=smem, size = 0x4, offset = 0x4, fixed_abs, tag = 'smem constant byte address 0x4 - core index']
  #allocation1 [shape = 'u32[144,128]{1,0:T(1,128)}', space=vmem, size = 0x12000, scoped, tag = 'internal scratch']
  %s0 = inlined_call_operand.vmem [shape: f32[2,16,64], index: 0, kind: input, shape index: {}]
  %s1 = inlined_call_operand.vmem [shape: bf16[64,128], index: 1, kind: input, shape index: {}]
  %s2 = inlined_call_operand.vmem [shape: f32[1,128], index: 2, kind: input, shape index: {}]
  %s3 = inlined_call_operand.vmem [shape: f32[16,128], index: 3, kind: input, shape index: {}]
  %s4 = inlined_call_operand.vmem [shape: f32[2,1,128], index: 4, kind: input, shape index: {}]
  %s5 = inlined_call_operand.vmem [shape: f32[2,16,128], index: 5, kind: output, shape index: {}]
  %s6 = sld [smem:[#allocation0]]
  $region53: #{diffusion_transformer.8} parent=0
    _
  %s8 = ssub.s32 1, %s6
  %s9 = scalar_select 0, %s8, %s6
  loop: start=0, step=1, limit=4
  $region2: #{diffusion_transformer.8} parent=0 // loop_pre_header
    _
  $region3: #{diffusion_transformer.8} parent=0 // loop_header
    %s11 = sphi 0, %s15
    %p12 = scmp.ge.s32.totalorder %s11, 4
    %s21 = sphi 0, %s23
    %s24 = sphi 0, %s21
    %s25 = sphi 0, %s24
    %s41 = sphi 0, %s25
    %s45 = sphi 0, %s45
    %s47 = sphi 0, %s45
    %s48 = sphi 0, %s47
    %s62 = sphi 0, %s48
    %s66 = sphi 0, %s66
    %s68 = sphi 0, %s66
    %s69 = sphi 0, %s68
    %s83 = sphi 0, %s69
    %s87 = sphi 0, %s87
    %s89 = sphi 0, %s87
    %s90 = sphi 0, %s89
    %s104 = sphi 0, %s90
    %s110 = sphi 0, %s112
    %s113 = sphi 0, %s110
    %s114 = sphi 0, %s113
    %s130 = sphi 0, %s114
    %s136 = sphi 0, %s138
    %s139 = sphi 0, %s136
    %s140 = sphi 0, %s139
    %s156 = sphi 0, %s140
  $region4: #{diffusion_transformer.8} parent=0 // loop_header_branch
    %14 = sbr.rel (%p12) target = $region8
  $region5: #{diffusion_transformer.8} parent=0 // loop_body
    %s16 = ssub.s32 %s11, 1
    %s17 = ssub.s32 %s11, 2
    %s18 = sadd.s32 %s11, 1
    %s19 = ssub.s32 %s11, %s18
    %p20 = scmp.eq.s32.totalorder %s19, 0
    %s22 = sadd.s32 %s21, 1
    %s23 = scalar_select %p20, %s21, %s22
    %p26 = pneg %p20
    %p27 = scmp.eq.s32.totalorder %s11, 1
    %p28 = por %p26, %p27
    %p29 = scmp.ne.s32.totalorder %s21, %s24
    %p30 = scmp.eq.s32.totalorder %s11, 0
    %p31 = por %p29, %p30
    %p32 = scmp.ne.s32.totalorder %s21, %s24
    %p33 = scmp.eq.s32.totalorder %s16, 1
    %p34 = por %p32, %p33
    %p35 = scmp.ne.s32.totalorder %s24, %s25
    %p36 = scmp.eq.s32.totalorder %s16, 0
    %p37 = por %p35, %p36
    %p38 = scmp.ne.s32.totalorder %s24, %s25
    %p39 = scmp.eq.s32.totalorder %s17, 1
    %p40 = por %p38, %p39
    %p42 = scmp.ne.s32.totalorder %s25, %s41
    %p43 = scmp.eq.s32.totalorder %s17, 0
    %p44 = por %p42, %p43
    %s46 = sadd.s32 %s45, 1
    %p49 = scmp.eq.s32.totalorder %s11, 1
    %p50 = scmp.ne.s32.totalorder %s45, %s47
    %p51 = scmp.eq.s32.totalorder %s11, 0
    %p52 = por %p50, %p51
    %p53 = scmp.ne.s32.totalorder %s45, %s47
    %p54 = scmp.eq.s32.totalorder %s16, 1
    %p55 = por %p53, %p54
    %p56 = scmp.ne.s32.totalorder %s47, %s48
    %p57 = scmp.eq.s32.totalorder %s16, 0
    %p58 = por %p56, %p57
    %p59 = scmp.ne.s32.totalorder %s47, %s48
    %p60 = scmp.eq.s32.totalorder %s17, 1
    %p61 = por %p59, %p60
    %p63 = scmp.ne.s32.totalorder %s48, %s62
    %p64 = scmp.eq.s32.totalorder %s17, 0
    %p65 = por %p63, %p64
    %s67 = sadd.s32 %s66, 1
    %p70 = scmp.eq.s32.totalorder %s11, 1
    %p71 = scmp.ne.s32.totalorder %s66, %s68
    %p72 = scmp.eq.s32.totalorder %s11, 0
    %p73 = por %p71, %p72
    %p74 = scmp.ne.s32.totalorder %s66, %s68
    %p75 = scmp.eq.s32.totalorder %s16, 1
    %p76 = por %p74, %p75
    %p77 = scmp.ne.s32.totalorder %s68, %s69
    %p78 = scmp.eq.s32.totalorder %s16, 0
    %p79 = por %p77, %p78
    %p80 = scmp.ne.s32.totalorder %s68, %s69
    %p81 = scmp.eq.s32.totalorder %s17, 1
    %p82 = por %p80, %p81
    %p84 = scmp.ne.s32.totalorder %s69, %s83
    %p85 = scmp.eq.s32.totalorder %s17, 0
    %p86 = por %p84, %p85
    %s88 = sadd.s32 %s87, 1
    %p91 = scmp.eq.s32.totalorder %s11, 1
    %p92 = scmp.ne.s32.totalorder %s87, %s89
    %p93 = scmp.eq.s32.totalorder %s11, 0
    %p94 = por %p92, %p93
    %p95 = scmp.ne.s32.totalorder %s87, %s89
    %p96 = scmp.eq.s32.totalorder %s16, 1
    %p97 = por %p95, %p96
    %p98 = scmp.ne.s32.totalorder %s89, %s90
    %p99 = scmp.eq.s32.totalorder %s16, 0
    %p100 = por %p98, %p99
    %p101 = scmp.ne.s32.totalorder %s89, %s90
    %p102 = scmp.eq.s32.totalorder %s17, 1
    %p103 = por %p101, %p102
    %p105 = scmp.ne.s32.totalorder %s90, %s104
    %p106 = scmp.eq.s32.totalorder %s17, 0
    %p107 = por %p105, %p106
    %s108 = ssub.s32 %s11, %s18
    %p109 = scmp.eq.s32.totalorder %s108, 0
    %s111 = sadd.s32 %s110, 1
    %s112 = scalar_select %p109, %s110, %s111
    %p115 = pneg %p109
    %p116 = scmp.eq.s32.totalorder %s11, 1
    %p117 = por %p115, %p116
    %p118 = scmp.ne.s32.totalorder %s110, %s113
    %p119 = scmp.eq.s32.totalorder %s11, 0
    %p120 = por %p118, %p119
    %p121 = scmp.ne.s32.totalorder %s110, %s113
    %p122 = scmp.eq.s32.totalorder %s16, 1
    %p123 = por %p121, %p122
    %p124 = scmp.ne.s32.totalorder %s113, %s114
    %p125 = scmp.eq.s32.totalorder %s16, 0
    %p126 = por %p124, %p125
    %p127 = scmp.ne.s32.totalorder %s113, %s114
    %p128 = scmp.eq.s32.totalorder %s17, 1
    %p129 = por %p127, %p128
    %p131 = scmp.ne.s32.totalorder %s114, %s130
    %p132 = scmp.eq.s32.totalorder %s17, 0
    %p133 = por %p131, %p132
    %s134 = ssub.s32 %s11, %s18
    %p135 = scmp.eq.s32.totalorder %s134, 0
    %s137 = sadd.s32 %s136, 1
    %s138 = scalar_select %p135, %s136, %s137
    %p141 = pneg %p135
    %p142 = scmp.eq.s32.totalorder %s11, 1
    %p143 = por %p141, %p142
    %p144 = scmp.ne.s32.totalorder %s136, %s139
    %p145 = scmp.eq.s32.totalorder %s11, 0
    %p146 = por %p144, %p145
    %p147 = scmp.ne.s32.totalorder %s136, %s139
    %p148 = scmp.eq.s32.totalorder %s16, 1
    %p149 = por %p147, %p148
    %p150 = scmp.ne.s32.totalorder %s139, %s140
    %p151 = scmp.eq.s32.totalorder %s16, 0
    %p152 = por %p150, %p151
    %p153 = scmp.ne.s32.totalorder %s139, %s140
    %p154 = scmp.eq.s32.totalorder %s17, 1
    %p155 = por %p153, %p154
    %p157 = scmp.ne.s32.totalorder %s140, %s156
    %p158 = scmp.eq.s32.totalorder %s17, 0
    %p159 = por %p157, %p158
    %p160 = scmp.le.s32.totalorder 1, %s11
    %p161 = scmp.lt.s32.totalorder %s11, 3
    %p162 = pnand %p160, %p161
    %p163 = pneg %p162
    // Predicated region
    $region9: #{diffusion_transformer.8} parent=5 // pred_check
      _
    $region10: #{diffusion_transformer.8} parent=5 // pred_check_branch
      %165 = sbr.rel (%p162) target = $region12
    $region11: #{diffusion_transformer.8} parent=5 // pred_region
      %s166 = ssub.s32 %s11, 1
      // Predicated region
      $region13: #{diffusion_transformer.8} parent=11 // pred_check
        %p167 = pneg %p58
      $region14: #{diffusion_transformer.8} parent=11 // pred_check_branch
        %169 = sbr.rel (%p167) target = $region16
      $region15: #{diffusion_transformer.8} parent=11 // pred_region
        _
      $region16: #{diffusion_transformer.8} parent=11 // pred_fallthru
        _
      // Predicated region
      $region17: #{diffusion_transformer.8} parent=11 // pred_check
        %p170 = pneg %p79
      $region18: #{diffusion_transformer.8} parent=11 // pred_check_branch
        %172 = sbr.rel (%p170) target = $region20
      $region19: #{diffusion_transformer.8} parent=11 // pred_region
        _
      $region20: #{diffusion_transformer.8} parent=11 // pred_fallthru
        _
      // Predicated region
      $region21: #{diffusion_transformer.8} parent=11 // pred_check
        %p173 = pneg %p100
      $region22: #{diffusion_transformer.8} parent=11 // pred_check_branch
        %175 = sbr.rel (%p173) target = $region24
      $region23: #{diffusion_transformer.8} parent=11 // pred_region
        _
      $region24: #{diffusion_transformer.8} parent=11 // pred_fallthru
        _
    $region12: #{diffusion_transformer.8} parent=5 // pred_fallthru
      _
    %p176 = scmp.lt.s32.totalorder %s11, 2
    // Predicated region
    $region25: #{diffusion_transformer.8} parent=5 // pred_check
      %p177 = pneg %p176
    $region26: #{diffusion_transformer.8} parent=5 // pred_check_branch
      %179 = sbr.rel (%p177) target = $region28
    $region27: #{diffusion_transformer.8} parent=5 // pred_region
      // Predicated region
      $region29: #{diffusion_transformer.8} parent=27 // pred_check
        %p180 = pneg %p31
      $region30: #{diffusion_transformer.8} parent=27 // pred_check_branch
        %182 = sbr.rel (%p180) target = $region32
      $region31: #{diffusion_transformer.8} parent=27 // pred_region
        %p183 = scmp.lt.s32.totalorder %s11, 1
        %s184 = scalar_select %p183, %s11, 1
        %s185 = smul.addr %s184, 2
        %s186 = smul.addr %s185, 8
        %s187 = scalar_lea.vmem %s0, %s186
      $region32: #{diffusion_transformer.8} parent=27 // pred_fallthru
        _
      // Predicated region
      $region33: #{diffusion_transformer.8} parent=27 // pred_check
        %p188 = pneg %p120
      $region34: #{diffusion_transformer.8} parent=27 // pred_check_branch
        %190 = sbr.rel (%p188) target = $region36
      $region35: #{diffusion_transformer.8} parent=27 // pred_region
        %p191 = scmp.lt.s32.totalorder %s11, 1
        %s192 = scalar_select %p191, %s11, 1
        %s193 = scalar_lea.vmem %s4, %s192
      $region36: #{diffusion_transformer.8} parent=27 // pred_fallthru
        _
    $region28: #{diffusion_transformer.8} parent=5 // pred_fallthru
      _
    %p194 = scmp.le.s32.totalorder 1, %s11
    %p195 = scmp.lt.s32.totalorder %s11, 3
    %p196 = pnand %p194, %p195
    %p197 = pneg %p196
    // Predicated region
    $region37: #{diffusion_transformer.8} parent=5 // pred_check
      _
    $region38: #{diffusion_transformer.8} parent=5 // pred_check_branch
      %199 = sbr.rel (%p196) target = $region40
    $region39: #{diffusion_transformer.8} parent=5 // pred_region
      %s200 = ssub.s32 %s11, 1
      %p201 = scmp.lt.s32.totalorder %s16, 1
      %s202 = scalar_select %p201, %s16, 1
      %s203 = smul.addr %s202, 2
      %s204 = smul.addr %s203, 8
      %s205 = scalar_lea.vmem %s0, %s204
      %p206 = pneg %p37
      %p207 = pneg %p34
      %p208 = pneg %p58
      %p209 = pneg %p55
      %p210 = pneg %p79
      %p211 = pneg %p76
      %p212 = pneg %p100
      %p213 = pneg %p97
      %p214 = scmp.lt.s32.totalorder %s16, 1
      %s215 = scalar_select %p214, %s16, 1
      %s216 = scalar_lea.vmem %s4, %s215
      %p217 = pneg %p126
      %p218 = pneg %p123
      %p219 = pneg %p152
      %p220 = pneg %p149
      %p221 = scmp.lt.s32.totalorder %s16, 1
      %s222 = scalar_select %p221, %s16, 1
      %s223 = smul.addr %s222, 2
      %s224 = smul.addr %s223, 8
      %s225 = scalar_lea.vmem %s5, %s224
      %p226 = scmp.lt.s32.totalorder %s16, 1
      %s227 = scalar_select %p226, %s16, 1
      %s228 = smul.addr %s227, 2
      %s229 = smul.addr %s228, 8
      %s230 = scalar_lea.vmem %s0, %s229
      %p231 = scmp.lt.s32.totalorder %s16, 1
      %s232 = scalar_select %p231, %s16, 1
      %s233 = scalar_lea.vmem %s4, %s232
      %p234 = scmp.lt.s32.totalorder %s16, 1
      %s235 = scalar_select %p234, %s16, 1
      %s236 = smul.addr %s235, 2
      %s237 = smul.addr %s236, 8
      %s238 = scalar_lea.vmem %s5, %s237
      %v240 = vld [vmem:[%s230] sm:$0xff]
      %v241 = vld [vmem:[%s230 + $0x8] sm:$0xff]
      %v242 = vpack.c.bf16 %v241, %v240
      %v243 = vld [vmem:[%s1] sm:$0xf]
      %v244 = vld [vmem:[%s1 + $0x4] sm:$0xf]
      %v245 = vld [vmem:[%s1 + $0x8] sm:$0xf]
      %v246 = vld [vmem:[%s1 + $0xc] sm:$0xf]
      %v247 = vld [vmem:[%s1 + $0x10] sm:$0xf]
      %v248 = vld [vmem:[%s1 + $0x14] sm:$0xf]
      %v249 = vld [vmem:[%s1 + $0x18] sm:$0xf]
      %v250 = vld [vmem:[%s1 + $0x1c] sm:$0xf]
      %v251 = vld [vmem:[%s2] sm:$0x1]
      %v253 = vlaneseq
      %v254 = vshrl.u32 %v253, 7
      %v255 = vsub.s32 0, %v254
      %v256 = vrot.slane %v251, %v255
      %v266 = vunpack.c.l.b16 %v243
      %v267 = vunpack.c.l.b16 %v244
      %v268 = vunpack.c.l.b16 %v245
      %v269 = vunpack.c.l.b16 %v246
      %v270 = vunpack.c.l.b16 %v247
      %v271 = vunpack.c.l.b16 %v248
      %v272 = vunpack.c.l.b16 %v249
      %v273 = vunpack.c.l.b16 %v250
      %v274 = vpack.c.b16 %v267, %v266
      %v275 = vpack.c.b16 %v269, %v268
      %v276 = vpack.c.b16 %v271, %v270
      %v277 = vpack.c.b16 %v273, %v272
      %vm282 = vcmask 523264
      %v284 = vsel %vm282, %v242, 0
      %286 = vmatprep.subr.bf16.mxu0 0
      %287 = vmatpush1.bf16.msra.mxu0 0
      %288 = vmatprep.subr.bf16.mxu0 0
      %289 = vmatpush1.bf16.msra.mxu0 0
      %290 = vmatprep.subr.bf16.mxu0 0
      %291 = vmatpush1.bf16.msra.mxu0 0
      %292 = vmatprep.subr.bf16.mxu0 0
      %293 = vmatpush1.bf16.msra.mxu0 0
      %294 = vmatprep.subr.bf16.mxu0 0
      %295 = vmatpush1.bf16.msra.mxu0 %v277
      %296 = vmatprep.subr.bf16.mxu0 0
      %297 = vmatpush1.bf16.msra.mxu0 %v276
      %298 = vmatprep.subr.bf16.mxu0 0
      %299 = vmatpush1.bf16.msra.mxu0 %v275
      %300 = vmatprep.subr.bf16.mxu0 0
      %301 = vmatpush1.bf16.msra.mxu0 %v274
      %302 = vmatprep.subr.bf16.mxu0 0
      %303 = vmatpush2.bf16.msra.mxu0 0
      %304 = vmatprep.subr.bf16.mxu0 0
      %305 = vmatpush2.bf16.msra.mxu0 0
      %306 = vmatprep.subr.bf16.mxu0 0
      %307 = vmatpush2.bf16.msra.mxu0 0
      %308 = vmatprep.subr.bf16.mxu0 0
      %309 = vmatpush2.bf16.msra.mxu0 0
      %310 = vmatprep.subr.bf16.mxu0 0
      %311 = vmatpush2.bf16.msra.mxu0 0
      %312 = vmatprep.subr.bf16.mxu0 0
      %313 = vmatpush2.bf16.msra.mxu0 0
      %314 = vmatprep.subr.bf16.mxu0 0
      %315 = vmatpush2.bf16.msra.mxu0 0
      %316 = vmatprep.subr.bf16.mxu0 0
      %317 = vmatpush2.bf16.msra.mxu0 0
      %318 = vmatprep.mubr.bf16.mxu0 0
      %319 = vmatmul.mubr.bf16.gmra.mxu0 %v284
      %v320 = vpop.f32.mrf.mxu0
      %v321 = vadd.f32 %v256, %v320
      %v322 = vpop.f32.mrf.mxu0
      %v323 = vpop.f32.mrf.mxu0
      %v324 = vadd.f32 %v256, %v323
      %v325 = vpop.f32.mrf.mxu0
      %326 = vdwg.mxu0
      %v327 = vld [vmem:[%s3] sm:$0xff]
      %v328 = vld [vmem:[%s3 + $0x8] sm:$0xff]
      %v329 = vadd.f32 %v321, %v327
      %v330 = vadd.f32 %v324, %v328
      %v331 = vld [vmem:[%s233] sm:$0x1]
      %v333 = vlaneseq
      %v334 = vshrl.u32 %v333, 7
      %v335 = vsub.s32 0, %v334
      %v336 = vrot.slane %v331, %v335
      %v338 = vadd.f32 %v329, %v336
      %v339 = vadd.f32 %v330, %v336
      %340 = vst [vmem:[%s238] sm:$0xff] %v338
      %341 = vst [vmem:[%s238 + $0x8] sm:$0xff] %v339
      %p342 = scmp.lt.s32.totalorder %s16, 1
      %s343 = scalar_select %p342, %s16, 1
      %s344 = smul.addr %s343, 2
      %s345 = smul.addr %s344, 8
      %s346 = scalar_lea.vmem %s5, %s345
      // Predicated region
      $region41: #{diffusion_transformer.8} parent=39 // pred_check
        %p347 = pneg %p149
      $region42: #{diffusion_transformer.8} parent=39 // pred_check_branch
        %349 = sbr.rel (%p347) target = $region44
      $region43: #{diffusion_transformer.8} parent=39 // pred_region
        _
      $region44: #{diffusion_transformer.8} parent=39 // pred_fallthru
        _
    $region40: #{diffusion_transformer.8} parent=5 // pred_fallthru
      _
    %p350 = scmp.le.s32.totalorder 2, %s11
    // Predicated region
    $region45: #{diffusion_transformer.8} parent=5 // pred_check
      %p351 = pneg %p350
    $region46: #{diffusion_transformer.8} parent=5 // pred_check_branch
      %353 = sbr.rel (%p351) target = $region48
    $region47: #{diffusion_transformer.8} parent=5 // pred_region
      %s354 = ssub.s32 %s11, 2
      // Predicated region
      $region49: #{diffusion_transformer.8} parent=47 // pred_check
        %p355 = pneg %p155
      $region50: #{diffusion_transformer.8} parent=47 // pred_check_branch
        %357 = sbr.rel (%p355) target = $region52
      $region51: #{diffusion_transformer.8} parent=47 // pred_region
        %p358 = scmp.lt.s32.totalorder %s17, 1
        %s359 = scalar_select %p358, %s17, 1
        %s360 = smul.addr %s359, 2
        %s361 = smul.addr %s360, 8
        %s362 = scalar_lea.vmem %s5, %s361
      $region52: #{diffusion_transformer.8} parent=47 // pred_fallthru
        _
    $region48: #{diffusion_transformer.8} parent=5 // pred_fallthru
      _
  $region6: #{diffusion_transformer.8} parent=0 // loop_footer
    %s15 = sadd.s32 1, %s11
  $region7: #{diffusion_transformer.8} parent=0 // loop_footer_branch
    %10 = sbr.rel target = $region3
  $region8: #{diffusion_transformer.8} parent=0 // loop_exit
    _

// kernel: diffusion_transformer.7
$region0: #{diffusion_transformer.7}
  #allocation0 [shape = 'u32[]', space=smem, size = 0x4, offset = 0x4, fixed_abs, tag = 'smem constant byte address 0x4 - core index']
  #allocation1 [shape = 'u32[144,128]{1,0:T(1,128)}', space=vmem, size = 0x12000, scoped, tag = 'internal scratch']
  %s0 = inlined_call_operand.vmem [shape: f32[2,128], index: 0, kind: input, shape index: {}]
  %s1 = inlined_call_operand.vmem [shape: bf16[128,128], index: 1, kind: input, shape index: {}]
  %s2 = inlined_call_operand.vmem [shape: f32[1,128], index: 2, kind: input, shape index: {}]
  %s3 = inlined_call_operand.vmem [shape: bf16[128,128], index: 3, kind: input, shape index: {}]
  %s4 = inlined_call_operand.vmem [shape: f32[1,128], index: 4, kind: input, shape index: {}]
  %s5 = inlined_call_operand.vmem [shape: f32[2,128], index: 5, kind: output, shape index: {}]
  %s6 = sld [smem:[#allocation0]]
  $region30: #{diffusion_transformer.7} parent=0
    _
  %s8 = ssub.s32 1, %s6
  %s9 = scalar_select 0, %s8, %s6
  // Predicated region
  $region2: #{diffusion_transformer.7} parent=0 // pred_check
    _
  $region3: #{diffusion_transformer.7} parent=0 // pred_check_branch
    %11 = sbr.rel (0) target = $region5
  $region4: #{diffusion_transformer.7} parent=0 // pred_region
    _
  $region5: #{diffusion_transformer.7} parent=0 // pred_fallthru
    _
  // Predicated region
  $region6: #{diffusion_transformer.7} parent=0 // pred_check
    _
  $region7: #{diffusion_transformer.7} parent=0 // pred_check_branch
    %13 = sbr.rel (0) target = $region9
  $region8: #{diffusion_transformer.7} parent=0 // pred_region
    _
  $region9: #{diffusion_transformer.7} parent=0 // pred_fallthru
    _
  // Predicated region
  $region10: #{diffusion_transformer.7} parent=0 // pred_check
    _
  $region11: #{diffusion_transformer.7} parent=0 // pred_check_branch
    %15 = sbr.rel (0) target = $region13
  $region12: #{diffusion_transformer.7} parent=0 // pred_region
    _
  $region13: #{diffusion_transformer.7} parent=0 // pred_fallthru
    _
  // Predicated region
  $region14: #{diffusion_transformer.7} parent=0 // pred_check
    _
  $region15: #{diffusion_transformer.7} parent=0 // pred_check_branch
    %17 = sbr.rel (0) target = $region17
  $region16: #{diffusion_transformer.7} parent=0 // pred_region
    _
  $region17: #{diffusion_transformer.7} parent=0 // pred_fallthru
    _
  // Predicated region
  $region18: #{diffusion_transformer.7} parent=0 // pred_check
    _
  $region19: #{diffusion_transformer.7} parent=0 // pred_check_branch
    %19 = sbr.rel (0) target = $region21
  $region20: #{diffusion_transformer.7} parent=0 // pred_region
    _
  $region21: #{diffusion_transformer.7} parent=0 // pred_fallthru
    _
  %v21 = vld [vmem:[%s0] sm:$0x3]
  %v22 = vpack.c.bf16 %v21, %v21
  %v23 = vld [vmem:[%s1] sm:$0xf]
  %v24 = vld [vmem:[%s1 + $0x4] sm:$0xf]
  %v25 = vld [vmem:[%s1 + $0x8] sm:$0xf]
  %v26 = vld [vmem:[%s1 + $0xc] sm:$0xf]
  %v27 = vld [vmem:[%s1 + $0x10] sm:$0xf]
  %v28 = vld [vmem:[%s1 + $0x14] sm:$0xf]
  %v29 = vld [vmem:[%s1 + $0x18] sm:$0xf]
  %v30 = vld [vmem:[%s1 + $0x1c] sm:$0xf]
  %v31 = vld [vmem:[%s1 + $0x20] sm:$0xf]
  %v32 = vld [vmem:[%s1 + $0x24] sm:$0xf]
  %v33 = vld [vmem:[%s1 + $0x28] sm:$0xf]
  %v34 = vld [vmem:[%s1 + $0x2c] sm:$0xf]
  %v35 = vld [vmem:[%s1 + $0x30] sm:$0xf]
  %v36 = vld [vmem:[%s1 + $0x34] sm:$0xf]
  %v37 = vld [vmem:[%s1 + $0x38] sm:$0xf]
  %v38 = vld [vmem:[%s1 + $0x3c] sm:$0xf]
  %v39 = vld [vmem:[%s2] sm:$0x1]
  %v41 = vlaneseq
  %v42 = vshrl.u32 %v41, 7
  %v43 = vsub.s32 0, %v42
  %v44 = vrot.slane %v39, %v43
  %v62 = vunpack.c.l.b16 %v23
  %v63 = vunpack.c.l.b16 %v24
  %v64 = vunpack.c.l.b16 %v25
  %v65 = vunpack.c.l.b16 %v26
  %v66 = vunpack.c.l.b16 %v27
  %v67 = vunpack.c.l.b16 %v28
  %v68 = vunpack.c.l.b16 %v29
  %v69 = vunpack.c.l.b16 %v30
  %v70 = vunpack.c.l.b16 %v31
  %v71 = vunpack.c.l.b16 %v32
  %v72 = vunpack.c.l.b16 %v33
  %v73 = vunpack.c.l.b16 %v34
  %v74 = vunpack.c.l.b16 %v35
  %v75 = vunpack.c.l.b16 %v36
  %v76 = vunpack.c.l.b16 %v37
  %v77 = vunpack.c.l.b16 %v38
  %v78 = vpack.c.b16 %v63, %v62
  %v79 = vpack.c.b16 %v65, %v64
  %v80 = vpack.c.b16 %v67, %v66
  %v81 = vpack.c.b16 %v69, %v68
  %v82 = vpack.c.b16 %v71, %v70
  %v83 = vpack.c.b16 %v73, %v72
  %v84 = vpack.c.b16 %v75, %v74
  %v85 = vpack.c.b16 %v77, %v76
  %94 = vmatprep.subr.bf16.mxu0 0
  %95 = vmatpush1.bf16.msra.mxu0 %v85
  %96 = vmatprep.subr.bf16.mxu0 0
  %97 = vmatpush1.bf16.msra.mxu0 %v84
  %98 = vmatprep.subr.bf16.mxu0 0
  %99 = vmatpush1.bf16.msra.mxu0 %v83
  %100 = vmatprep.subr.bf16.mxu0 0
  %101 = vmatpush1.bf16.msra.mxu0 %v82
  %102 = vmatprep.subr.bf16.mxu0 0
  %103 = vmatpush1.bf16.msra.mxu0 %v81
  %104 = vmatprep.subr.bf16.mxu0 0
  %105 = vmatpush1.bf16.msra.mxu0 %v80
  %106 = vmatprep.subr.bf16.mxu0 0
  %107 = vmatpush1.bf16.msra.mxu0 %v79
  %108 = vmatprep.subr.bf16.mxu0 0
  %109 = vmatpush1.bf16.msra.mxu0 %v78
  %110 = vmatprep.subr.bf16.mxu0 0
  %111 = vmatpush2.bf16.msra.mxu0 0
  %112 = vmatprep.subr.bf16.mxu0 0
  %113 = vmatpush2.bf16.msra.mxu0 0
  %114 = vmatprep.subr.bf16.mxu0 0
  %115 = vmatpush2.bf16.msra.mxu0 0
  %116 = vmatprep.subr.bf16.mxu0 0
  %117 = vmatpush2.bf16.msra.mxu0 0
  %118 = vmatprep.subr.bf16.mxu0 0
  %119 = vmatpush2.bf16.msra.mxu0 0
  %120 = vmatprep.subr.bf16.mxu0 0
  %121 = vmatpush2.bf16.msra.mxu0 0
  %122 = vmatprep.subr.bf16.mxu0 0
  %123 = vmatpush2.bf16.msra.mxu0 0
  %124 = vmatprep.subr.bf16.mxu0 0
  %125 = vmatpush2.bf16.msra.mxu0 0
  %126 = vmatprep.mubr.bf16.mxu0 0
  %127 = vmatmul.mubr.bf16.gmra.mxu0 %v22
  %v128 = vpop.f32.mrf.mxu0
  %v129 = vadd.f32 %v44, %v128
  %v130 = vpop.f32.mrf.mxu0
  %v131 = vpop.f32.mrf.mxu0
  %v132 = vpop.f32.mrf.mxu0
  %133 = vdwg.mxu0
  %v134 = vmax.f32 %v129, 0.0
  %v135 = vpack.c.bf16 %v134, %v134
  %v136 = vld [vmem:[%s3] sm:$0xf]
  %v137 = vld [vmem:[%s3 + $0x4] sm:$0xf]
  %v138 = vld [vmem:[%s3 + $0x8] sm:$0xf]
  %v139 = vld [vmem:[%s3 + $0xc] sm:$0xf]
  %v140 = vld [vmem:[%s3 + $0x10] sm:$0xf]
  %v141 = vld [vmem:[%s3 + $0x14] sm:$0xf]
  %v142 = vld [vmem:[%s3 + $0x18] sm:$0xf]
  %v143 = vld [vmem:[%s3 + $0x1c] sm:$0xf]
  %v144 = vld [vmem:[%s3 + $0x20] sm:$0xf]
  %v145 = vld [vmem:[%s3 + $0x24] sm:$0xf]
  %v146 = vld [vmem:[%s3 + $0x28] sm:$0xf]
  %v147 = vld [vmem:[%s3 + $0x2c] sm:$0xf]
  %v148 = vld [vmem:[%s3 + $0x30] sm:$0xf]
  %v149 = vld [vmem:[%s3 + $0x34] sm:$0xf]
  %v150 = vld [vmem:[%s3 + $0x38] sm:$0xf]
  %v151 = vld [vmem:[%s3 + $0x3c] sm:$0xf]
  %v152 = vld [vmem:[%s4] sm:$0x1]
  %v154 = vlaneseq
  %v155 = vshrl.u32 %v154, 7
  %v156 = vsub.s32 0, %v155
  %v157 = vrot.slane %v152, %v156
  %v175 = vunpack.c.l.b16 %v136
  %v176 = vunpack.c.l.b16 %v137
  %v177 = vunpack.c.l.b16 %v138
  %v178 = vunpack.c.l.b16 %v139
  %v179 = vunpack.c.l.b16 %v140
  %v180 = vunpack.c.l.b16 %v141
  %v181 = vunpack.c.l.b16 %v142
  %v182 = vunpack.c.l.b16 %v143
  %v183 = vunpack.c.l.b16 %v144
  %v184 = vunpack.c.l.b16 %v145
  %v185 = vunpack.c.l.b16 %v146
  %v186 = vunpack.c.l.b16 %v147
  %v187 = vunpack.c.l.b16 %v148
  %v188 = vunpack.c.l.b16 %v149
  %v189 = vunpack.c.l.b16 %v150
  %v190 = vunpack.c.l.b16 %v151
  %v191 = vpack.c.b16 %v176, %v175
  %v192 = vpack.c.b16 %v178, %v177
  %v193 = vpack.c.b16 %v180, %v179
  %v194 = vpack.c.b16 %v182, %v181
  %v195 = vpack.c.b16 %v184, %v183
  %v196 = vpack.c.b16 %v186, %v185
  %v197 = vpack.c.b16 %v188, %v187
  %v198 = vpack.c.b16 %v190, %v189
  %207 = vmatprep.subr.bf16.mxu0 0
  %208 = vmatpush1.bf16.msra.mxu0 %v198
  %209 = vmatprep.subr.bf16.mxu0 0
  %210 = vmatpush1.bf16.msra.mxu0 %v197
  %211 = vmatprep.subr.bf16.mxu0 0
  %212 = vmatpush1.bf16.msra.mxu0 %v196
  %213 = vmatprep.subr.bf16.mxu0 0
  %214 = vmatpush1.bf16.msra.mxu0 %v195
  %215 = vmatprep.subr.bf16.mxu0 0
  %216 = vmatpush1.bf16.msra.mxu0 %v194
  %217 = vmatprep.subr.bf16.mxu0 0
  %218 = vmatpush1.bf16.msra.mxu0 %v193
  %219 = vmatprep.subr.bf16.mxu0 0
  %220 = vmatpush1.bf16.msra.mxu0 %v192
  %221 = vmatprep.subr.bf16.mxu0 0
  %222 = vmatpush1.bf16.msra.mxu0 %v191
  %223 = vmatprep.subr.bf16.mxu0 0
  %224 = vmatpush2.bf16.msra.mxu0 0
  %225 = vmatprep.subr.bf16.mxu0 0
  %226 = vmatpush2.bf16.msra.mxu0 0
  %227 = vmatprep.subr.bf16.mxu0 0
  %228 = vmatpush2.bf16.msra.mxu0 0
  %229 = vmatprep.subr.bf16.mxu0 0
  %230 = vmatpush2.bf16.msra.mxu0 0
  %231 = vmatprep.subr.bf16.mxu0 0
  %232 = vmatpush2.bf16.msra.mxu0 0
  %233 = vmatprep.subr.bf16.mxu0 0
  %234 = vmatpush2.bf16.msra.mxu0 0
  %235 = vmatprep.subr.bf16.mxu0 0
  %236 = vmatpush2.bf16.msra.mxu0 0
  %237 = vmatprep.subr.bf16.mxu0 0
  %238 = vmatpush2.bf16.msra.mxu0 0
  %239 = vmatprep.mubr.bf16.mxu0 0
  %240 = vmatmul.mubr.bf16.gmra.mxu0 %v135
  %v241 = vpop.f32.mrf.mxu0
  %v242 = vadd.f32 %v157, %v241
  %v243 = vpop.f32.mrf.mxu0
  %v244 = vpop.f32.mrf.mxu0
  %v245 = vpop.f32.mrf.mxu0
  %246 = vdwg.mxu0
  %247 = vst [vmem:[%s5] sm:$0x3] %v242
  // Predicated region
  $region22: #{diffusion_transformer.7} parent=0 // pred_check
    _
  $region23: #{diffusion_transformer.7} parent=0 // pred_check_branch
    %249 = sbr.rel (0) target = $region25
  $region24: #{diffusion_transformer.7} parent=0 // pred_region
    _
  $region25: #{diffusion_transformer.7} parent=0 // pred_fallthru
    _
  // Predicated region
  $region26: #{diffusion_transformer.7} parent=0 // pred_check
    _
  $region27: #{diffusion_transformer.7} parent=0 // pred_check_branch
    %251 = sbr.rel (0) target = $region29
  $region28: #{diffusion_transformer.7} parent=0 // pred_region
    _
  $region29: #{diffusion_transformer.7} parent=0 // pred_fallthru
    _

// kernel: diffusion_transformer.13
$region0: #{diffusion_transformer.13}
  #allocation0 [shape = 'u32[]', space=smem, size = 0x4, offset = 0x4, fixed_abs, tag = 'smem constant byte address 0x4 - core index']
  #allocation1 [shape = 'u32[144,128]{1,0:T(1,128)}', space=vmem, size = 0x12000, scoped, tag = 'internal scratch']
  %s0 = inlined_call_operand.vmem [shape: f32[2,16,128], index: 0, kind: input, shape index: {}]
  %s1 = inlined_call_operand.vmem [shape: f32[1,128], index: 1, kind: input, shape index: {}]
  %s2 = inlined_call_operand.vmem [shape: f32[1,128], index: 2, kind: input, shape index: {}]
  %s3 = inlined_call_operand.vmem [shape: bf16[128,128], index: 3, kind: input, shape index: {}]
  %s4 = inlined_call_operand.vmem [shape: f32[1,128], index: 4, kind: input, shape index: {}]
  %s5 = inlined_call_operand.vmem [shape: f32[2,16,128], index: 5, kind: output, shape index: {}]
  %s6 = sld [smem:[#allocation0]]
  $region53: #{diffusion_transformer.13} parent=0
    _
  %s8 = ssub.s32 1, %s6
  %s9 = scalar_select 0, %s8, %s6
  loop: start=0, step=1, limit=4
  $region2: #{diffusion_transformer.13} parent=0 // loop_pre_header
    _
  $region3: #{diffusion_transformer.13} parent=0 // loop_header
    %s11 = sphi 0, %s15
    %p12 = scmp.ge.s32.totalorder %s11, 4
    %s21 = sphi 0, %s23
    %s24 = sphi 0, %s21
    %s25 = sphi 0, %s24
    %s41 = sphi 0, %s25
    %s45 = sphi 0, %s45
    %s47 = sphi 0, %s45
    %s48 = sphi 0, %s47
    %s62 = sphi 0, %s48
    %s66 = sphi 0, %s66
    %s68 = sphi 0, %s66
    %s69 = sphi 0, %s68
    %s83 = sphi 0, %s69
    %s87 = sphi 0, %s87
    %s89 = sphi 0, %s87
    %s90 = sphi 0, %s89
    %s104 = sphi 0, %s90
    %s108 = sphi 0, %s108
    %s110 = sphi 0, %s108
    %s111 = sphi 0, %s110
    %s125 = sphi 0, %s111
    %s131 = sphi 0, %s133
    %s134 = sphi 0, %s131
    %s135 = sphi 0, %s134
    %s151 = sphi 0, %s135
  $region4: #{diffusion_transformer.13} parent=0 // loop_header_branch
    %14 = sbr.rel (%p12) target = $region8
  $region5: #{diffusion_transformer.13} parent=0 // loop_body
    %s16 = ssub.s32 %s11, 1
    %s17 = ssub.s32 %s11, 2
    %s18 = sadd.s32 %s11, 1
    %s19 = ssub.s32 %s11, %s18
    %p20 = scmp.eq.s32.totalorder %s19, 0
    %s22 = sadd.s32 %s21, 1
    %s23 = scalar_select %p20, %s21, %s22
    %p26 = pneg %p20
    %p27 = scmp.eq.s32.totalorder %s11, 1
    %p28 = por %p26, %p27
    %p29 = scmp.ne.s32.totalorder %s21, %s24
    %p30 = scmp.eq.s32.totalorder %s11, 0
    %p31 = por %p29, %p30
    %p32 = scmp.ne.s32.totalorder %s21, %s24
    %p33 = scmp.eq.s32.totalorder %s16, 1
    %p34 = por %p32, %p33
    %p35 = scmp.ne.s32.totalorder %s24, %s25
    %p36 = scmp.eq.s32.totalorder %s16, 0
    %p37 = por %p35, %p36
    %p38 = scmp.ne.s32.totalorder %s24, %s25
    %p39 = scmp.eq.s32.totalorder %s17, 1
    %p40 = por %p38, %p39
    %p42 = scmp.ne.s32.totalorder %s25, %s41
    %p43 = scmp.eq.s32.totalorder %s17, 0
    %p44 = por %p42, %p43
    %s46 = sadd.s32 %s45, 1
    %p49 = scmp.eq.s32.totalorder %s11, 1
    %p50 = scmp.ne.s32.totalorder %s45, %s47
    %p51 = scmp.eq.s32.totalorder %s11, 0
    %p52 = por %p50, %p51
    %p53 = scmp.ne.s32.totalorder %s45, %s47
    %p54 = scmp.eq.s32.totalorder %s16, 1
    %p55 = por %p53, %p54
    %p56 = scmp.ne.s32.totalorder %s47, %s48
    %p57 = scmp.eq.s32.totalorder %s16, 0
    %p58 = por %p56, %p57
    %p59 = scmp.ne.s32.totalorder %s47, %s48
    %p60 = scmp.eq.s32.totalorder %s17, 1
    %p61 = por %p59, %p60
    %p63 = scmp.ne.s32.totalorder %s48, %s62
    %p64 = scmp.eq.s32.totalorder %s17, 0
    %p65 = por %p63, %p64
    %s67 = sadd.s32 %s66, 1
    %p70 = scmp.eq.s32.totalorder %s11, 1
    %p71 = scmp.ne.s32.totalorder %s66, %s68
    %p72 = scmp.eq.s32.totalorder %s11, 0
    %p73 = por %p71, %p72
    %p74 = scmp.ne.s32.totalorder %s66, %s68
    %p75 = scmp.eq.s32.totalorder %s16, 1
    %p76 = por %p74, %p75
    %p77 = scmp.ne.s32.totalorder %s68, %s69
    %p78 = scmp.eq.s32.totalorder %s16, 0
    %p79 = por %p77, %p78
    %p80 = scmp.ne.s32.totalorder %s68, %s69
    %p81 = scmp.eq.s32.totalorder %s17, 1
    %p82 = por %p80, %p81
    %p84 = scmp.ne.s32.totalorder %s69, %s83
    %p85 = scmp.eq.s32.totalorder %s17, 0
    %p86 = por %p84, %p85
    %s88 = sadd.s32 %s87, 1
    %p91 = scmp.eq.s32.totalorder %s11, 1
    %p92 = scmp.ne.s32.totalorder %s87, %s89
    %p93 = scmp.eq.s32.totalorder %s11, 0
    %p94 = por %p92, %p93
    %p95 = scmp.ne.s32.totalorder %s87, %s89
    %p96 = scmp.eq.s32.totalorder %s16, 1
    %p97 = por %p95, %p96
    %p98 = scmp.ne.s32.totalorder %s89, %s90
    %p99 = scmp.eq.s32.totalorder %s16, 0
    %p100 = por %p98, %p99
    %p101 = scmp.ne.s32.totalorder %s89, %s90
    %p102 = scmp.eq.s32.totalorder %s17, 1
    %p103 = por %p101, %p102
    %p105 = scmp.ne.s32.totalorder %s90, %s104
    %p106 = scmp.eq.s32.totalorder %s17, 0
    %p107 = por %p105, %p106
    %s109 = sadd.s32 %s108, 1
    %p112 = scmp.eq.s32.totalorder %s11, 1
    %p113 = scmp.ne.s32.totalorder %s108, %s110
    %p114 = scmp.eq.s32.totalorder %s11, 0
    %p115 = por %p113, %p114
    %p116 = scmp.ne.s32.totalorder %s108, %s110
    %p117 = scmp.eq.s32.totalorder %s16, 1
    %p118 = por %p116, %p117
    %p119 = scmp.ne.s32.totalorder %s110, %s111
    %p120 = scmp.eq.s32.totalorder %s16, 0
    %p121 = por %p119, %p120
    %p122 = scmp.ne.s32.totalorder %s110, %s111
    %p123 = scmp.eq.s32.totalorder %s17, 1
    %p124 = por %p122, %p123
    %p126 = scmp.ne.s32.totalorder %s111, %s125
    %p127 = scmp.eq.s32.totalorder %s17, 0
    %p128 = por %p126, %p127
    %s129 = ssub.s32 %s11, %s18
    %p130 = scmp.eq.s32.totalorder %s129, 0
    %s132 = sadd.s32 %s131, 1
    %s133 = scalar_select %p130, %s131, %s132
    %p136 = pneg %p130
    %p137 = scmp.eq.s32.totalorder %s11, 1
    %p138 = por %p136, %p137
    %p139 = scmp.ne.s32.totalorder %s131, %s134
    %p140 = scmp.eq.s32.totalorder %s11, 0
    %p141 = por %p139, %p140
    %p142 = scmp.ne.s32.totalorder %s131, %s134
    %p143 = scmp.eq.s32.totalorder %s16, 1
    %p144 = por %p142, %p143
    %p145 = scmp.ne.s32.totalorder %s134, %s135
    %p146 = scmp.eq.s32.totalorder %s16, 0
    %p147 = por %p145, %p146
    %p148 = scmp.ne.s32.totalorder %s134, %s135
    %p149 = scmp.eq.s32.totalorder %s17, 1
    %p150 = por %p148, %p149
    %p152 = scmp.ne.s32.totalorder %s135, %s151
    %p153 = scmp.eq.s32.totalorder %s17, 0
    %p154 = por %p152, %p153
    %p155 = scmp.le.s32.totalorder 1, %s11
    %p156 = scmp.lt.s32.totalorder %s11, 3
    %p157 = pnand %p155, %p156
    %p158 = pneg %p157
    // Predicated region
    $region9: #{diffusion_transformer.13} parent=5 // pred_check
      _
    $region10: #{diffusion_transformer.13} parent=5 // pred_check_branch
      %160 = sbr.rel (%p157) target = $region12
    $region11: #{diffusion_transformer.13} parent=5 // pred_region
      %s161 = ssub.s32 %s11, 1
      // Predicated region
      $region13: #{diffusion_transformer.13} parent=11 // pred_check
        %p162 = pneg %p58
      $region14: #{diffusion_transformer.13} parent=11 // pred_check_branch
        %164 = sbr.rel (%p162) target = $region16
      $region15: #{diffusion_transformer.13} parent=11 // pred_region
        _
      $region16: #{diffusion_transformer.13} parent=11 // pred_fallthru
        _
      // Predicated region
      $region17: #{diffusion_transformer.13} parent=11 // pred_check
        %p165 = pneg %p79
      $region18: #{diffusion_transformer.13} parent=11 // pred_check_branch
        %167 = sbr.rel (%p165) target = $region20
      $region19: #{diffusion_transformer.13} parent=11 // pred_region
        _
      $region20: #{diffusion_transformer.13} parent=11 // pred_fallthru
        _
      // Predicated region
      $region21: #{diffusion_transformer.13} parent=11 // pred_check
        %p168 = pneg %p100
      $region22: #{diffusion_transformer.13} parent=11 // pred_check_branch
        %170 = sbr.rel (%p168) target = $region24
      $region23: #{diffusion_transformer.13} parent=11 // pred_region
        _
      $region24: #{diffusion_transformer.13} parent=11 // pred_fallthru
        _
      // Predicated region
      $region25: #{diffusion_transformer.13} parent=11 // pred_check
        %p171 = pneg %p121
      $region26: #{diffusion_transformer.13} parent=11 // pred_check_branch
        %173 = sbr.rel (%p171) target = $region28
      $region27: #{diffusion_transformer.13} parent=11 // pred_region
        _
      $region28: #{diffusion_transformer.13} parent=11 // pred_fallthru
        _
    $region12: #{diffusion_transformer.13} parent=5 // pred_fallthru
      _
    %p174 = scmp.lt.s32.totalorder %s11, 2
    // Predicated region
    $region29: #{diffusion_transformer.13} parent=5 // pred_check
      %p175 = pneg %p174
    $region30: #{diffusion_transformer.13} parent=5 // pred_check_branch
      %177 = sbr.rel (%p175) target = $region32
    $region31: #{diffusion_transformer.13} parent=5 // pred_region
      // Predicated region
      $region33: #{diffusion_transformer.13} parent=31 // pred_check
        %p178 = pneg %p31
      $region34: #{diffusion_transformer.13} parent=31 // pred_check_branch
        %180 = sbr.rel (%p178) target = $region36
      $region35: #{diffusion_transformer.13} parent=31 // pred_region
        %p181 = scmp.lt.s32.totalorder %s11, 1
        %s182 = scalar_select %p181, %s11, 1
        %s183 = smul.addr %s182, 2
        %s184 = smul.addr %s183, 8
        %s185 = scalar_lea.vmem %s0, %s184
      $region36: #{diffusion_transformer.13} parent=31 // pred_fallthru
        _
    $region32: #{diffusion_transformer.13} parent=5 // pred_fallthru
      _
    %p186 = scmp.le.s32.totalorder 1, %s11
    %p187 = scmp.lt.s32.totalorder %s11, 3
    %p188 = pnand %p186, %p187
    %p189 = pneg %p188
    // Predicated region
    $region37: #{diffusion_transformer.13} parent=5 // pred_check
      _
    $region38: #{diffusion_transformer.13} parent=5 // pred_check_branch
      %191 = sbr.rel (%p188) target = $region40
    $region39: #{diffusion_transformer.13} parent=5 // pred_region
      %s192 = ssub.s32 %s11, 1
      %p193 = scmp.lt.s32.totalorder %s16, 1
      %s194 = scalar_select %p193, %s16, 1
      %s195 = smul.addr %s194, 2
      %s196 = smul.addr %s195, 8
      %s197 = scalar_lea.vmem %s0, %s196
      %p198 = pneg %p37
      %p199 = pneg %p34
      %p200 = pneg %p58
      %p201 = pneg %p55
      %p202 = pneg %p79
      %p203 = pneg %p76
      %p204 = pneg %p100
      %p205 = pneg %p97
      %p206 = pneg %p121
      %p207 = pneg %p118
      %p208 = pneg %p147
      %p209 = pneg %p144
      %p210 = scmp.lt.s32.totalorder %s16, 1
      %s211 = scalar_select %p210, %s16, 1
      %s212 = smul.addr %s211, 2
      %s213 = smul.addr %s212, 8
      %s214 = scalar_lea.vmem %s5, %s213
      %p215 = scmp.lt.s32.totalorder %s16, 1
      %s216 = scalar_select %p215, %s16, 1
      %s217 = smul.addr %s216, 2
      %s218 = smul.addr %s217, 8
      %s219 = scalar_lea.vmem %s0, %s218
      %p220 = scmp.lt.s32.totalorder %s16, 1
      %s221 = scalar_select %p220, %s16, 1
      %s222 = smul.addr %s221, 2
      %s223 = smul.addr %s222, 8
      %s224 = scalar_lea.vmem %s5, %s223
      %v226 = vld [vmem:[%s219] sm:$0xff]
      %v227 = vld [vmem:[%s219 + $0x8] sm:$0xff]
      %v228 = vld [vmem:[%s1] sm:$0x1]
      %v229 = vld [vmem:[%s2] sm:$0x1]
      %230 = vadd.xlane.f32.xlu0 %v226
      %v231 = vpop.xlane.xlu0 %230
      %232 = vadd.xlane.f32.xlu0 %v227
      %v233 = vpop.xlane.xlu0 %232
      %v234 = vrcp.pop 128.0
      %v235 = vmul.f32 %v231, %v234
      %v236 = vmul.f32 %v233, %v234
      %v237 = vsub.f32 %v226, %v235
      %v238 = vsub.f32 %v227, %v236
      %v239 = vmul.f32 %v237, %v237
      %v240 = vmul.f32 %v238, %v238
      %241 = vadd.xlane.f32.xlu0 %v239
      %v242 = vpop.xlane.xlu0 %241
      %243 = vadd.xlane.f32.xlu0 %v240
      %v244 = vpop.xlane.xlu0 %243
      %v245 = vmul.f32 %v242, %v234
      %v246 = vmul.f32 %v244, %v234
      %v247 = vadd.f32 %v245, 1e-05
      %v248 = vadd.f32 %v246, 1e-05
      %v249 = vrsqrt.pop %v247
      %v250 = vrsqrt.pop %v248
      %v251 = vmul.f32 %v237, %v249
      %v252 = vmul.f32 %v238, %v250
      %v254 = vlaneseq
      %v255 = vshrl.u32 %v254, 7
      %v256 = vsub.s32 0, %v255
      %v257 = vrot.slane %v228, %v256
      %v259 = vmul.f32 %v251, %v257
      %v260 = vmul.f32 %v252, %v257
      %v262 = vlaneseq
      %v263 = vshrl.u32 %v262, 7
      %v264 = vsub.s32 0, %v263
      %v265 = vrot.slane %v229, %v264
      %v267 = vadd.f32 %v259, %v265
      %v268 = vadd.f32 %v260, %v265
      %v269 = vpack.c.bf16 %v268, %v267
      %v270 = vld [vmem:[%s3] sm:$0xf]
      %v271 = vld [vmem:[%s3 + $0x4] sm:$0xf]
      %v272 = vld [vmem:[%s3 + $0x8] sm:$0xf]
      %v273 = vld [vmem:[%s3 + $0xc] sm:$0xf]
      %v274 = vld [vmem:[%s3 + $0x10] sm:$0xf]
      %v275 = vld [vmem:[%s3 + $0x14] sm:$0xf]
      %v276 = vld [vmem:[%s3 + $0x18] sm:$0xf]
      %v277 = vld [vmem:[%s3 + $0x1c] sm:$0xf]
      %v278 = vld [vmem:[%s3 + $0x20] sm:$0xf]
      %v279 = vld [vmem:[%s3 + $0x24] sm:$0xf]
      %v280 = vld [vmem:[%s3 + $0x28] sm:$0xf]
      %v281 = vld [vmem:[%s3 + $0x2c] sm:$0xf]
      %v282 = vld [vmem:[%s3 + $0x30] sm:$0xf]
      %v283 = vld [vmem:[%s3 + $0x34] sm:$0xf]
      %v284 = vld [vmem:[%s3 + $0x38] sm:$0xf]
      %v285 = vld [vmem:[%s3 + $0x3c] sm:$0xf]
      %v286 = vld [vmem:[%s4] sm:$0x1]
      %v288 = vlaneseq
      %v289 = vshrl.u32 %v288, 7
      %v290 = vsub.s32 0, %v289
      %v291 = vrot.slane %v286, %v290
      %v309 = vunpack.c.l.b16 %v270
      %v310 = vunpack.c.l.b16 %v271
      %v311 = vunpack.c.l.b16 %v272
      %v312 = vunpack.c.l.b16 %v273
      %v313 = vunpack.c.l.b16 %v274
      %v314 = vunpack.c.l.b16 %v275
      %v315 = vunpack.c.l.b16 %v276
      %v316 = vunpack.c.l.b16 %v277
      %v317 = vunpack.c.l.b16 %v278
      %v318 = vunpack.c.l.b16 %v279
      %v319 = vunpack.c.l.b16 %v280
      %v320 = vunpack.c.l.b16 %v281
      %v321 = vunpack.c.l.b16 %v282
      %v322 = vunpack.c.l.b16 %v283
      %v323 = vunpack.c.l.b16 %v284
      %v324 = vunpack.c.l.b16 %v285
      %v325 = vpack.c.b16 %v310, %v309
      %v326 = vpack.c.b16 %v312, %v311
      %v327 = vpack.c.b16 %v314, %v313
      %v328 = vpack.c.b16 %v316, %v315
      %v329 = vpack.c.b16 %v318, %v317
      %v330 = vpack.c.b16 %v320, %v319
      %v331 = vpack.c.b16 %v322, %v321
      %v332 = vpack.c.b16 %v324, %v323
      %341 = vmatprep.subr.bf16.mxu0 0
      %342 = vmatpush1.bf16.msra.mxu0 %v332
      %343 = vmatprep.subr.bf16.mxu0 0
      %344 = vmatpush1.bf16.msra.mxu0 %v331
      %345 = vmatprep.subr.bf16.mxu0 0
      %346 = vmatpush1.bf16.msra.mxu0 %v330
      %347 = vmatprep.subr.bf16.mxu0 0
      %348 = vmatpush1.bf16.msra.mxu0 %v329
      %349 = vmatprep.subr.bf16.mxu0 0
      %350 = vmatpush1.bf16.msra.mxu0 %v328
      %351 = vmatprep.subr.bf16.mxu0 0
      %352 = vmatpush1.bf16.msra.mxu0 %v327
      %353 = vmatprep.subr.bf16.mxu0 0
      %354 = vmatpush1.bf16.msra.mxu0 %v326
      %355 = vmatprep.subr.bf16.mxu0 0
      %356 = vmatpush1.bf16.msra.mxu0 %v325
      %357 = vmatprep.subr.bf16.mxu0 0
      %358 = vmatpush2.bf16.msra.mxu0 0
      %359 = vmatprep.subr.bf16.mxu0 0
      %360 = vmatpush2.bf16.msra.mxu0 0
      %361 = vmatprep.subr.bf16.mxu0 0
      %362 = vmatpush2.bf16.msra.mxu0 0
      %363 = vmatprep.subr.bf16.mxu0 0
      %364 = vmatpush2.bf16.msra.mxu0 0
      %365 = vmatprep.subr.bf16.mxu0 0
      %366 = vmatpush2.bf16.msra.mxu0 0
      %367 = vmatprep.subr.bf16.mxu0 0
      %368 = vmatpush2.bf16.msra.mxu0 0
      %369 = vmatprep.subr.bf16.mxu0 0
      %370 = vmatpush2.bf16.msra.mxu0 0
      %371 = vmatprep.subr.bf16.mxu0 0
      %372 = vmatpush2.bf16.msra.mxu0 0
      %373 = vmatprep.mubr.bf16.mxu0 0
      %374 = vmatmul.mubr.bf16.gmra.mxu0 %v269
      %v375 = vpop.f32.mrf.mxu0
      %v376 = vadd.f32 %v291, %v375
      %v377 = vpop.f32.mrf.mxu0
      %v378 = vpop.f32.mrf.mxu0
      %v379 = vadd.f32 %v291, %v378
      %v380 = vpop.f32.mrf.mxu0
      %381 = vdwg.mxu0
      %382 = vst [vmem:[%s224] sm:$0xff] %v376
      %383 = vst [vmem:[%s224 + $0x8] sm:$0xff] %v379
      %p384 = scmp.lt.s32.totalorder %s16, 1
      %s385 = scalar_select %p384, %s16, 1
      %s386 = smul.addr %s385, 2
      %s387 = smul.addr %s386, 8
      %s388 = scalar_lea.vmem %s5, %s387
      // Predicated region
      $region41: #{diffusion_transformer.13} parent=39 // pred_check
        %p389 = pneg %p144
      $region42: #{diffusion_transformer.13} parent=39 // pred_check_branch
        %391 = sbr.rel (%p389) target = $region44
      $region43: #{diffusion_transformer.13} parent=39 // pred_region
        _
      $region44: #{diffusion_transformer.13} parent=39 // pred_fallthru
        _
    $region40: #{diffusion_transformer.13} parent=5 // pred_fallthru
      _
    %p392 = scmp.le.s32.totalorder 2, %s11
    // Predicated region
    $region45: #{diffusion_transformer.13} parent=5 // pred_check
      %p393 = pneg %p392
    $region46: #{diffusion_transformer.13} parent=5 // pred_check_branch
      %395 = sbr.rel (%p393) target = $region48
    $region47: #{diffusion_transformer.13} parent=5 // pred_region
      %s396 = ssub.s32 %s11, 2
      // Predicated region
      $region49: #{diffusion_transformer.13} parent=47 // pred_check
        %p397 = pneg %p150
      $region50: #{diffusion_transformer.13} parent=47 // pred_check_branch
        %399 = sbr.rel (%p397) target = $region52
      $region51: #{diffusion_transformer.13} parent=47 // pred_region
        %p400 = scmp.lt.s32.totalorder %s17, 1
        %s401 = scalar_select %p400, %s17, 1
        %s402 = smul.addr %s401, 2
        %s403 = smul.addr %s402, 8
        %s404 = scalar_lea.vmem %s5, %s403
      $region52: #{diffusion_transformer.13} parent=47 // pred_fallthru
        _
    $region48: #{diffusion_transformer.13} parent=5 // pred_fallthru
      _
  $region6: #{diffusion_transformer.13} parent=0 // loop_footer
    %s15 = sadd.s32 1, %s11
  $region7: #{diffusion_transformer.13} parent=0 // loop_footer_branch
    %10 = sbr.rel target = $region3
  $region8: #{diffusion_transformer.13} parent=0 // loop_exit
    _

// kernel: diffusion_transformer.10
$region0: #{diffusion_transformer.10}
  #allocation0 [shape = 'u32[]', space=smem, size = 0x4, offset = 0x4, fixed_abs, tag = 'smem constant byte address 0x4 - core index']
  #allocation1 [shape = 'u32[144,128]{1,0:T(1,128)}', space=vmem, size = 0x12000, scoped, tag = 'internal scratch']
  %s0 = inlined_call_operand.vmem [shape: f32[2,16,128], index: 0, kind: input, shape index: {}]
  %s1 = inlined_call_operand.vmem [shape: f32[1,128], index: 1, kind: input, shape index: {}]
  %s2 = inlined_call_operand.vmem [shape: f32[1,128], index: 2, kind: input, shape index: {}]
  %s3 = inlined_call_operand.vmem [shape: bf16[128,512], index: 3, kind: input, shape index: {}]
  %s4 = inlined_call_operand.vmem [shape: f32[1,512], index: 4, kind: input, shape index: {}]
  %s5 = inlined_call_operand.vmem [shape: bf16[512,128], index: 5, kind: input, shape index: {}]
  %s6 = inlined_call_operand.vmem [shape: f32[1,128], index: 6, kind: input, shape index: {}]
  %s7 = inlined_call_operand.vmem [shape: f32[2,16,128], index: 7, kind: output, shape index: {}]
  %s8 = sld [smem:[#allocation0]]
  $region61: #{diffusion_transformer.10} parent=0
    _
  %s10 = ssub.s32 1, %s8
  %s11 = scalar_select 0, %s10, %s8
  loop: start=0, step=1, limit=4
  $region2: #{diffusion_transformer.10} parent=0 // loop_pre_header
    _
  $region3: #{diffusion_transformer.10} parent=0 // loop_header
    %s13 = sphi 0, %s17
    %p14 = scmp.ge.s32.totalorder %s13, 4
    %s23 = sphi 0, %s25
    %s26 = sphi 0, %s23
    %s27 = sphi 0, %s26
    %s43 = sphi 0, %s27
    %s47 = sphi 0, %s47
    %s49 = sphi 0, %s47
    %s50 = sphi 0, %s49
    %s64 = sphi 0, %s50
    %s68 = sphi 0, %s68
    %s70 = sphi 0, %s68
    %s71 = sphi 0, %s70
    %s85 = sphi 0, %s71
    %s89 = sphi 0, %s89
    %s91 = sphi 0, %s89
    %s92 = sphi 0, %s91
    %s106 = sphi 0, %s92
    %s110 = sphi 0, %s110
    %s112 = sphi 0, %s110
    %s113 = sphi 0, %s112
    %s127 = sphi 0, %s113
    %s131 = sphi 0, %s131
    %s133 = sphi 0, %s131
    %s134 = sphi 0, %s133
    %s148 = sphi 0, %s134
    %s152 = sphi 0, %s152
    %s154 = sphi 0, %s152
    %s155 = sphi 0, %s154
    %s169 = sphi 0, %s155
    %s175 = sphi 0, %s177
    %s178 = sphi 0, %s175
    %s179 = sphi 0, %s178
    %s195 = sphi 0, %s179
  $region4: #{diffusion_transformer.10} parent=0 // loop_header_branch
    %16 = sbr.rel (%p14) target = $region8
  $region5: #{diffusion_transformer.10} parent=0 // loop_body
    %s18 = ssub.s32 %s13, 1
    %s19 = ssub.s32 %s13, 2
    %s20 = sadd.s32 %s13, 1
    %s21 = ssub.s32 %s13, %s20
    %p22 = scmp.eq.s32.totalorder %s21, 0
    %s24 = sadd.s32 %s23, 1
    %s25 = scalar_select %p22, %s23, %s24
    %p28 = pneg %p22
    %p29 = scmp.eq.s32.totalorder %s13, 1
    %p30 = por %p28, %p29
    %p31 = scmp.ne.s32.totalorder %s23, %s26
    %p32 = scmp.eq.s32.totalorder %s13, 0
    %p33 = por %p31, %p32
    %p34 = scmp.ne.s32.totalorder %s23, %s26
    %p35 = scmp.eq.s32.totalorder %s18, 1
    %p36 = por %p34, %p35
    %p37 = scmp.ne.s32.totalorder %s26, %s27
    %p38 = scmp.eq.s32.totalorder %s18, 0
    %p39 = por %p37, %p38
    %p40 = scmp.ne.s32.totalorder %s26, %s27
    %p41 = scmp.eq.s32.totalorder %s19, 1
    %p42 = por %p40, %p41
    %p44 = scmp.ne.s32.totalorder %s27, %s43
    %p45 = scmp.eq.s32.totalorder %s19, 0
    %p46 = por %p44, %p45
    %s48 = sadd.s32 %s47, 1
    %p51 = scmp.eq.s32.totalorder %s13, 1
    %p52 = scmp.ne.s32.totalorder %s47, %s49
    %p53 = scmp.eq.s32.totalorder %s13, 0
    %p54 = por %p52, %p53
    %p55 = scmp.ne.s32.totalorder %s47, %s49
    %p56 = scmp.eq.s32.totalorder %s18, 1
    %p57 = por %p55, %p56
    %p58 = scmp.ne.s32.totalorder %s49, %s50
    %p59 = scmp.eq.s32.totalorder %s18, 0
    %p60 = por %p58, %p59
    %p61 = scmp.ne.s32.totalorder %s49, %s50
    %p62 = scmp.eq.s32.totalorder %s19, 1
    %p63 = por %p61, %p62
    %p65 = scmp.ne.s32.totalorder %s50, %s64
    %p66 = scmp.eq.s32.totalorder %s19, 0
    %p67 = por %p65, %p66
    %s69 = sadd.s32 %s68, 1
    %p72 = scmp.eq.s32.totalorder %s13, 1
    %p73 = scmp.ne.s32.totalorder %s68, %s70
    %p74 = scmp.eq.s32.totalorder %s13, 0
    %p75 = por %p73, %p74
    %p76 = scmp.ne.s32.totalorder %s68, %s70
    %p77 = scmp.eq.s32.totalorder %s18, 1
    %p78 = por %p76, %p77
    %p79 = scmp.ne.s32.totalorder %s70, %s71
    %p80 = scmp.eq.s32.totalorder %s18, 0
    %p81 = por %p79, %p80
    %p82 = scmp.ne.s32.totalorder %s70, %s71
    %p83 = scmp.eq.s32.totalorder %s19, 1
    %p84 = por %p82, %p83
    %p86 = scmp.ne.s32.totalorder %s71, %s85
    %p87 = scmp.eq.s32.totalorder %s19, 0
    %p88 = por %p86, %p87
    %s90 = sadd.s32 %s89, 1
    %p93 = scmp.eq.s32.totalorder %s13, 1
    %p94 = scmp.ne.s32.totalorder %s89, %s91
    %p95 = scmp.eq.s32.totalorder %s13, 0
    %p96 = por %p94, %p95
    %p97 = scmp.ne.s32.totalorder %s89, %s91
    %p98 = scmp.eq.s32.totalorder %s18, 1
    %p99 = por %p97, %p98
    %p100 = scmp.ne.s32.totalorder %s91, %s92
    %p101 = scmp.eq.s32.totalorder %s18, 0
    %p102 = por %p100, %p101
    %p103 = scmp.ne.s32.totalorder %s91, %s92
    %p104 = scmp.eq.s32.totalorder %s19, 1
    %p105 = por %p103, %p104
    %p107 = scmp.ne.s32.totalorder %s92, %s106
    %p108 = scmp.eq.s32.totalorder %s19, 0
    %p109 = por %p107, %p108
    %s111 = sadd.s32 %s110, 1
    %p114 = scmp.eq.s32.totalorder %s13, 1
    %p115 = scmp.ne.s32.totalorder %s110, %s112
    %p116 = scmp.eq.s32.totalorder %s13, 0
    %p117 = por %p115, %p116
    %p118 = scmp.ne.s32.totalorder %s110, %s112
    %p119 = scmp.eq.s32.totalorder %s18, 1
    %p120 = por %p118, %p119
    %p121 = scmp.ne.s32.totalorder %s112, %s113
    %p122 = scmp.eq.s32.totalorder %s18, 0
    %p123 = por %p121, %p122
    %p124 = scmp.ne.s32.totalorder %s112, %s113
    %p125 = scmp.eq.s32.totalorder %s19, 1
    %p126 = por %p124, %p125
    %p128 = scmp.ne.s32.totalorder %s113, %s127
    %p129 = scmp.eq.s32.totalorder %s19, 0
    %p130 = por %p128, %p129
    %s132 = sadd.s32 %s131, 1
    %p135 = scmp.eq.s32.totalorder %s13, 1
    %p136 = scmp.ne.s32.totalorder %s131, %s133
    %p137 = scmp.eq.s32.totalorder %s13, 0
    %p138 = por %p136, %p137
    %p139 = scmp.ne.s32.totalorder %s131, %s133
    %p140 = scmp.eq.s32.totalorder %s18, 1
    %p141 = por %p139, %p140
    %p142 = scmp.ne.s32.totalorder %s133, %s134
    %p143 = scmp.eq.s32.totalorder %s18, 0
    %p144 = por %p142, %p143
    %p145 = scmp.ne.s32.totalorder %s133, %s134
    %p146 = scmp.eq.s32.totalorder %s19, 1
    %p147 = por %p145, %p146
    %p149 = scmp.ne.s32.totalorder %s134, %s148
    %p150 = scmp.eq.s32.totalorder %s19, 0
    %p151 = por %p149, %p150
    %s153 = sadd.s32 %s152, 1
    %p156 = scmp.eq.s32.totalorder %s13, 1
    %p157 = scmp.ne.s32.totalorder %s152, %s154
    %p158 = scmp.eq.s32.totalorder %s13, 0
    %p159 = por %p157, %p158
    %p160 = scmp.ne.s32.totalorder %s152, %s154
    %p161 = scmp.eq.s32.totalorder %s18, 1
    %p162 = por %p160, %p161
    %p163 = scmp.ne.s32.totalorder %s154, %s155
    %p164 = scmp.eq.s32.totalorder %s18, 0
    %p165 = por %p163, %p164
    %p166 = scmp.ne.s32.totalorder %s154, %s155
    %p167 = scmp.eq.s32.totalorder %s19, 1
    %p168 = por %p166, %p167
    %p170 = scmp.ne.s32.totalorder %s155, %s169
    %p171 = scmp.eq.s32.totalorder %s19, 0
    %p172 = por %p170, %p171
    %s173 = ssub.s32 %s13, %s20
    %p174 = scmp.eq.s32.totalorder %s173, 0
    %s176 = sadd.s32 %s175, 1
    %s177 = scalar_select %p174, %s175, %s176
    %p180 = pneg %p174
    %p181 = scmp.eq.s32.totalorder %s13, 1
    %p182 = por %p180, %p181
    %p183 = scmp.ne.s32.totalorder %s175, %s178
    %p184 = scmp.eq.s32.totalorder %s13, 0
    %p185 = por %p183, %p184
    %p186 = scmp.ne.s32.totalorder %s175, %s178
    %p187 = scmp.eq.s32.totalorder %s18, 1
    %p188 = por %p186, %p187
    %p189 = scmp.ne.s32.totalorder %s178, %s179
    %p190 = scmp.eq.s32.totalorder %s18, 0
    %p191 = por %p189, %p190
    %p192 = scmp.ne.s32.totalorder %s178, %s179
    %p193 = scmp.eq.s32.totalorder %s19, 1
    %p194 = por %p192, %p193
    %p196 = scmp.ne.s32.totalorder %s179, %s195
    %p197 = scmp.eq.s32.totalorder %s19, 0
    %p198 = por %p196, %p197
    %p199 = scmp.le.s32.totalorder 1, %s13
    %p200 = scmp.lt.s32.totalorder %s13, 3
    %p201 = pnand %p199, %p200
    %p202 = pneg %p201
    // Predicated region
    $region9: #{diffusion_transformer.10} parent=5 // pred_check
      _
    $region10: #{diffusion_transformer.10} parent=5 // pred_check_branch
      %204 = sbr.rel (%p201) target = $region12
    $region11: #{diffusion_transformer.10} parent=5 // pred_region
      %s205 = ssub.s32 %s13, 1
      // Predicated region
      $region13: #{diffusion_transformer.10} parent=11 // pred_check
        %p206 = pneg %p60
      $region14: #{diffusion_transformer.10} parent=11 // pred_check_branch
        %208 = sbr.rel (%p206) target = $region16
      $region15: #{diffusion_transformer.10} parent=11 // pred_region
        _
      $region16: #{diffusion_transformer.10} parent=11 // pred_fallthru
        _
      // Predicated region
      $region17: #{diffusion_transformer.10} parent=11 // pred_check
        %p209 = pneg %p81
      $region18: #{diffusion_transformer.10} parent=11 // pred_check_branch
        %211 = sbr.rel (%p209) target = $region20
      $region19: #{diffusion_transformer.10} parent=11 // pred_region
        _
      $region20: #{diffusion_transformer.10} parent=11 // pred_fallthru
        _
      // Predicated region
      $region21: #{diffusion_transformer.10} parent=11 // pred_check
        %p212 = pneg %p102
      $region22: #{diffusion_transformer.10} parent=11 // pred_check_branch
        %214 = sbr.rel (%p212) target = $region24
      $region23: #{diffusion_transformer.10} parent=11 // pred_region
        _
      $region24: #{diffusion_transformer.10} parent=11 // pred_fallthru
        _
      // Predicated region
      $region25: #{diffusion_transformer.10} parent=11 // pred_check
        %p215 = pneg %p123
      $region26: #{diffusion_transformer.10} parent=11 // pred_check_branch
        %217 = sbr.rel (%p215) target = $region28
      $region27: #{diffusion_transformer.10} parent=11 // pred_region
        _
      $region28: #{diffusion_transformer.10} parent=11 // pred_fallthru
        _
      // Predicated region
      $region29: #{diffusion_transformer.10} parent=11 // pred_check
        %p218 = pneg %p144
      $region30: #{diffusion_transformer.10} parent=11 // pred_check_branch
        %220 = sbr.rel (%p218) target = $region32
      $region31: #{diffusion_transformer.10} parent=11 // pred_region
        _
      $region32: #{diffusion_transformer.10} parent=11 // pred_fallthru
        _
      // Predicated region
      $region33: #{diffusion_transformer.10} parent=11 // pred_check
        %p221 = pneg %p165
      $region34: #{diffusion_transformer.10} parent=11 // pred_check_branch
        %223 = sbr.rel (%p221) target = $region36
      $region35: #{diffusion_transformer.10} parent=11 // pred_region
        _
      $region36: #{diffusion_transformer.10} parent=11 // pred_fallthru
        _
    $region12: #{diffusion_transformer.10} parent=5 // pred_fallthru
      _
    %p224 = scmp.lt.s32.totalorder %s13, 2
    // Predicated region
    $region37: #{diffusion_transformer.10} parent=5 // pred_check
      %p225 = pneg %p224
    $region38: #{diffusion_transformer.10} parent=5 // pred_check_branch
      %227 = sbr.rel (%p225) target = $region40
    $region39: #{diffusion_transformer.10} parent=5 // pred_region
      // Predicated region
      $region41: #{diffusion_transformer.10} parent=39 // pred_check
        %p228 = pneg %p33
      $region42: #{diffusion_transformer.10} parent=39 // pred_check_branch
        %230 = sbr.rel (%p228) target = $region44
      $region43: #{diffusion_transformer.10} parent=39 // pred_region
        %p231 = scmp.lt.s32.totalorder %s13, 1
        %s232 = scalar_select %p231, %s13, 1
        %s233 = smul.addr %s232, 2
        %s234 = smul.addr %s233, 8
        %s235 = scalar_lea.vmem %s0, %s234
      $region44: #{diffusion_transformer.10} parent=39 // pred_fallthru
        _
    $region40: #{diffusion_transformer.10} parent=5 // pred_fallthru
      _
    %p236 = scmp.le.s32.totalorder 1, %s13
    %p237 = scmp.lt.s32.totalorder %s13, 3
    %p238 = pnand %p236, %p237
    %p239 = pneg %p238
    // Predicated region
    $region45: #{diffusion_transformer.10} parent=5 // pred_check
      _
    $region46: #{diffusion_transformer.10} parent=5 // pred_check_branch
      %241 = sbr.rel (%p238) target = $region48
    $region47: #{diffusion_transformer.10} parent=5 // pred_region
      %s242 = ssub.s32 %s13, 1
      %p243 = scmp.lt.s32.totalorder %s18, 1
      %s244 = scalar_select %p243, %s18, 1
      %s245 = smul.addr %s244, 2
      %s246 = smul.addr %s245, 8
      %s247 = scalar_lea.vmem %s0, %s246
      %p248 = pneg %p39
      %p249 = pneg %p36
      %p250 = pneg %p60
      %p251 = pneg %p57
      %p252 = pneg %p81
      %p253 = pneg %p78
      %p254 = pneg %p102
      %p255 = pneg %p99
      %p256 = pneg %p123
      %p257 = pneg %p120
      %p258 = pneg %p144
      %p259 = pneg %p141
      %p260 = pneg %p165
      %p261 = pneg %p162
      %p262 = pneg %p191
      %p263 = pneg %p188
      %p264 = scmp.lt.s32.totalorder %s18, 1
      %s265 = scalar_select %p264, %s18, 1
      %s266 = smul.addr %s265, 2
      %s267 = smul.addr %s266, 8
      %s268 = scalar_lea.vmem %s7, %s267
      %p269 = scmp.lt.s32.totalorder %s18, 1
      %s270 = scalar_select %p269, %s18, 1
      %s271 = smul.addr %s270, 2
      %s272 = smul.addr %s271, 8
      %s273 = scalar_lea.vmem %s0, %s272
      %p274 = scmp.lt.s32.totalorder %s18, 1
      %s275 = scalar_select %p274, %s18, 1
      %s276 = smul.addr %s275, 2
      %s277 = smul.addr %s276, 8
      %s278 = scalar_lea.vmem %s7, %s277
      %v280 = vld [vmem:[%s273] sm:$0xff]
      %v281 = vld [vmem:[%s273 + $0x8] sm:$0xff]
      %v282 = vld [vmem:[%s1] sm:$0x1]
      %v283 = vld [vmem:[%s2] sm:$0x1]
      %284 = vadd.xlane.f32.xlu0 %v280
      %v285 = vpop.xlane.xlu0 %284
      %286 = vadd.xlane.f32.xlu0 %v281
      %v287 = vpop.xlane.xlu0 %286
      %v288 = vrcp.pop 128.0
      %v289 = vmul.f32 %v285, %v288
      %v290 = vmul.f32 %v287, %v288
      %v291 = vsub.f32 %v280, %v289
      %v292 = vsub.f32 %v281, %v290
      %v293 = vmul.f32 %v291, %v291
      %v294 = vmul.f32 %v292, %v292
      %295 = vadd.xlane.f32.xlu0 %v293
      %v296 = vpop.xlane.xlu0 %295
      %297 = vadd.xlane.f32.xlu0 %v294
      %v298 = vpop.xlane.xlu0 %297
      %v299 = vmul.f32 %v296, %v288
      %v300 = vmul.f32 %v298, %v288
      %v301 = vadd.f32 %v299, 1e-05
      %v302 = vadd.f32 %v300, 1e-05
      %v303 = vrsqrt.pop %v301
      %v304 = vrsqrt.pop %v302
      %v305 = vmul.f32 %v291, %v303
      %v306 = vmul.f32 %v292, %v304
      %v308 = vlaneseq
      %v309 = vshrl.u32 %v308, 7
      %v310 = vsub.s32 0, %v309
      %v311 = vrot.slane %v282, %v310
      %v313 = vmul.f32 %v305, %v311
      %v314 = vmul.f32 %v306, %v311
      %v316 = vlaneseq
      %v317 = vshrl.u32 %v316, 7
      %v318 = vsub.s32 0, %v317
      %v319 = vrot.slane %v283, %v318
      %v321 = vadd.f32 %v313, %v319
      %v322 = vadd.f32 %v314, %v319
      %v323 = vpack.c.bf16 %v322, %v321
      %v324 = vld [vmem:[%s3] sm:$0xff]
      %v325 = vld [vmem:[%s3 + $0x8] sm:$0xff]
      %v326 = vld [vmem:[%s3 + $0x10] sm:$0xff]
      %v327 = vld [vmem:[%s3 + $0x18] sm:$0xff]
      %v328 = vld [vmem:[%s3 + $0x20] sm:$0xff]
      %v329 = vld [vmem:[%s3 + $0x28] sm:$0xff]
      %v330 = vld [vmem:[%s3 + $0x30] sm:$0xff]
      %v331 = vld [vmem:[%s3 + $0x38] sm:$0xff]
      %v332 = vld [vmem:[%s3 + $0x40] sm:$0xff]
      %v333 = vld [vmem:[%s3 + $0x48] sm:$0xff]
      %v334 = vld [vmem:[%s3 + $0x50] sm:$0xff]
      %v335 = vld [vmem:[%s3 + $0x58] sm:$0xff]
      %v336 = vld [vmem:[%s3 + $0x60] sm:$0xff]
      %v337 = vld [vmem:[%s3 + $0x68] sm:$0xff]
      %v338 = vld [vmem:[%s3 + $0x70] sm:$0xff]
      %v339 = vld [vmem:[%s3 + $0x78] sm:$0xff]
      %v340 = vld [vmem:[%s3 + $0x80] sm:$0xff]
      %v341 = vld [vmem:[%s3 + $0x88] sm:$0xff]
      %v342 = vld [vmem:[%s3 + $0x90] sm:$0xff]
      %v343 = vld [vmem:[%s3 + $0x98] sm:$0xff]
      %v344 = vld [vmem:[%s3 + $0xa0] sm:$0xff]
      %v345 = vld [vmem:[%s3 + $0xa8] sm:$0xff]
      %v346 = vld [vmem:[%s3 + $0xb0] sm:$0xff]
      %v347 = vld [vmem:[%s3 + $0xb8] sm:$0xff]
      %v348 = vld [vmem:[%s3 + $0xc0] sm:$0xff]
      %v349 = vld [vmem:[%s3 + $0xc8] sm:$0xff]
      %v350 = vld [vmem:[%s3 + $0xd0] sm:$0xff]
      %v351 = vld [vmem:[%s3 + $0xd8] sm:$0xff]
      %v352 = vld [vmem:[%s3 + $0xe0] sm:$0xff]
      %v353 = vld [vmem:[%s3 + $0xe8] sm:$0xff]
      %v354 = vld [vmem:[%s3 + $0xf0] sm:$0xff]
      %v355 = vld [vmem:[%s3 + $0xf8] sm:$0xff]
      %v356 = vld [vmem:[%s4] sm:$0xf]
      %v358 = vlaneseq
      %v359 = vshrl.u32 %v358, 7
      %v360 = vsub.s32 0, %v359
      %v361 = vrot.slane %v356, %v360
      %v362 = vlaneseq
      %v363 = vshrl.u32 %v362, 7
      %v364 = vsub.s32 1, %v363
      %v365 = vrot.slane %v356, %v364
      %v366 = vlaneseq
      %v367 = vshrl.u32 %v366, 7
      %v368 = vsub.s32 2, %v367
      %v369 = vrot.slane %v356, %v368
      %v370 = vlaneseq
      %v371 = vshrl.u32 %v370, 7
      %v372 = vsub.s32 3, %v371
      %v373 = vrot.slane %v356, %v372
      %v410 = vunpack.c.l.b16 %v324
      %v411 = vunpack.c.h.b16 %v324
      %v412 = vunpack.c.l.b16 %v325
      %v413 = vunpack.c.h.b16 %v325
      %v414 = vunpack.c.l.b16 %v326
      %v415 = vunpack.c.h.b16 %v326
      %v416 = vunpack.c.l.b16 %v327
      %v417 = vunpack.c.h.b16 %v327
      %v418 = vunpack.c.l.b16 %v328
      %v419 = vunpack.c.h.b16 %v328
      %v420 = vunpack.c.l.b16 %v329
      %v421 = vunpack.c.h.b16 %v329
      %v422 = vunpack.c.l.b16 %v330
      %v423 = vunpack.c.h.b16 %v330
      %v424 = vunpack.c.l.b16 %v331
      %v425 = vunpack.c.h.b16 %v331
      %v426 = vunpack.c.l.b16 %v332
      %v427 = vunpack.c.h.b16 %v332
      %v428 = vunpack.c.l.b16 %v333
      %v429 = vunpack.c.h.b16 %v333
      %v430 = vunpack.c.l.b16 %v334
      %v431 = vunpack.c.h.b16 %v334
      %v432 = vunpack.c.l.b16 %v335
      %v433 = vunpack.c.h.b16 %v335
      %v434 = vunpack.c.l.b16 %v336
      %v435 = vunpack.c.h.b16 %v336
      %v436 = vunpack.c.l.b16 %v337
      %v437 = vunpack.c.h.b16 %v337
      %v438 = vunpack.c.l.b16 %v338
      %v439 = vunpack.c.h.b16 %v338
      %v440 = vunpack.c.l.b16 %v339
      %v441 = vunpack.c.h.b16 %v339
      %v442 = vunpack.c.l.b16 %v340
      %v443 = vunpack.c.h.b16 %v340
      %v444 = vunpack.c.l.b16 %v341
      %v445 = vunpack.c.h.b16 %v341
      %v446 = vunpack.c.l.b16 %v342
      %v447 = vunpack.c.h.b16 %v342
      %v448 = vunpack.c.l.b16 %v343
      %v449 = vunpack.c.h.b16 %v343
      %v450 = vunpack.c.l.b16 %v344
      %v451 = vunpack.c.h.b16 %v344
      %v452 = vunpack.c.l.b16 %v345
      %v453 = vunpack.c.h.b16 %v345
      %v454 = vunpack.c.l.b16 %v346
      %v455 = vunpack.c.h.b16 %v346
      %v456 = vunpack.c.l.b16 %v347
      %v457 = vunpack.c.h.b16 %v347
      %v458 = vunpack.c.l.b16 %v348
      %v459 = vunpack.c.h.b16 %v348
      %v460 = vunpack.c.l.b16 %v349
      %v461 = vunpack.c.h.b16 %v349
      %v462 = vunpack.c.l.b16 %v350
      %v463 = vunpack.c.h.b16 %v350
      %v464 = vunpack.c.l.b16 %v351
      %v465 = vunpack.c.h.b16 %v351
      %v466 = vunpack.c.l.b16 %v352
      %v467 = vunpack.c.h.b16 %v352
      %v468 = vunpack.c.l.b16 %v353
      %v469 = vunpack.c.h.b16 %v353
      %v470 = vunpack.c.l.b16 %v354
      %v471 = vunpack.c.h.b16 %v354
      %v472 = vunpack.c.l.b16 %v355
      %v473 = vunpack.c.h.b16 %v355
      %v474 = vpack.c.b16 %v414, %v410
      %v475 = vpack.c.b16 %v415, %v411
      %v476 = vpack.c.b16 %v416, %v412
      %v477 = vpack.c.b16 %v417, %v413
      %v478 = vpack.c.b16 %v422, %v418
      %v479 = vpack.c.b16 %v423, %v419
      %v480 = vpack.c.b16 %v424, %v420
      %v481 = vpack.c.b16 %v425, %v421
      %v482 = vpack.c.b16 %v430, %v426
      %v483 = vpack.c.b16 %v431, %v427
      %v484 = vpack.c.b16 %v432, %v428
      %v485 = vpack.c.b16 %v433, %v429
      %v486 = vpack.c.b16 %v438, %v434
      %v487 = vpack.c.b16 %v439, %v435
      %v488 = vpack.c.b16 %v440, %v436
      %v489 = vpack.c.b16 %v441, %v437
      %v490 = vpack.c.b16 %v446, %v442
      %v491 = vpack.c.b16 %v447, %v443
      %v492 = vpack.c.b16 %v448, %v444
      %v493 = vpack.c.b16 %v449, %v445
      %v494 = vpack.c.b16 %v454, %v450
      %v495 = vpack.c.b16 %v455, %v451
      %v496 = vpack.c.b16 %v456, %v452
      %v497 = vpack.c.b16 %v457, %v453
      %v498 = vpack.c.b16 %v462, %v458
      %v499 = vpack.c.b16 %v463, %v459
      %v500 = vpack.c.b16 %v464, %v460
      %v501 = vpack.c.b16 %v465, %v461
      %v502 = vpack.c.b16 %v470, %v466
      %v503 = vpack.c.b16 %v471, %v467
      %v504 = vpack.c.b16 %v472, %v468
      %v505 = vpack.c.b16 %v473, %v469
      %538 = vmatprep.subr.bf16.mxu0 %v503
      %539 = vmatpush1.bf16.msra.mxu0 %v502
      %540 = vmatprep.subr.bf16.mxu0 %v499
      %541 = vmatpush1.bf16.msra.mxu0 %v498
      %542 = vmatprep.subr.bf16.mxu0 %v495
      %543 = vmatpush1.bf16.msra.mxu0 %v494
      %544 = vmatprep.subr.bf16.mxu0 %v491
      %545 = vmatpush1.bf16.msra.mxu0 %v490
      %546 = vmatprep.subr.bf16.mxu0 %v487
      %547 = vmatpush1.bf16.msra.mxu0 %v486
      %548 = vmatprep.subr.bf16.mxu0 %v483
      %549 = vmatpush1.bf16.msra.mxu0 %v482
      %550 = vmatprep.subr.bf16.mxu0 %v479
      %551 = vmatpush1.bf16.msra.mxu0 %v478
      %552 = vmatprep.subr.bf16.mxu0 %v475
      %553 = vmatpush1.bf16.msra.mxu0 %v474
      %554 = vmatprep.subr.bf16.mxu0 0
      %555 = vmatpush2.bf16.msra.mxu0 0
      %556 = vmatprep.subr.bf16.mxu0 0
      %557 = vmatpush2.bf16.msra.mxu0 0
      %558 = vmatprep.subr.bf16.mxu0 0
      %559 = vmatpush2.bf16.msra.mxu0 0
      %560 = vmatprep.subr.bf16.mxu0 0
      %561 = vmatpush2.bf16.msra.mxu0 0
      %562 = vmatprep.subr.bf16.mxu0 0
      %563 = vmatpush2.bf16.msra.mxu0 0
      %564 = vmatprep.subr.bf16.mxu0 0
      %565 = vmatpush2.bf16.msra.mxu0 0
      %566 = vmatprep.subr.bf16.mxu0 0
      %567 = vmatpush2.bf16.msra.mxu0 0
      %568 = vmatprep.subr.bf16.mxu0 0
      %569 = vmatpush2.bf16.msra.mxu0 0
      %570 = vmatprep.mubr.bf16.mxu0 0
      %571 = vmatmul.mubr.bf16.gmra.mxu0 %v323
      %v572 = vpop.f32.mrf.mxu0
      %v573 = vadd.f32 %v361, %v572
      %v574 = vpop.f32.mrf.mxu0
      %v575 = vadd.f32 %v365, %v574
      %v576 = vpop.f32.mrf.mxu0
      %v577 = vadd.f32 %v361, %v576
      %v578 = vpop.f32.mrf.mxu0
      %v579 = vadd.f32 %v365, %v578
      %580 = vdwg.mxu0
      %581 = vmatprep.subr.bf16.mxu0 %v505
      %582 = vmatpush1.bf16.msra.mxu0 %v504
      %583 = vmatprep.subr.bf16.mxu0 %v501
      %584 = vmatpush1.bf16.msra.mxu0 %v500
      %585 = vmatprep.subr.bf16.mxu0 %v497
      %586 = vmatpush1.bf16.msra.mxu0 %v496
      %587 = vmatprep.subr.bf16.mxu0 %v493
      %588 = vmatpush1.bf16.msra.mxu0 %v492
      %589 = vmatprep.subr.bf16.mxu0 %v489
      %590 = vmatpush1.bf16.msra.mxu0 %v488
      %591 = vmatprep.subr.bf16.mxu0 %v485
      %592 = vmatpush1.bf16.msra.mxu0 %v484
      %593 = vmatprep.subr.bf16.mxu0 %v481
      %594 = vmatpush1.bf16.msra.mxu0 %v480
      %595 = vmatprep.subr.bf16.mxu0 %v477
      %596 = vmatpush1.bf16.msra.mxu0 %v476
      %597 = vmatprep.subr.bf16.mxu0 0
      %598 = vmatpush2.bf16.msra.mxu0 0
      %599 = vmatprep.subr.bf16.mxu0 0
      %600 = vmatpush2.bf16.msra.mxu0 0
      %601 = vmatprep.subr.bf16.mxu0 0
      %602 = vmatpush2.bf16.msra.mxu0 0
      %603 = vmatprep.subr.bf16.mxu0 0
      %604 = vmatpush2.bf16.msra.mxu0 0
      %605 = vmatprep.subr.bf16.mxu0 0
      %606 = vmatpush2.bf16.msra.mxu0 0
      %607 = vmatprep.subr.bf16.mxu0 0
      %608 = vmatpush2.bf16.msra.mxu0 0
      %609 = vmatprep.subr.bf16.mxu0 0
      %610 = vmatpush2.bf16.msra.mxu0 0
      %611 = vmatprep.subr.bf16.mxu0 0
      %612 = vmatpush2.bf16.msra.mxu0 0
      %613 = vmatprep.mubr.bf16.mxu0 0
      %614 = vmatmul.mubr.bf16.gmra.mxu0 %v323
      %v615 = vpop.f32.mrf.mxu0
      %v616 = vadd.f32 %v369, %v615
      %v617 = vpop.f32.mrf.mxu0
      %v618 = vadd.f32 %v373, %v617
      %v619 = vpop.f32.mrf.mxu0
      %v620 = vadd.f32 %v369, %v619
      %v621 = vpop.f32.mrf.mxu0
      %v622 = vadd.f32 %v373, %v621
      %623 = vdwg.mxu0
      %v624 = vmax.f32 %v573, 0.0
      %v625 = vmax.f32 %v575, 0.0
      %v626 = vmax.f32 %v616, 0.0
      %v627 = vmax.f32 %v618, 0.0
      %v628 = vmax.f32 %v577, 0.0
      %v629 = vmax.f32 %v579, 0.0
      %v630 = vmax.f32 %v620, 0.0
      %v631 = vmax.f32 %v622, 0.0
      %v632 = vpack.c.bf16 %v628, %v624
      %v633 = vpack.c.bf16 %v629, %v625
      %v634 = vpack.c.bf16 %v630, %v626
      %v635 = vpack.c.bf16 %v631, %v627
      %v636 = vld [vmem:[%s5] sm:$0xf]
      %v637 = vld [vmem:[%s5 + $0x4] sm:$0xf]
      %v638 = vld [vmem:[%s5 + $0x8] sm:$0xf]
      %v639 = vld [vmem:[%s5 + $0xc] sm:$0xf]
      %v640 = vld [vmem:[%s5 + $0x10] sm:$0xf]
      %v641 = vld [vmem:[%s5 + $0x14] sm:$0xf]
      %v642 = vld [vmem:[%s5 + $0x18] sm:$0xf]
      %v643 = vld [vmem:[%s5 + $0x1c] sm:$0xf]
      %v644 = vld [vmem:[%s5 + $0x20] sm:$0xf]
      %v645 = vld [vmem:[%s5 + $0x24] sm:$0xf]
      %v646 = vld [vmem:[%s5 + $0x28] sm:$0xf]
      %v647 = vld [vmem:[%s5 + $0x2c] sm:$0xf]
      %v648 = vld [vmem:[%s5 + $0x30] sm:$0xf]
      %v649 = vld [vmem:[%s5 + $0x34] sm:$0xf]
      %v650 = vld [vmem:[%s5 + $0x38] sm:$0xf]
      %v651 = vld [vmem:[%s5 + $0x3c] sm:$0xf]
      %v652 = vld [vmem:[%s5 + $0x40] sm:$0xf]
      %v653 = vld [vmem:[%s5 + $0x44] sm:$0xf]
      %v654 = vld [vmem:[%s5 + $0x48] sm:$0xf]
      %v655 = vld [vmem:[%s5 + $0x4c] sm:$0xf]
      %v656 = vld [vmem:[%s5 + $0x50] sm:$0xf]
      %v657 = vld [vmem:[%s5 + $0x54] sm:$0xf]
      %v658 = vld [vmem:[%s5 + $0x58] sm:$0xf]
      %v659 = vld [vmem:[%s5 + $0x5c] sm:$0xf]
      %v660 = vld [vmem:[%s5 + $0x60] sm:$0xf]
      %v661 = vld [vmem:[%s5 + $0x64] sm:$0xf]
      %v662 = vld [vmem:[%s5 + $0x68] sm:$0xf]
      %v663 = vld [vmem:[%s5 + $0x6c] sm:$0xf]
      %v664 = vld [vmem:[%s5 + $0x70] sm:$0xf]
      %v665 = vld [vmem:[%s5 + $0x74] sm:$0xf]
      %v666 = vld [vmem:[%s5 + $0x78] sm:$0xf]
      %v667 = vld [vmem:[%s5 + $0x7c] sm:$0xf]
      %v668 = vld [vmem:[%s5 + $0x80] sm:$0xf]
      %v669 = vld [vmem:[%s5 + $0x84] sm:$0xf]
      %v670 = vld [vmem:[%s5 + $0x88] sm:$0xf]
      %v671 = vld [vmem:[%s5 + $0x8c] sm:$0xf]
      %v672 = vld [vmem:[%s5 + $0x90] sm:$0xf]
      %v673 = vld [vmem:[%s5 + $0x94] sm:$0xf]
      %v674 = vld [vmem:[%s5 + $0x98] sm:$0xf]
      %v675 = vld [vmem:[%s5 + $0x9c] sm:$0xf]
      %v676 = vld [vmem:[%s5 + $0xa0] sm:$0xf]
      %v677 = vld [vmem:[%s5 + $0xa4] sm:$0xf]
      %v678 = vld [vmem:[%s5 + $0xa8] sm:$0xf]
      %v679 = vld [vmem:[%s5 + $0xac] sm:$0xf]
      %v680 = vld [vmem:[%s5 + $0xb0] sm:$0xf]
      %v681 = vld [vmem:[%s5 + $0xb4] sm:$0xf]
      %v682 = vld [vmem:[%s5 + $0xb8] sm:$0xf]
      %v683 = vld [vmem:[%s5 + $0xbc] sm:$0xf]
      %v684 = vld [vmem:[%s5 + $0xc0] sm:$0xf]
      %v685 = vld [vmem:[%s5 + $0xc4] sm:$0xf]
      %v686 = vld [vmem:[%s5 + $0xc8] sm:$0xf]
      %v687 = vld [vmem:[%s5 + $0xcc] sm:$0xf]
      %v688 = vld [vmem:[%s5 + $0xd0] sm:$0xf]
      %v689 = vld [vmem:[%s5 + $0xd4] sm:$0xf]
      %v690 = vld [vmem:[%s5 + $0xd8] sm:$0xf]
      %v691 = vld [vmem:[%s5 + $0xdc] sm:$0xf]
      %v692 = vld [vmem:[%s5 + $0xe0] sm:$0xf]
      %v693 = vld [vmem:[%s5 + $0xe4] sm:$0xf]
      %v694 = vld [vmem:[%s5 + $0xe8] sm:$0xf]
      %v695 = vld [vmem:[%s5 + $0xec] sm:$0xf]
      %v696 = vld [vmem:[%s5 + $0xf0] sm:$0xf]
      %v697 = vld [vmem:[%s5 + $0xf4] sm:$0xf]
      %v698 = vld [vmem:[%s5 + $0xf8] sm:$0xf]
      %v699 = vld [vmem:[%s5 + $0xfc] sm:$0xf]
      %v700 = vld [vmem:[%s6] sm:$0x1]
      %v702 = vlaneseq
      %v703 = vshrl.u32 %v702, 7
      %v704 = vsub.s32 0, %v703
      %v705 = vrot.slane %v700, %v704
      %v771 = vunpack.c.l.b16 %v636
      %v772 = vunpack.c.l.b16 %v637
      %v773 = vunpack.c.l.b16 %v638
      %v774 = vunpack.c.l.b16 %v639
      %v775 = vunpack.c.l.b16 %v640
      %v776 = vunpack.c.l.b16 %v641
      %v777 = vunpack.c.l.b16 %v642
      %v778 = vunpack.c.l.b16 %v643
      %v779 = vunpack.c.l.b16 %v644
      %v780 = vunpack.c.l.b16 %v645
      %v781 = vunpack.c.l.b16 %v646
      %v782 = vunpack.c.l.b16 %v647
      %v783 = vunpack.c.l.b16 %v648
      %v784 = vunpack.c.l.b16 %v649
      %v785 = vunpack.c.l.b16 %v650
      %v786 = vunpack.c.l.b16 %v651
      %v787 = vunpack.c.l.b16 %v652
      %v788 = vunpack.c.l.b16 %v653
      %v789 = vunpack.c.l.b16 %v654
      %v790 = vunpack.c.l.b16 %v655
      %v791 = vunpack.c.l.b16 %v656
      %v792 = vunpack.c.l.b16 %v657
      %v793 = vunpack.c.l.b16 %v658
      %v794 = vunpack.c.l.b16 %v659
      %v795 = vunpack.c.l.b16 %v660
      %v796 = vunpack.c.l.b16 %v661
      %v797 = vunpack.c.l.b16 %v662
      %v798 = vunpack.c.l.b16 %v663
      %v799 = vunpack.c.l.b16 %v664
      %v800 = vunpack.c.l.b16 %v665
      %v801 = vunpack.c.l.b16 %v666
      %v802 = vunpack.c.l.b16 %v667
      %v803 = vunpack.c.l.b16 %v668
      %v804 = vunpack.c.l.b16 %v669
      %v805 = vunpack.c.l.b16 %v670
      %v806 = vunpack.c.l.b16 %v671
      %v807 = vunpack.c.l.b16 %v672
      %v808 = vunpack.c.l.b16 %v673
      %v809 = vunpack.c.l.b16 %v674
      %v810 = vunpack.c.l.b16 %v675
      %v811 = vunpack.c.l.b16 %v676
      %v812 = vunpack.c.l.b16 %v677
      %v813 = vunpack.c.l.b16 %v678
      %v814 = vunpack.c.l.b16 %v679
      %v815 = vunpack.c.l.b16 %v680
      %v816 = vunpack.c.l.b16 %v681
      %v817 = vunpack.c.l.b16 %v682
      %v818 = vunpack.c.l.b16 %v683
      %v819 = vunpack.c.l.b16 %v684
      %v820 = vunpack.c.l.b16 %v685
      %v821 = vunpack.c.l.b16 %v686
      %v822 = vunpack.c.l.b16 %v687
      %v823 = vunpack.c.l.b16 %v688
      %v824 = vunpack.c.l.b16 %v689
      %v825 = vunpack.c.l.b16 %v690
      %v826 = vunpack.c.l.b16 %v691
      %v827 = vunpack.c.l.b16 %v692
      %v828 = vunpack.c.l.b16 %v693
      %v829 = vunpack.c.l.b16 %v694
      %v830 = vunpack.c.l.b16 %v695
      %v831 = vunpack.c.l.b16 %v696
      %v832 = vunpack.c.l.b16 %v697
      %v833 = vunpack.c.l.b16 %v698
      %v834 = vunpack.c.l.b16 %v699
      %v835 = vpack.c.b16 %v772, %v771
      %v836 = vpack.c.b16 %v774, %v773
      %v837 = vpack.c.b16 %v776, %v775
      %v838 = vpack.c.b16 %v778, %v777
      %v839 = vpack.c.b16 %v780, %v779
      %v840 = vpack.c.b16 %v782, %v781
      %v841 = vpack.c.b16 %v784, %v783
      %v842 = vpack.c.b16 %v786, %v785
      %v843 = vpack.c.b16 %v788, %v787
      %v844 = vpack.c.b16 %v790, %v789
      %v845 = vpack.c.b16 %v792, %v791
      %v846 = vpack.c.b16 %v794, %v793
      %v847 = vpack.c.b16 %v796, %v795
      %v848 = vpack.c.b16 %v798, %v797
      %v849 = vpack.c.b16 %v800, %v799
      %v850 = vpack.c.b16 %v802, %v801
      %v851 = vpack.c.b16 %v804, %v803
      %v852 = vpack.c.b16 %v806, %v805
      %v853 = vpack.c.b16 %v808, %v807
      %v854 = vpack.c.b16 %v810, %v809
      %v855 = vpack.c.b16 %v812, %v811
      %v856 = vpack.c.b16 %v814, %v813
      %v857 = vpack.c.b16 %v816, %v815
      %v858 = vpack.c.b16 %v818, %v817
      %v859 = vpack.c.b16 %v820, %v819
      %v860 = vpack.c.b16 %v822, %v821
      %v861 = vpack.c.b16 %v824, %v823
      %v862 = vpack.c.b16 %v826, %v825
      %v863 = vpack.c.b16 %v828, %v827
      %v864 = vpack.c.b16 %v830, %v829
      %v865 = vpack.c.b16 %v832, %v831
      %v866 = vpack.c.b16 %v834, %v833
      %899 = vmatprep.subr.bf16.mxu0 0
      %900 = vmatpush1.bf16.msra.mxu0 %v842
      %901 = vmatprep.subr.bf16.mxu0 0
      %902 = vmatpush1.bf16.msra.mxu0 %v841
      %903 = vmatprep.subr.bf16.mxu0 0
      %904 = vmatpush1.bf16.msra.mxu0 %v840
      %905 = vmatprep.subr.bf16.mxu0 0
      %906 = vmatpush1.bf16.msra.mxu0 %v839
      %907 = vmatprep.subr.bf16.mxu0 0
      %908 = vmatpush1.bf16.msra.mxu0 %v838
      %909 = vmatprep.subr.bf16.mxu0 0
      %910 = vmatpush1.bf16.msra.mxu0 %v837
      %911 = vmatprep.subr.bf16.mxu0 0
      %912 = vmatpush1.bf16.msra.mxu0 %v836
      %913 = vmatprep.subr.bf16.mxu0 0
      %914 = vmatpush1.bf16.msra.mxu0 %v835
      %915 = vmatprep.subr.bf16.mxu0 0
      %916 = vmatpush2.bf16.msra.mxu0 %v850
      %917 = vmatprep.subr.bf16.mxu0 0
      %918 = vmatpush2.bf16.msra.mxu0 %v849
      %919 = vmatprep.subr.bf16.mxu0 0
      %920 = vmatpush2.bf16.msra.mxu0 %v848
      %921 = vmatprep.subr.bf16.mxu0 0
      %922 = vmatpush2.bf16.msra.mxu0 %v847
      %923 = vmatprep.subr.bf16.mxu0 0
      %924 = vmatpush2.bf16.msra.mxu0 %v846
      %925 = vmatprep.subr.bf16.mxu0 0
      %926 = vmatpush2.bf16.msra.mxu0 %v845
      %927 = vmatprep.subr.bf16.mxu0 0
      %928 = vmatpush2.bf16.msra.mxu0 %v844
      %929 = vmatprep.subr.bf16.mxu0 0
      %930 = vmatpush2.bf16.msra.mxu0 %v843
      %931 = vmatprep.mubr.bf16.mxu0 %v633
      %932 = vmatmul.mubr.bf16.gmra.mxu0 %v632
      %v933 = vpop.f32.mrf.mxu0
      %v934 = vadd.f32 %v705, %v933
      %v935 = vpop.f32.mrf.mxu0
      %v936 = vpop.f32.mrf.mxu0
      %v937 = vadd.f32 %v705, %v936
      %v938 = vpop.f32.mrf.mxu0
      %939 = vdwg.mxu0
      %940 = vmatprep.subr.bf16.mxu0 0
      %941 = vmatpush1.bf16.msra.mxu0 %v858
      %942 = vmatprep.subr.bf16.mxu0 0
      %943 = vmatpush1.bf16.msra.mxu0 %v857
      %944 = vmatprep.subr.bf16.mxu0 0
      %945 = vmatpush1.bf16.msra.mxu0 %v856
      %946 = vmatprep.subr.bf16.mxu0 0
      %947 = vmatpush1.bf16.msra.mxu0 %v855
      %948 = vmatprep.subr.bf16.mxu0 0
      %949 = vmatpush1.bf16.msra.mxu0 %v854
      %950 = vmatprep.subr.bf16.mxu0 0
      %951 = vmatpush1.bf16.msra.mxu0 %v853
      %952 = vmatprep.subr.bf16.mxu0 0
      %953 = vmatpush1.bf16.msra.mxu0 %v852
      %954 = vmatprep.subr.bf16.mxu0 0
      %955 = vmatpush1.bf16.msra.mxu0 %v851
      %956 = vmatprep.subr.bf16.mxu0 0
      %957 = vmatpush2.bf16.msra.mxu0 %v866
      %958 = vmatprep.subr.bf16.mxu0 0
      %959 = vmatpush2.bf16.msra.mxu0 %v865
      %960 = vmatprep.subr.bf16.mxu0 0
      %961 = vmatpush2.bf16.msra.mxu0 %v864
      %962 = vmatprep.subr.bf16.mxu0 0
      %963 = vmatpush2.bf16.msra.mxu0 %v863
      %964 = vmatprep.subr.bf16.mxu0 0
      %965 = vmatpush2.bf16.msra.mxu0 %v862
      %966 = vmatprep.subr.bf16.mxu0 0
      %967 = vmatpush2.bf16.msra.mxu0 %v861
      %968 = vmatprep.subr.bf16.mxu0 0
      %969 = vmatpush2.bf16.msra.mxu0 %v860
      %970 = vmatprep.subr.bf16.mxu0 0
      %971 = vmatpush2.bf16.msra.mxu0 %v859
      %972 = vmatprep.mubr.bf16.mxu0 %v635
      %973 = vmatmul.mubr.bf16.gmra.mxu0 %v634
      %v974 = vpop.f32.mrf.mxu0
      %v975 = vadd.f32 %v934, %v974
      %v976 = vpop.f32.mrf.mxu0
      %v977 = vpop.f32.mrf.mxu0
      %v978 = vadd.f32 %v937, %v977
      %v979 = vpop.f32.mrf.mxu0
      %980 = vdwg.mxu0
      %v981 = vadd.f32 %v280, %v975
      %v982 = vadd.f32 %v281, %v978
      %983 = vst [vmem:[%s278] sm:$0xff] %v981
      %984 = vst [vmem:[%s278 + $0x8] sm:$0xff] %v982
      %p985 = scmp.lt.s32.totalorder %s18, 1
      %s986 = scalar_select %p985, %s18, 1
      %s987 = smul.addr %s986, 2
      %s988 = smul.addr %s987, 8
      %s989 = scalar_lea.vmem %s7, %s988
      // Predicated region
      $region49: #{diffusion_transformer.10} parent=47 // pred_check
        %p990 = pneg %p188
      $region50: #{diffusion_transformer.10} parent=47 // pred_check_branch
        %992 = sbr.rel (%p990) target = $region52
      $region51: #{diffusion_transformer.10} parent=47 // pred_region
        _
      $region52: #{diffusion_transformer.10} parent=47 // pred_fallthru
        _
    $region48: #{diffusion_transformer.10} parent=5 // pred_fallthru
      _
    %p993 = scmp.le.s32.totalorder 2, %s13
    // Predicated region
    $region53: #{diffusion_transformer.10} parent=5 // pred_check
      %p994 = pneg %p993
    $region54: #{diffusion_transformer.10} parent=5 // pred_check_branch
      %996 = sbr.rel (%p994) target = $region56
    $region55: #{diffusion_transformer.10} parent=5 // pred_region
      %s997 = ssub.s32 %s13, 2
      // Predicated region
      $region57: #{diffusion_transformer.10} parent=55 // pred_check
        %p998 = pneg %p194
      $region58: #{diffusion_transformer.10} parent=55 // pred_check_branch
        %1000 = sbr.rel (%p998) target = $region60
      $region59: #{diffusion_transformer.10} parent=55 // pred_region
        %p1001 = scmp.lt.s32.totalorder %s19, 1
        %s1002 = scalar_select %p1001, %s19, 1
        %s1003 = smul.addr %s1002, 2
        %s1004 = smul.addr %s1003, 8
        %s1005 = scalar_lea.vmem %s7, %s1004
      $region60: #{diffusion_transformer.10} parent=55 // pred_fallthru
        _
    $region56: #{diffusion_transformer.10} parent=5 // pred_fallthru
      _
  $region6: #{diffusion_transformer.10} parent=0 // loop_footer
    %s17 = sadd.s32 1, %s13
  $region7: #{diffusion_transformer.10} parent=0 // loop_footer_branch
    %12 = sbr.rel target = $region3
  $region8: #{diffusion_transformer.10} parent=0 // loop_exit
    _

// kernel: diffusion_transformer.9
$region0: #{diffusion_transformer.9}
  #allocation0 [shape = 'u32[]', space=smem, size = 0x4, offset = 0x4, fixed_abs, tag = 'smem constant byte address 0x4 - core index']
  #allocation1 [shape = 'u32[144,128]{1,0:T(1,128)}', space=vmem, size = 0x12000, scoped, tag = 'internal scratch']
  %s0 = inlined_call_operand.vmem [shape: f32[2,16,128], index: 0, kind: input, shape index: {}]
  %s1 = inlined_call_operand.vmem [shape: f32[1,128], index: 1, kind: input, shape index: {}]
  %s2 = inlined_call_operand.vmem [shape: f32[1,128], index: 2, kind: input, shape index: {}]
  %s3 = inlined_call_operand.vmem [shape: f32[1,128], index: 3, kind: input, shape index: {}]
  %s4 = inlined_call_operand.vmem [shape: f32[1,128], index: 4, kind: input, shape index: {}]
  %s5 = inlined_call_operand.vmem [shape: bf16[4,128,32], index: 5, kind: input, shape index: {}]
  %s6 = inlined_call_operand.vmem [shape: bf16[4,128,32], index: 6, kind: input, shape index: {}]
  %s7 = inlined_call_operand.vmem [shape: bf16[4,128,32], index: 7, kind: input, shape index: {}]
  %s8 = inlined_call_operand.vmem [shape: f32[4,1,32], index: 8, kind: input, shape index: {}]
  %s9 = inlined_call_operand.vmem [shape: f32[4,1,32], index: 9, kind: input, shape index: {}]
  %s10 = inlined_call_operand.vmem [shape: f32[4,1,32], index: 10, kind: input, shape index: {}]
  %s11 = inlined_call_operand.vmem [shape: bf16[4,32,128], index: 11, kind: input, shape index: {}]
  %s12 = inlined_call_operand.vmem [shape: f32[1,128], index: 12, kind: input, shape index: {}]
  %s13 = inlined_call_operand.vmem [shape: f32[2,16,128], index: 13, kind: output, shape index: {}]
  %s14 = sld [smem:[#allocation0]]
  $region85: #{diffusion_transformer.9} parent=0
    _
  %s16 = ssub.s32 1, %s14
  %s17 = scalar_select 0, %s16, %s14
  loop: start=0, step=1, limit=4
  $region2: #{diffusion_transformer.9} parent=0 // loop_pre_header
    _
  $region3: #{diffusion_transformer.9} parent=0 // loop_header
    %s19 = sphi 0, %s23
    %p20 = scmp.ge.s32.totalorder %s19, 4
    %s29 = sphi 0, %s31
    %s32 = sphi 0, %s29
    %s33 = sphi 0, %s32
    %s49 = sphi 0, %s33
    %s53 = sphi 0, %s53
    %s55 = sphi 0, %s53
    %s56 = sphi 0, %s55
    %s70 = sphi 0, %s56
    %s74 = sphi 0, %s74
    %s76 = sphi 0, %s74
    %s77 = sphi 0, %s76
    %s91 = sphi 0, %s77
    %s95 = sphi 0, %s95
    %s97 = sphi 0, %s95
    %s98 = sphi 0, %s97
    %s112 = sphi 0, %s98
    %s116 = sphi 0, %s116
    %s118 = sphi 0, %s116
    %s119 = sphi 0, %s118
    %s133 = sphi 0, %s119
    %s137 = sphi 0, %s137
    %s139 = sphi 0, %s137
    %s140 = sphi 0, %s139
    %s154 = sphi 0, %s140
    %s158 = sphi 0, %s158
    %s160 = sphi 0, %s158
    %s161 = sphi 0, %s160
    %s175 = sphi 0, %s161
    %s179 = sphi 0, %s179
    %s181 = sphi 0, %s179
    %s182 = sphi 0, %s181
    %s196 = sphi 0, %s182
    %s200 = sphi 0, %s200
    %s202 = sphi 0, %s200
    %s203 = sphi 0, %s202
    %s217 = sphi 0, %s203
    %s221 = sphi 0, %s221
    %s223 = sphi 0, %s221
    %s224 = sphi 0, %s223
    %s238 = sphi 0, %s224
    %s242 = sphi 0, %s242
    %s244 = sphi 0, %s242
    %s245 = sphi 0, %s244
    %s259 = sphi 0, %s245
    %s263 = sphi 0, %s263
    %s265 = sphi 0, %s263
    %s266 = sphi 0, %s265
    %s280 = sphi 0, %s266
    %s284 = sphi 0, %s284
    %s286 = sphi 0, %s284
    %s287 = sphi 0, %s286
    %s301 = sphi 0, %s287
    %s307 = sphi 0, %s309
    %s310 = sphi 0, %s307
    %s311 = sphi 0, %s310
    %s327 = sphi 0, %s311
  $region4: #{diffusion_transformer.9} parent=0 // loop_header_branch
    %22 = sbr.rel (%p20) target = $region8
  $region5: #{diffusion_transformer.9} parent=0 // loop_body
    %s24 = ssub.s32 %s19, 1
    %s25 = ssub.s32 %s19, 2
    %s26 = sadd.s32 %s19, 1
    %s27 = ssub.s32 %s19, %s26
    %p28 = scmp.eq.s32.totalorder %s27, 0
    %s30 = sadd.s32 %s29, 1
    %s31 = scalar_select %p28, %s29, %s30
    %p34 = pneg %p28
    %p35 = scmp.eq.s32.totalorder %s19, 1
    %p36 = por %p34, %p35
    %p37 = scmp.ne.s32.totalorder %s29, %s32
    %p38 = scmp.eq.s32.totalorder %s19, 0
    %p39 = por %p37, %p38
    %p40 = scmp.ne.s32.totalorder %s29, %s32
    %p41 = scmp.eq.s32.totalorder %s24, 1
    %p42 = por %p40, %p41
    %p43 = scmp.ne.s32.totalorder %s32, %s33
    %p44 = scmp.eq.s32.totalorder %s24, 0
    %p45 = por %p43, %p44
    %p46 = scmp.ne.s32.totalorder %s32, %s33
    %p47 = scmp.eq.s32.totalorder %s25, 1
    %p48 = por %p46, %p47
    %p50 = scmp.ne.s32.totalorder %s33, %s49
    %p51 = scmp.eq.s32.totalorder %s25, 0
    %p52 = por %p50, %p51
    %s54 = sadd.s32 %s53, 1
    %p57 = scmp.eq.s32.totalorder %s19, 1
    %p58 = scmp.ne.s32.totalorder %s53, %s55
    %p59 = scmp.eq.s32.totalorder %s19, 0
    %p60 = por %p58, %p59
    %p61 = scmp.ne.s32.totalorder %s53, %s55
    %p62 = scmp.eq.s32.totalorder %s24, 1
    %p63 = por %p61, %p62
    %p64 = scmp.ne.s32.totalorder %s55, %s56
    %p65 = scmp.eq.s32.totalorder %s24, 0
    %p66 = por %p64, %p65
    %p67 = scmp.ne.s32.totalorder %s55, %s56
    %p68 = scmp.eq.s32.totalorder %s25, 1
    %p69 = por %p67, %p68
    %p71 = scmp.ne.s32.totalorder %s56, %s70
    %p72 = scmp.eq.s32.totalorder %s25, 0
    %p73 = por %p71, %p72
    %s75 = sadd.s32 %s74, 1
    %p78 = scmp.eq.s32.totalorder %s19, 1
    %p79 = scmp.ne.s32.totalorder %s74, %s76
    %p80 = scmp.eq.s32.totalorder %s19, 0
    %p81 = por %p79, %p80
    %p82 = scmp.ne.s32.totalorder %s74, %s76
    %p83 = scmp.eq.s32.totalorder %s24, 1
    %p84 = por %p82, %p83
    %p85 = scmp.ne.s32.totalorder %s76, %s77
    %p86 = scmp.eq.s32.totalorder %s24, 0
    %p87 = por %p85, %p86
    %p88 = scmp.ne.s32.totalorder %s76, %s77
    %p89 = scmp.eq.s32.totalorder %s25, 1
    %p90 = por %p88, %p89
    %p92 = scmp.ne.s32.totalorder %s77, %s91
    %p93 = scmp.eq.s32.totalorder %s25, 0
    %p94 = por %p92, %p93
    %s96 = sadd.s32 %s95, 1
    %p99 = scmp.eq.s32.totalorder %s19, 1
    %p100 = scmp.ne.s32.totalorder %s95, %s97
    %p101 = scmp.eq.s32.totalorder %s19, 0
    %p102 = por %p100, %p101
    %p103 = scmp.ne.s32.totalorder %s95, %s97
    %p104 = scmp.eq.s32.totalorder %s24, 1
    %p105 = por %p103, %p104
    %p106 = scmp.ne.s32.totalorder %s97, %s98
    %p107 = scmp.eq.s32.totalorder %s24, 0
    %p108 = por %p106, %p107
    %p109 = scmp.ne.s32.totalorder %s97, %s98
    %p110 = scmp.eq.s32.totalorder %s25, 1
    %p111 = por %p109, %p110
    %p113 = scmp.ne.s32.totalorder %s98, %s112
    %p114 = scmp.eq.s32.totalorder %s25, 0
    %p115 = por %p113, %p114
    %s117 = sadd.s32 %s116, 1
    %p120 = scmp.eq.s32.totalorder %s19, 1
    %p121 = scmp.ne.s32.totalorder %s116, %s118
    %p122 = scmp.eq.s32.totalorder %s19, 0
    %p123 = por %p121, %p122
    %p124 = scmp.ne.s32.totalorder %s116, %s118
    %p125 = scmp.eq.s32.totalorder %s24, 1
    %p126 = por %p124, %p125
    %p127 = scmp.ne.s32.totalorder %s118, %s119
    %p128 = scmp.eq.s32.totalorder %s24, 0
    %p129 = por %p127, %p128
    %p130 = scmp.ne.s32.totalorder %s118, %s119
    %p131 = scmp.eq.s32.totalorder %s25, 1
    %p132 = por %p130, %p131
    %p134 = scmp.ne.s32.totalorder %s119, %s133
    %p135 = scmp.eq.s32.totalorder %s25, 0
    %p136 = por %p134, %p135
    %s138 = sadd.s32 %s137, 1
    %p141 = scmp.eq.s32.totalorder %s19, 1
    %p142 = scmp.ne.s32.totalorder %s137, %s139
    %p143 = scmp.eq.s32.totalorder %s19, 0
    %p144 = por %p142, %p143
    %p145 = scmp.ne.s32.totalorder %s137, %s139
    %p146 = scmp.eq.s32.totalorder %s24, 1
    %p147 = por %p145, %p146
    %p148 = scmp.ne.s32.totalorder %s139, %s140
    %p149 = scmp.eq.s32.totalorder %s24, 0
    %p150 = por %p148, %p149
    %p151 = scmp.ne.s32.totalorder %s139, %s140
    %p152 = scmp.eq.s32.totalorder %s25, 1
    %p153 = por %p151, %p152
    %p155 = scmp.ne.s32.totalorder %s140, %s154
    %p156 = scmp.eq.s32.totalorder %s25, 0
    %p157 = por %p155, %p156
    %s159 = sadd.s32 %s158, 1
    %p162 = scmp.eq.s32.totalorder %s19, 1
    %p163 = scmp.ne.s32.totalorder %s158, %s160
    %p164 = scmp.eq.s32.totalorder %s19, 0
    %p165 = por %p163, %p164
    %p166 = scmp.ne.s32.totalorder %s158, %s160
    %p167 = scmp.eq.s32.totalorder %s24, 1
    %p168 = por %p166, %p167
    %p169 = scmp.ne.s32.totalorder %s160, %s161
    %p170 = scmp.eq.s32.totalorder %s24, 0
    %p171 = por %p169, %p170
    %p172 = scmp.ne.s32.totalorder %s160, %s161
    %p173 = scmp.eq.s32.totalorder %s25, 1
    %p174 = por %p172, %p173
    %p176 = scmp.ne.s32.totalorder %s161, %s175
    %p177 = scmp.eq.s32.totalorder %s25, 0
    %p178 = por %p176, %p177
    %s180 = sadd.s32 %s179, 1
    %p183 = scmp.eq.s32.totalorder %s19, 1
    %p184 = scmp.ne.s32.totalorder %s179, %s181
    %p185 = scmp.eq.s32.totalorder %s19, 0
    %p186 = por %p184, %p185
    %p187 = scmp.ne.s32.totalorder %s179, %s181
    %p188 = scmp.eq.s32.totalorder %s24, 1
    %p189 = por %p187, %p188
    %p190 = scmp.ne.s32.totalorder %s181, %s182
    %p191 = scmp.eq.s32.totalorder %s24, 0
    %p192 = por %p190, %p191
    %p193 = scmp.ne.s32.totalorder %s181, %s182
    %p194 = scmp.eq.s32.totalorder %s25, 1
    %p195 = por %p193, %p194
    %p197 = scmp.ne.s32.totalorder %s182, %s196
    %p198 = scmp.eq.s32.totalorder %s25, 0
    %p199 = por %p197, %p198
    %s201 = sadd.s32 %s200, 1
    %p204 = scmp.eq.s32.totalorder %s19, 1
    %p205 = scmp.ne.s32.totalorder %s200, %s202
    %p206 = scmp.eq.s32.totalorder %s19, 0
    %p207 = por %p205, %p206
    %p208 = scmp.ne.s32.totalorder %s200, %s202
    %p209 = scmp.eq.s32.totalorder %s24, 1
    %p210 = por %p208, %p209
    %p211 = scmp.ne.s32.totalorder %s202, %s203
    %p212 = scmp.eq.s32.totalorder %s24, 0
    %p213 = por %p211, %p212
    %p214 = scmp.ne.s32.totalorder %s202, %s203
    %p215 = scmp.eq.s32.totalorder %s25, 1
    %p216 = por %p214, %p215
    %p218 = scmp.ne.s32.totalorder %s203, %s217
    %p219 = scmp.eq.s32.totalorder %s25, 0
    %p220 = por %p218, %p219
    %s222 = sadd.s32 %s221, 1
    %p225 = scmp.eq.s32.totalorder %s19, 1
    %p226 = scmp.ne.s32.totalorder %s221, %s223
    %p227 = scmp.eq.s32.totalorder %s19, 0
    %p228 = por %p226, %p227
    %p229 = scmp.ne.s32.totalorder %s221, %s223
    %p230 = scmp.eq.s32.totalorder %s24, 1
    %p231 = por %p229, %p230
    %p232 = scmp.ne.s32.totalorder %s223, %s224
    %p233 = scmp.eq.s32.totalorder %s24, 0
    %p234 = por %p232, %p233
    %p235 = scmp.ne.s32.totalorder %s223, %s224
    %p236 = scmp.eq.s32.totalorder %s25, 1
    %p237 = por %p235, %p236
    %p239 = scmp.ne.s32.totalorder %s224, %s238
    %p240 = scmp.eq.s32.totalorder %s25, 0
    %p241 = por %p239, %p240
    %s243 = sadd.s32 %s242, 1
    %p246 = scmp.eq.s32.totalorder %s19, 1
    %p247 = scmp.ne.s32.totalorder %s242, %s244
    %p248 = scmp.eq.s32.totalorder %s19, 0
    %p249 = por %p247, %p248
    %p250 = scmp.ne.s32.totalorder %s242, %s244
    %p251 = scmp.eq.s32.totalorder %s24, 1
    %p252 = por %p250, %p251
    %p253 = scmp.ne.s32.totalorder %s244, %s245
    %p254 = scmp.eq.s32.totalorder %s24, 0
    %p255 = por %p253, %p254
    %p256 = scmp.ne.s32.totalorder %s244, %s245
    %p257 = scmp.eq.s32.totalorder %s25, 1
    %p258 = por %p256, %p257
    %p260 = scmp.ne.s32.totalorder %s245, %s259
    %p261 = scmp.eq.s32.totalorder %s25, 0
    %p262 = por %p260, %p261
    %s264 = sadd.s32 %s263, 1
    %p267 = scmp.eq.s32.totalorder %s19, 1
    %p268 = scmp.ne.s32.totalorder %s263, %s265
    %p269 = scmp.eq.s32.totalorder %s19, 0
    %p270 = por %p268, %p269
    %p271 = scmp.ne.s32.totalorder %s263, %s265
    %p272 = scmp.eq.s32.totalorder %s24, 1
    %p273 = por %p271, %p272
    %p274 = scmp.ne.s32.totalorder %s265, %s266
    %p275 = scmp.eq.s32.totalorder %s24, 0
    %p276 = por %p274, %p275
    %p277 = scmp.ne.s32.totalorder %s265, %s266
    %p278 = scmp.eq.s32.totalorder %s25, 1
    %p279 = por %p277, %p278
    %p281 = scmp.ne.s32.totalorder %s266, %s280
    %p282 = scmp.eq.s32.totalorder %s25, 0
    %p283 = por %p281, %p282
    %s285 = sadd.s32 %s284, 1
    %p288 = scmp.eq.s32.totalorder %s19, 1
    %p289 = scmp.ne.s32.totalorder %s284, %s286
    %p290 = scmp.eq.s32.totalorder %s19, 0
    %p291 = por %p289, %p290
    %p292 = scmp.ne.s32.totalorder %s284, %s286
    %p293 = scmp.eq.s32.totalorder %s24, 1
    %p294 = por %p292, %p293
    %p295 = scmp.ne.s32.totalorder %s286, %s287
    %p296 = scmp.eq.s32.totalorder %s24, 0
    %p297 = por %p295, %p296
    %p298 = scmp.ne.s32.totalorder %s286, %s287
    %p299 = scmp.eq.s32.totalorder %s25, 1
    %p300 = por %p298, %p299
    %p302 = scmp.ne.s32.totalorder %s287, %s301
    %p303 = scmp.eq.s32.totalorder %s25, 0
    %p304 = por %p302, %p303
    %s305 = ssub.s32 %s19, %s26
    %p306 = scmp.eq.s32.totalorder %s305, 0
    %s308 = sadd.s32 %s307, 1
    %s309 = scalar_select %p306, %s307, %s308
    %p312 = pneg %p306
    %p313 = scmp.eq.s32.totalorder %s19, 1
    %p314 = por %p312, %p313
    %p315 = scmp.ne.s32.totalorder %s307, %s310
    %p316 = scmp.eq.s32.totalorder %s19, 0
    %p317 = por %p315, %p316
    %p318 = scmp.ne.s32.totalorder %s307, %s310
    %p319 = scmp.eq.s32.totalorder %s24, 1
    %p320 = por %p318, %p319
    %p321 = scmp.ne.s32.totalorder %s310, %s311
    %p322 = scmp.eq.s32.totalorder %s24, 0
    %p323 = por %p321, %p322
    %p324 = scmp.ne.s32.totalorder %s310, %s311
    %p325 = scmp.eq.s32.totalorder %s25, 1
    %p326 = por %p324, %p325
    %p328 = scmp.ne.s32.totalorder %s311, %s327
    %p329 = scmp.eq.s32.totalorder %s25, 0
    %p330 = por %p328, %p329
    %p331 = scmp.le.s32.totalorder 1, %s19
    %p332 = scmp.lt.s32.totalorder %s19, 3
    %p333 = pnand %p331, %p332
    %p334 = pneg %p333
    // Predicated region
    $region9: #{diffusion_transformer.9} parent=5 // pred_check
      _
    $region10: #{diffusion_transformer.9} parent=5 // pred_check_branch
      %336 = sbr.rel (%p333) target = $region12
    $region11: #{diffusion_transformer.9} parent=5 // pred_region
      %s337 = ssub.s32 %s19, 1
      // Predicated region
      $region13: #{diffusion_transformer.9} parent=11 // pred_check
        %p338 = pneg %p66
      $region14: #{diffusion_transformer.9} parent=11 // pred_check_branch
        %340 = sbr.rel (%p338) target = $region16
      $region15: #{diffusion_transformer.9} parent=11 // pred_region
        _
      $region16: #{diffusion_transformer.9} parent=11 // pred_fallthru
        _
      // Predicated region
      $region17: #{diffusion_transformer.9} parent=11 // pred_check
        %p341 = pneg %p87
      $region18: #{diffusion_transformer.9} parent=11 // pred_check_branch
        %343 = sbr.rel (%p341) target = $region20
      $region19: #{diffusion_transformer.9} parent=11 // pred_region
        _
      $region20: #{diffusion_transformer.9} parent=11 // pred_fallthru
        _
      // Predicated region
      $region21: #{diffusion_transformer.9} parent=11 // pred_check
        %p344 = pneg %p108
      $region22: #{diffusion_transformer.9} parent=11 // pred_check_branch
        %346 = sbr.rel (%p344) target = $region24
      $region23: #{diffusion_transformer.9} parent=11 // pred_region
        _
      $region24: #{diffusion_transformer.9} parent=11 // pred_fallthru
        _
      // Predicated region
      $region25: #{diffusion_transformer.9} parent=11 // pred_check
        %p347 = pneg %p129
      $region26: #{diffusion_transformer.9} parent=11 // pred_check_branch
        %349 = sbr.rel (%p347) target = $region28
      $region27: #{diffusion_transformer.9} parent=11 // pred_region
        _
      $region28: #{diffusion_transformer.9} parent=11 // pred_fallthru
        _
      // Predicated region
      $region29: #{diffusion_transformer.9} parent=11 // pred_check
        %p350 = pneg %p150
      $region30: #{diffusion_transformer.9} parent=11 // pred_check_branch
        %352 = sbr.rel (%p350) target = $region32
      $region31: #{diffusion_transformer.9} parent=11 // pred_region
        _
      $region32: #{diffusion_transformer.9} parent=11 // pred_fallthru
        _
      // Predicated region
      $region33: #{diffusion_transformer.9} parent=11 // pred_check
        %p353 = pneg %p171
      $region34: #{diffusion_transformer.9} parent=11 // pred_check_branch
        %355 = sbr.rel (%p353) target = $region36
      $region35: #{diffusion_transformer.9} parent=11 // pred_region
        _
      $region36: #{diffusion_transformer.9} parent=11 // pred_fallthru
        _
      // Predicated region
      $region37: #{diffusion_transformer.9} parent=11 // pred_check
        %p356 = pneg %p192
      $region38: #{diffusion_transformer.9} parent=11 // pred_check_branch
        %358 = sbr.rel (%p356) target = $region40
      $region39: #{diffusion_transformer.9} parent=11 // pred_region
        _
      $region40: #{diffusion_transformer.9} parent=11 // pred_fallthru
        _
      // Predicated region
      $region41: #{diffusion_transformer.9} parent=11 // pred_check
        %p359 = pneg %p213
      $region42: #{diffusion_transformer.9} parent=11 // pred_check_branch
        %361 = sbr.rel (%p359) target = $region44
      $region43: #{diffusion_transformer.9} parent=11 // pred_region
        _
      $region44: #{diffusion_transformer.9} parent=11 // pred_fallthru
        _
      // Predicated region
      $region45: #{diffusion_transformer.9} parent=11 // pred_check
        %p362 = pneg %p234
      $region46: #{diffusion_transformer.9} parent=11 // pred_check_branch
        %364 = sbr.rel (%p362) target = $region48
      $region47: #{diffusion_transformer.9} parent=11 // pred_region
        _
      $region48: #{diffusion_transformer.9} parent=11 // pred_fallthru
        _
      // Predicated region
      $region49: #{diffusion_transformer.9} parent=11 // pred_check
        %p365 = pneg %p255
      $region50: #{diffusion_transformer.9} parent=11 // pred_check_branch
        %367 = sbr.rel (%p365) target = $region52
      $region51: #{diffusion_transformer.9} parent=11 // pred_region
        _
      $region52: #{diffusion_transformer.9} parent=11 // pred_fallthru
        _
      // Predicated region
      $region53: #{diffusion_transformer.9} parent=11 // pred_check
        %p368 = pneg %p276
      $region54: #{diffusion_transformer.9} parent=11 // pred_check_branch
        %370 = sbr.rel (%p368) target = $region56
      $region55: #{diffusion_transformer.9} parent=11 // pred_region
        _
      $region56: #{diffusion_transformer.9} parent=11 // pred_fallthru
        _
      // Predicated region
      $region57: #{diffusion_transformer.9} parent=11 // pred_check
        %p371 = pneg %p297
      $region58: #{diffusion_transformer.9} parent=11 // pred_check_branch
        %373 = sbr.rel (%p371) target = $region60
      $region59: #{diffusion_transformer.9} parent=11 // pred_region
        _
      $region60: #{diffusion_transformer.9} parent=11 // pred_fallthru
        _
    $region12: #{diffusion_transformer.9} parent=5 // pred_fallthru
      _
    %p374 = scmp.lt.s32.totalorder %s19, 2
    // Predicated region
    $region61: #{diffusion_transformer.9} parent=5 // pred_check
      %p375 = pneg %p374
    $region62: #{diffusion_transformer.9} parent=5 // pred_check_branch
      %377 = sbr.rel (%p375) target = $region64
    $region63: #{diffusion_transformer.9} parent=5 // pred_region
      // Predicated region
      $region65: #{diffusion_transformer.9} parent=63 // pred_check
        %p378 = pneg %p39
      $region66: #{diffusion_transformer.9} parent=63 // pred_check_branch
        %380 = sbr.rel (%p378) target = $region68
      $region67: #{diffusion_transformer.9} parent=63 // pred_region
        %p381 = scmp.lt.s32.totalorder %s19, 1
        %s382 = scalar_select %p381, %s19, 1
        %s383 = smul.addr %s382, 2
        %s384 = smul.addr %s383, 8
        %s385 = scalar_lea.vmem %s0, %s384
      $region68: #{diffusion_transformer.9} parent=63 // pred_fallthru
        _
    $region64: #{diffusion_transformer.9} parent=5 // pred_fallthru
      _
    %p386 = scmp.le.s32.totalorder 1, %s19
    %p387 = scmp.lt.s32.totalorder %s19, 3
    %p388 = pnand %p386, %p387
    %p389 = pneg %p388
    // Predicated region
    $region69: #{diffusion_transformer.9} parent=5 // pred_check
      _
    $region70: #{diffusion_transformer.9} parent=5 // pred_check_branch
      %391 = sbr.rel (%p388) target = $region72
    $region71: #{diffusion_transformer.9} parent=5 // pred_region
      %s392 = ssub.s32 %s19, 1
      %p393 = scmp.lt.s32.totalorder %s24, 1
      %s394 = scalar_select %p393, %s24, 1
      %s395 = smul.addr %s394, 2
      %s396 = smul.addr %s395, 8
      %s397 = scalar_lea.vmem %s0, %s396
      %p398 = pneg %p45
      %p399 = pneg %p42
      %p400 = pneg %p66
      %p401 = pneg %p63
      %p402 = pneg %p87
      %p403 = pneg %p84
      %p404 = pneg %p108
      %p405 = pneg %p105
      %p406 = pneg %p129
      %p407 = pneg %p126
      %p408 = pneg %p150
      %p409 = pneg %p147
      %p410 = pneg %p171
      %p411 = pneg %p168
      %p412 = pneg %p192
      %p413 = pneg %p189
      %p414 = pneg %p213
      %p415 = pneg %p210
      %p416 = pneg %p234
      %p417 = pneg %p231
      %p418 = pneg %p255
      %p419 = pneg %p252
      %p420 = pneg %p276
      %p421 = pneg %p273
      %p422 = pneg %p297
      %p423 = pneg %p294
      %p424 = pneg %p323
      %p425 = pneg %p320
      %p426 = scmp.lt.s32.totalorder %s24, 1
      %s427 = scalar_select %p426, %s24, 1
      %s428 = smul.addr %s427, 2
      %s429 = smul.addr %s428, 8
      %s430 = scalar_lea.vmem %s13, %s429
      %p431 = scmp.lt.s32.totalorder %s24, 1
      %s432 = scalar_select %p431, %s24, 1
      %s433 = smul.addr %s432, 2
      %s434 = smul.addr %s433, 8
      %s435 = scalar_lea.vmem %s0, %s434
      %p436 = scmp.lt.s32.totalorder %s24, 1
      %s437 = scalar_select %p436, %s24, 1
      %s438 = smul.addr %s437, 2
      %s439 = smul.addr %s438, 8
      %s440 = scalar_lea.vmem %s13, %s439
      %v442 = vld [vmem:[%s435] sm:$0xff]
      %v443 = vld [vmem:[%s435 + $0x8] sm:$0xff]
      %v444 = vld [vmem:[%s1] sm:$0x1]
      %v445 = vld [vmem:[%s2] sm:$0x1]
      %446 = vadd.xlane.f32.xlu0 %v442
      %v447 = vpop.xlane.xlu0 %446
      %448 = vadd.xlane.f32.xlu0 %v443
      %v449 = vpop.xlane.xlu0 %448
      %v450 = vrcp.pop 128.0
      %v451 = vmul.f32 %v447, %v450
      %v452 = vmul.f32 %v449, %v450
      %v453 = vsub.f32 %v442, %v451
      %v454 = vsub.f32 %v443, %v452
      %v455 = vmul.f32 %v453, %v453
      %v456 = vmul.f32 %v454, %v454
      %457 = vadd.xlane.f32.xlu0 %v455
      %v458 = vpop.xlane.xlu0 %457
      %459 = vadd.xlane.f32.xlu0 %v456
      %v460 = vpop.xlane.xlu0 %459
      %v461 = vmul.f32 %v458, %v450
      %v462 = vmul.f32 %v460, %v450
      %v463 = vadd.f32 %v461, 1e-05
      %v464 = vadd.f32 %v462, 1e-05
      %v465 = vrsqrt.pop %v463
      %v466 = vrsqrt.pop %v464
      %v467 = vmul.f32 %v453, %v465
      %v468 = vmul.f32 %v454, %v466
      %v470 = vlaneseq
      %v471 = vshrl.u32 %v470, 7
      %v472 = vsub.s32 0, %v471
      %v473 = vrot.slane %v444, %v472
      %v475 = vmul.f32 %v467, %v473
      %v476 = vmul.f32 %v468, %v473
      %v478 = vlaneseq
      %v479 = vshrl.u32 %v478, 7
      %v480 = vsub.s32 0, %v479
      %v481 = vrot.slane %v445, %v480
      %v483 = vadd.f32 %v475, %v481
      %v484 = vadd.f32 %v476, %v481
      %v485 = vld [vmem:[%s3] sm:$0x1]
      %v486 = vld [vmem:[%s4] sm:$0x1]
      %487 = vadd.xlane.f32.xlu0 %v483
      %v488 = vpop.xlane.xlu0 %487
      %489 = vadd.xlane.f32.xlu0 %v484
      %v490 = vpop.xlane.xlu0 %489
      %v491 = vmul.f32 %v488, %v450
      %v492 = vmul.f32 %v490, %v450
      %v493 = vsub.f32 %v483, %v491
      %v494 = vsub.f32 %v484, %v492
      %v495 = vmul.f32 %v493, %v493
      %v496 = vmul.f32 %v494, %v494
      %497 = vadd.xlane.f32.xlu0 %v495
      %v498 = vpop.xlane.xlu0 %497
      %499 = vadd.xlane.f32.xlu0 %v496
      %v500 = vpop.xlane.xlu0 %499
      %v501 = vmul.f32 %v498, %v450
      %v502 = vmul.f32 %v500, %v450
      %v503 = vadd.f32 %v501, 1e-05
      %v504 = vadd.f32 %v502, 1e-05
      %v505 = vrsqrt.pop %v503
      %v506 = vrsqrt.pop %v504
      %v507 = vmul.f32 %v493, %v505
      %v508 = vmul.f32 %v494, %v506
      %v510 = vlaneseq
      %v511 = vshrl.u32 %v510, 7
      %v512 = vsub.s32 0, %v511
      %v513 = vrot.slane %v485, %v512
      %v515 = vmul.f32 %v507, %v513
      %v516 = vmul.f32 %v508, %v513
      %v518 = vlaneseq
      %v519 = vshrl.u32 %v518, 7
      %v520 = vsub.s32 0, %v519
      %v521 = vrot.slane %v486, %v520
      %v523 = vadd.f32 %v515, %v521
      %v524 = vadd.f32 %v516, %v521
      %v525 = vpack.c.bf16 %v524, %v523
      %v526 = vld [vmem:[%s5] sm:$0xf]
      %v527 = vld [vmem:[%s5 + $0x4] sm:$0xf]
      %v528 = vld [vmem:[%s5 + $0x8] sm:$0xf]
      %v529 = vld [vmem:[%s5 + $0xc] sm:$0xf]
      %v530 = vld [vmem:[%s5 + $0x10] sm:$0xf]
      %v531 = vld [vmem:[%s5 + $0x14] sm:$0xf]
      %v532 = vld [vmem:[%s5 + $0x18] sm:$0xf]
      %v533 = vld [vmem:[%s5 + $0x1c] sm:$0xf]
      %v534 = vld [vmem:[%s5 + $0x20] sm:$0xf]
      %v535 = vld [vmem:[%s5 + $0x24] sm:$0xf]
      %v536 = vld [vmem:[%s5 + $0x28] sm:$0xf]
      %v537 = vld [vmem:[%s5 + $0x2c] sm:$0xf]
      %v538 = vld [vmem:[%s5 + $0x30] sm:$0xf]
      %v539 = vld [vmem:[%s5 + $0x34] sm:$0xf]
      %v540 = vld [vmem:[%s5 + $0x38] sm:$0xf]
      %v541 = vld [vmem:[%s5 + $0x3c] sm:$0xf]
      %v542 = vld [vmem:[%s8] sm:$0x1]
      %v544 = vlaneseq
      %v545 = vshrl.u32 %v544, 7
      %v546 = vsub.s32 0, %v545
      %v547 = vrot.slane %v542, %v546
      %v565 = vunpack.c.l.b16 %v526
      %v566 = vunpack.c.l.b16 %v527
      %v567 = vunpack.c.l.b16 %v528
      %v568 = vunpack.c.l.b16 %v529
      %v569 = vunpack.c.l.b16 %v530
      %v570 = vunpack.c.l.b16 %v531
      %v571 = vunpack.c.l.b16 %v532
      %v572 = vunpack.c.l.b16 %v533
      %v573 = vunpack.c.l.b16 %v534
      %v574 = vunpack.c.l.b16 %v535
      %v575 = vunpack.c.l.b16 %v536
      %v576 = vunpack.c.l.b16 %v537
      %v577 = vunpack.c.l.b16 %v538
      %v578 = vunpack.c.l.b16 %v539
      %v579 = vunpack.c.l.b16 %v540
      %v580 = vunpack.c.l.b16 %v541
      %v581 = vpack.c.b16 %v566, %v565
      %v582 = vpack.c.b16 %v568, %v567
      %v583 = vpack.c.b16 %v570, %v569
      %v584 = vpack.c.b16 %v572, %v571
      %v585 = vpack.c.b16 %v574, %v573
      %v586 = vpack.c.b16 %v576, %v575
      %v587 = vpack.c.b16 %v578, %v577
      %v588 = vpack.c.b16 %v580, %v579
      %597 = vmatprep.subr.bf16.mxu0 0
      %598 = vmatpush1.bf16.msra.mxu0 %v588
      %599 = vmatprep.subr.bf16.mxu0 0
      %600 = vmatpush1.bf16.msra.mxu0 %v587
      %601 = vmatprep.subr.bf16.mxu0 0
      %602 = vmatpush1.bf16.msra.mxu0 %v586
      %603 = vmatprep.subr.bf16.mxu0 0
      %604 = vmatpush1.bf16.msra.mxu0 %v585
      %605 = vmatprep.subr.bf16.mxu0 0
      %606 = vmatpush1.bf16.msra.mxu0 %v584
      %607 = vmatprep.subr.bf16.mxu0 0
      %608 = vmatpush1.bf16.msra.mxu0 %v583
      %609 = vmatprep.subr.bf16.mxu0 0
      %610 = vmatpush1.bf16.msra.mxu0 %v582
      %611 = vmatprep.subr.bf16.mxu0 0
      %612 = vmatpush1.bf16.msra.mxu0 %v581
      %613 = vmatprep.subr.bf16.mxu0 0
      %614 = vmatpush2.bf16.msra.mxu0 0
      %615 = vmatprep.subr.bf16.mxu0 0
      %616 = vmatpush2.bf16.msra.mxu0 0
      %617 = vmatprep.subr.bf16.mxu0 0
      %618 = vmatpush2.bf16.msra.mxu0 0
      %619 = vmatprep.subr.bf16.mxu0 0
      %620 = vmatpush2.bf16.msra.mxu0 0
      %621 = vmatprep.subr.bf16.mxu0 0
      %622 = vmatpush2.bf16.msra.mxu0 0
      %623 = vmatprep.subr.bf16.mxu0 0
      %624 = vmatpush2.bf16.msra.mxu0 0
      %625 = vmatprep.subr.bf16.mxu0 0
      %626 = vmatpush2.bf16.msra.mxu0 0
      %627 = vmatprep.subr.bf16.mxu0 0
      %628 = vmatpush2.bf16.msra.mxu0 0
      %629 = vmatprep.mubr.bf16.mxu0 0
      %630 = vmatmul.mubr.bf16.gmra.mxu0 %v525
      %v631 = vpop.f32.mrf.mxu0
      %v632 = vadd.f32 %v547, %v631
      %v633 = vpop.f32.mrf.mxu0
      %v634 = vpop.f32.mrf.mxu0
      %v635 = vadd.f32 %v547, %v634
      %v636 = vpop.f32.mrf.mxu0
      %637 = vdwg.mxu0
      %v638 = vld [vmem:[%s6] sm:$0xf]
      %v639 = vld [vmem:[%s6 + $0x4] sm:$0xf]
      %v640 = vld [vmem:[%s6 + $0x8] sm:$0xf]
      %v641 = vld [vmem:[%s6 + $0xc] sm:$0xf]
      %v642 = vld [vmem:[%s6 + $0x10] sm:$0xf]
      %v643 = vld [vmem:[%s6 + $0x14] sm:$0xf]
      %v644 = vld [vmem:[%s6 + $0x18] sm:$0xf]
      %v645 = vld [vmem:[%s6 + $0x1c] sm:$0xf]
      %v646 = vld [vmem:[%s6 + $0x20] sm:$0xf]
      %v647 = vld [vmem:[%s6 + $0x24] sm:$0xf]
      %v648 = vld [vmem:[%s6 + $0x28] sm:$0xf]
      %v649 = vld [vmem:[%s6 + $0x2c] sm:$0xf]
      %v650 = vld [vmem:[%s6 + $0x30] sm:$0xf]
      %v651 = vld [vmem:[%s6 + $0x34] sm:$0xf]
      %v652 = vld [vmem:[%s6 + $0x38] sm:$0xf]
      %v653 = vld [vmem:[%s6 + $0x3c] sm:$0xf]
      %v654 = vld [vmem:[%s9] sm:$0x1]
      %v656 = vlaneseq
      %v657 = vshrl.u32 %v656, 7
      %v658 = vsub.s32 0, %v657
      %v659 = vrot.slane %v654, %v658
      %v677 = vunpack.c.l.b16 %v638
      %v678 = vunpack.c.l.b16 %v639
      %v679 = vunpack.c.l.b16 %v640
      %v680 = vunpack.c.l.b16 %v641
      %v681 = vunpack.c.l.b16 %v642
      %v682 = vunpack.c.l.b16 %v643
      %v683 = vunpack.c.l.b16 %v644
      %v684 = vunpack.c.l.b16 %v645
      %v685 = vunpack.c.l.b16 %v646
      %v686 = vunpack.c.l.b16 %v647
      %v687 = vunpack.c.l.b16 %v648
      %v688 = vunpack.c.l.b16 %v649
      %v689 = vunpack.c.l.b16 %v650
      %v690 = vunpack.c.l.b16 %v651
      %v691 = vunpack.c.l.b16 %v652
      %v692 = vunpack.c.l.b16 %v653
      %v693 = vpack.c.b16 %v678, %v677
      %v694 = vpack.c.b16 %v680, %v679
      %v695 = vpack.c.b16 %v682, %v681
      %v696 = vpack.c.b16 %v684, %v683
      %v697 = vpack.c.b16 %v686, %v685
      %v698 = vpack.c.b16 %v688, %v687
      %v699 = vpack.c.b16 %v690, %v689
      %v700 = vpack.c.b16 %v692, %v691
      %709 = vmatprep.subr.bf16.mxu0 0
      %710 = vmatpush1.bf16.msra.mxu0 %v700
      %711 = vmatprep.subr.bf16.mxu0 0
      %712 = vmatpush1.bf16.msra.mxu0 %v699
      %713 = vmatprep.subr.bf16.mxu0 0
      %714 = vmatpush1.bf16.msra.mxu0 %v698
      %715 = vmatprep.subr.bf16.mxu0 0
      %716 = vmatpush1.bf16.msra.mxu0 %v697
      %717 = vmatprep.subr.bf16.mxu0 0
      %718 = vmatpush1.bf16.msra.mxu0 %v696
      %719 = vmatprep.subr.bf16.mxu0 0
      %720 = vmatpush1.bf16.msra.mxu0 %v695
      %721 = vmatprep.subr.bf16.mxu0 0
      %722 = vmatpush1.bf16.msra.mxu0 %v694
      %723 = vmatprep.subr.bf16.mxu0 0
      %724 = vmatpush1.bf16.msra.mxu0 %v693
      %725 = vmatprep.subr.bf16.mxu0 0
      %726 = vmatpush2.bf16.msra.mxu0 0
      %727 = vmatprep.subr.bf16.mxu0 0
      %728 = vmatpush2.bf16.msra.mxu0 0
      %729 = vmatprep.subr.bf16.mxu0 0
      %730 = vmatpush2.bf16.msra.mxu0 0
      %731 = vmatprep.subr.bf16.mxu0 0
      %732 = vmatpush2.bf16.msra.mxu0 0
      %733 = vmatprep.subr.bf16.mxu0 0
      %734 = vmatpush2.bf16.msra.mxu0 0
      %735 = vmatprep.subr.bf16.mxu0 0
      %736 = vmatpush2.bf16.msra.mxu0 0
      %737 = vmatprep.subr.bf16.mxu0 0
      %738 = vmatpush2.bf16.msra.mxu0 0
      %739 = vmatprep.subr.bf16.mxu0 0
      %740 = vmatpush2.bf16.msra.mxu0 0
      %741 = vmatprep.mubr.bf16.mxu0 0
      %742 = vmatmul.mubr.bf16.gmra.mxu0 %v525
      %v743 = vpop.f32.mrf.mxu0
      %v744 = vadd.f32 %v659, %v743
      %v745 = vpop.f32.mrf.mxu0
      %v746 = vpop.f32.mrf.mxu0
      %v747 = vadd.f32 %v659, %v746
      %v748 = vpop.f32.mrf.mxu0
      %749 = vdwg.mxu0
      %v750 = vld [vmem:[%s7] sm:$0xf]
      %v751 = vld [vmem:[%s7 + $0x4] sm:$0xf]
      %v752 = vld [vmem:[%s7 + $0x8] sm:$0xf]
      %v753 = vld [vmem:[%s7 + $0xc] sm:$0xf]
      %v754 = vld [vmem:[%s7 + $0x10] sm:$0xf]
      %v755 = vld [vmem:[%s7 + $0x14] sm:$0xf]
      %v756 = vld [vmem:[%s7 + $0x18] sm:$0xf]
      %v757 = vld [vmem:[%s7 + $0x1c] sm:$0xf]
      %v758 = vld [vmem:[%s7 + $0x20] sm:$0xf]
      %v759 = vld [vmem:[%s7 + $0x24] sm:$0xf]
      %v760 = vld [vmem:[%s7 + $0x28] sm:$0xf]
      %v761 = vld [vmem:[%s7 + $0x2c] sm:$0xf]
      %v762 = vld [vmem:[%s7 + $0x30] sm:$0xf]
      %v763 = vld [vmem:[%s7 + $0x34] sm:$0xf]
      %v764 = vld [vmem:[%s7 + $0x38] sm:$0xf]
      %v765 = vld [vmem:[%s7 + $0x3c] sm:$0xf]
      %v766 = vld [vmem:[%s10] sm:$0x1]
      %v768 = vlaneseq
      %v769 = vshrl.u32 %v768, 7
      %v770 = vsub.s32 0, %v769
      %v771 = vrot.slane %v766, %v770
      %v789 = vunpack.c.l.b16 %v750
      %v790 = vunpack.c.l.b16 %v751
      %v791 = vunpack.c.l.b16 %v752
      %v792 = vunpack.c.l.b16 %v753
      %v793 = vunpack.c.l.b16 %v754
      %v794 = vunpack.c.l.b16 %v755
      %v795 = vunpack.c.l.b16 %v756
      %v796 = vunpack.c.l.b16 %v757
      %v797 = vunpack.c.l.b16 %v758
      %v798 = vunpack.c.l.b16 %v759
      %v799 = vunpack.c.l.b16 %v760
      %v800 = vunpack.c.l.b16 %v761
      %v801 = vunpack.c.l.b16 %v762
      %v802 = vunpack.c.l.b16 %v763
      %v803 = vunpack.c.l.b16 %v764
      %v804 = vunpack.c.l.b16 %v765
      %v805 = vpack.c.b16 %v790, %v789
      %v806 = vpack.c.b16 %v792, %v791
      %v807 = vpack.c.b16 %v794, %v793
      %v808 = vpack.c.b16 %v796, %v795
      %v809 = vpack.c.b16 %v798, %v797
      %v810 = vpack.c.b16 %v800, %v799
      %v811 = vpack.c.b16 %v802, %v801
      %v812 = vpack.c.b16 %v804, %v803
      %821 = vmatprep.subr.bf16.mxu0 0
      %822 = vmatpush1.bf16.msra.mxu0 %v812
      %823 = vmatprep.subr.bf16.mxu0 0
      %824 = vmatpush1.bf16.msra.mxu0 %v811
      %825 = vmatprep.subr.bf16.mxu0 0
      %826 = vmatpush1.bf16.msra.mxu0 %v810
      %827 = vmatprep.subr.bf16.mxu0 0
      %828 = vmatpush1.bf16.msra.mxu0 %v809
      %829 = vmatprep.subr.bf16.mxu0 0
      %830 = vmatpush1.bf16.msra.mxu0 %v808
      %831 = vmatprep.subr.bf16.mxu0 0
      %832 = vmatpush1.bf16.msra.mxu0 %v807
      %833 = vmatprep.subr.bf16.mxu0 0
      %834 = vmatpush1.bf16.msra.mxu0 %v806
      %835 = vmatprep.subr.bf16.mxu0 0
      %836 = vmatpush1.bf16.msra.mxu0 %v805
      %837 = vmatprep.subr.bf16.mxu0 0
      %838 = vmatpush2.bf16.msra.mxu0 0
      %839 = vmatprep.subr.bf16.mxu0 0
      %840 = vmatpush2.bf16.msra.mxu0 0
      %841 = vmatprep.subr.bf16.mxu0 0
      %842 = vmatpush2.bf16.msra.mxu0 0
      %843 = vmatprep.subr.bf16.mxu0 0
      %844 = vmatpush2.bf16.msra.mxu0 0
      %845 = vmatprep.subr.bf16.mxu0 0
      %846 = vmatpush2.bf16.msra.mxu0 0
      %847 = vmatprep.subr.bf16.mxu0 0
      %848 = vmatpush2.bf16.msra.mxu0 0
      %849 = vmatprep.subr.bf16.mxu0 0
      %850 = vmatpush2.bf16.msra.mxu0 0
      %851 = vmatprep.subr.bf16.mxu0 0
      %852 = vmatpush2.bf16.msra.mxu0 0
      %853 = vmatprep.mubr.bf16.mxu0 0
      %854 = vmatmul.mubr.bf16.gmra.mxu0 %v525
      %v855 = vpop.f32.mrf.mxu0
      %v856 = vadd.f32 %v771, %v855
      %v857 = vpop.f32.mrf.mxu0
      %v858 = vpop.f32.mrf.mxu0
      %v859 = vadd.f32 %v771, %v858
      %v860 = vpop.f32.mrf.mxu0
      %861 = vdwg.mxu0
      %v862 = vmul.f32 %v632, 0.17677669
      %v863 = vmul.f32 %v635, 0.17677669
      %v864 = vpack.c.bf16 %v863, %v862
      %v865 = vpack.c.bf16 %v747, %v744
      %vm866 = vcmask 261120
      %v868 = vsel %vm866, %v864, 0
      %v871 = vsel %vm866, %v865, 0
      %873 = vmatprep.subr.bf16.mxu0 0
      %874 = vmatpush1.bf16.xpose.msra.mxu0 0
      %875 = vmatprep.subr.bf16.mxu0 0
      %876 = vmatpush1.bf16.xpose.msra.mxu0 0
      %877 = vmatprep.subr.bf16.mxu0 0
      %878 = vmatpush1.bf16.xpose.msra.mxu0 0
      %879 = vmatprep.subr.bf16.mxu0 0
      %880 = vmatpush1.bf16.xpose.msra.mxu0 0
      %881 = vmatprep.subr.bf16.mxu0 0
      %882 = vmatpush1.bf16.xpose.msra.mxu0 0
      %883 = vmatprep.subr.bf16.mxu0 0
      %884 = vmatpush1.bf16.xpose.msra.mxu0 0
      %885 = vmatprep.subr.bf16.mxu0 0
      %886 = vmatpush1.bf16.xpose.msra.mxu0 0
      %887 = vmatprep.subr.bf16.mxu0 0
      %888 = vmatpush1.bf16.xpose.msra.mxu0 %v871
      %889 = vmatprep.subr.bf16.mxu0 0
      %890 = vmatpush2.bf16.xpose.msra.mxu0 0
      %891 = vmatprep.subr.bf16.mxu0 0
      %892 = vmatpush2.bf16.xpose.msra.mxu0 0
      %893 = vmatprep.subr.bf16.mxu0 0
      %894 = vmatpush2.bf16.xpose.msra.mxu0 0
      %895 = vmatprep.subr.bf16.mxu0 0
      %896 = vmatpush2.bf16.xpose.msra.mxu0 0
      %897 = vmatprep.subr.bf16.mxu0 0
      %898 = vmatpush2.bf16.xpose.msra.mxu0 0
      %899 = vmatprep.subr.bf16.mxu0 0
      %900 = vmatpush2.bf16.xpose.msra.mxu0 0
      %901 = vmatprep.subr.bf16.mxu0 0
      %902 = vmatpush2.bf16.xpose.msra.mxu0 0
      %903 = vmatprep.subr.bf16.mxu0 0
      %904 = vmatpush2.bf16.xpose.msra.mxu0 0
      %905 = vmatprep.mubr.bf16.mxu0 0
      %906 = vmatmul.mubr.bf16.gmra.mxu0 %v868
      %v907 = vpop.f32.mrf.mxu0
      %v908 = vadd.f32 0.0, %v907
      %v909 = vpop.f32.mrf.mxu0
      %v910 = vpop.f32.mrf.mxu0
      %v911 = vadd.f32 0.0, %v910
      %v912 = vpop.f32.mrf.mxu0
      %913 = vdwg.mxu0
      %vm914 = vcmask 130048
      %v915 = vsel %vm914, %v908, -inf
      %916 = vmax.xlane.f32.xlu0 %v915
      %v917 = vpop.xlane.xlu0 %916
      %v918 = vsel %vm914, %v911, -inf
      %919 = vmax.xlane.f32.xlu0 %v918
      %v920 = vpop.xlane.xlu0 %919
      %v921 = vsub.f32 %v908, %v917
      %v922 = vsub.f32 %v911, %v920
      %v923 = vmul.f32 %v921, 1.442695
      %v924 = vpow.pop %v923
      %v925 = vmul.f32 %v922, 1.442695
      %v926 = vpow.pop %v925
      %v927 = vsel %vm914, %v924, 0.0
      %928 = vadd.xlane.f32.xlu0 %v927
      %v929 = vpop.xlane.xlu0 %928
      %v930 = vsel %vm914, %v926, 0.0
      %931 = vadd.xlane.f32.xlu0 %v930
      %v932 = vpop.xlane.xlu0 %931
      %v933 = vrcp.pop %v929
      %v934 = vrcp.pop %v932
      %v935 = vmul.f32 %v924, %v933
      %v936 = vmul.f32 %v926, %v934
      %v937 = vpack.c.bf16 %v936, %v935
      %v938 = vpack.c.bf16 %v859, %v856
      %v940 = vsel %vm914, %v937, 0
      %942 = vmatprep.subr.bf16.mxu0 0
      %943 = vmatpush1.bf16.msra.mxu0 0
      %944 = vmatprep.subr.bf16.mxu0 0
      %945 = vmatpush1.bf16.msra.mxu0 0
      %946 = vmatprep.subr.bf16.mxu0 0
      %947 = vmatpush1.bf16.msra.mxu0 0
      %948 = vmatprep.subr.bf16.mxu0 0
      %949 = vmatpush1.bf16.msra.mxu0 0
      %950 = vmatprep.subr.bf16.mxu0 0
      %951 = vmatpush1.bf16.msra.mxu0 0
      %952 = vmatprep.subr.bf16.mxu0 0
      %953 = vmatpush1.bf16.msra.mxu0 0
      %954 = vmatprep.subr.bf16.mxu0 0
      %955 = vmatpush1.bf16.msra.mxu0 0
      %956 = vmatprep.subr.bf16.mxu0 0
      %957 = vmatpush1.bf16.msra.mxu0 %v938
      %958 = vmatprep.subr.bf16.mxu0 0
      %959 = vmatpush2.bf16.msra.mxu0 0
      %960 = vmatprep.subr.bf16.mxu0 0
      %961 = vmatpush2.bf16.msra.mxu0 0
      %962 = vmatprep.subr.bf16.mxu0 0
      %963 = vmatpush2.bf16.msra.mxu0 0
      %964 = vmatprep.subr.bf16.mxu0 0
      %965 = vmatpush2.bf16.msra.mxu0 0
      %966 = vmatprep.subr.bf16.mxu0 0
      %967 = vmatpush2.bf16.msra.mxu0 0
      %968 = vmatprep.subr.bf16.mxu0 0
      %969 = vmatpush2.bf16.msra.mxu0 0
      %970 = vmatprep.subr.bf16.mxu0 0
      %971 = vmatpush2.bf16.msra.mxu0 0
      %972 = vmatprep.subr.bf16.mxu0 0
      %973 = vmatpush2.bf16.msra.mxu0 0
      %974 = vmatprep.mubr.bf16.mxu0 0
      %975 = vmatmul.mubr.bf16.gmra.mxu0 %v940
      %v976 = vpop.f32.mrf.mxu0
      %v977 = vadd.f32 0.0, %v976
      %v978 = vpop.f32.mrf.mxu0
      %v979 = vpop.f32.mrf.mxu0
      %v980 = vadd.f32 0.0, %v979
      %v981 = vpop.f32.mrf.mxu0
      %982 = vdwg.mxu0
      %v983 = vpack.c.bf16 %v980, %v977
      %v984 = vld [vmem:[%s11] sm:$0xf]
      %v985 = vld [vmem:[%s11 + $0x4] sm:$0xf]
      %v986 = vld [vmem:[%s11 + $0x8] sm:$0xf]
      %v987 = vld [vmem:[%s11 + $0xc] sm:$0xf]
      %s988 = scalar_lea.vmem %s5, 64
      %v989 = vld [vmem:[%s988] sm:$0xf]
      %v990 = vld [vmem:[%s988 + $0x4] sm:$0xf]
      %v991 = vld [vmem:[%s988 + $0x8] sm:$0xf]
      %v992 = vld [vmem:[%s988 + $0xc] sm:$0xf]
      %v993 = vld [vmem:[%s988 + $0x10] sm:$0xf]
      %v994 = vld [vmem:[%s988 + $0x14] sm:$0xf]
      %v995 = vld [vmem:[%s988 + $0x18] sm:$0xf]
      %v996 = vld [vmem:[%s988 + $0x1c] sm:$0xf]
      %v997 = vld [vmem:[%s988 + $0x20] sm:$0xf]
      %v998 = vld [vmem:[%s988 + $0x24] sm:$0xf]
      %v999 = vld [vmem:[%s988 + $0x28] sm:$0xf]
      %v1000 = vld [vmem:[%s988 + $0x2c] sm:$0xf]
      %v1001 = vld [vmem:[%s988 + $0x30] sm:$0xf]
      %v1002 = vld [vmem:[%s988 + $0x34] sm:$0xf]
      %v1003 = vld [vmem:[%s988 + $0x38] sm:$0xf]
      %v1004 = vld [vmem:[%s988 + $0x3c] sm:$0xf]
      %s1005 = scalar_lea.vmem %s8, 1
      %v1006 = vld [vmem:[%s1005] sm:$0x1]
      %v1008 = vlaneseq
      %v1009 = vshrl.u32 %v1008, 7
      %v1010 = vsub.s32 0, %v1009
      %v1011 = vrot.slane %v1006, %v1010
      %v1029 = vunpack.c.l.b16 %v989
      %v1030 = vunpack.c.l.b16 %v990
      %v1031 = vunpack.c.l.b16 %v991
      %v1032 = vunpack.c.l.b16 %v992
      %v1033 = vunpack.c.l.b16 %v993
      %v1034 = vunpack.c.l.b16 %v994
      %v1035 = vunpack.c.l.b16 %v995
      %v1036 = vunpack.c.l.b16 %v996
      %v1037 = vunpack.c.l.b16 %v997
      %v1038 = vunpack.c.l.b16 %v998
      %v1039 = vunpack.c.l.b16 %v999
      %v1040 = vunpack.c.l.b16 %v1000
      %v1041 = vunpack.c.l.b16 %v1001
      %v1042 = vunpack.c.l.b16 %v1002
      %v1043 = vunpack.c.l.b16 %v1003
      %v1044 = vunpack.c.l.b16 %v1004
      %v1045 = vpack.c.b16 %v1030, %v1029
      %v1046 = vpack.c.b16 %v1032, %v1031
      %v1047 = vpack.c.b16 %v1034, %v1033
      %v1048 = vpack.c.b16 %v1036, %v1035
      %v1049 = vpack.c.b16 %v1038, %v1037
      %v1050 = vpack.c.b16 %v1040, %v1039
      %v1051 = vpack.c.b16 %v1042, %v1041
      %v1052 = vpack.c.b16 %v1044, %v1043
      %1061 = vmatprep.subr.bf16.mxu0 0
      %1062 = vmatpush1.bf16.msra.mxu0 %v1052
      %1063 = vmatprep.subr.bf16.mxu0 0
      %1064 = vmatpush1.bf16.msra.mxu0 %v1051
      %1065 = vmatprep.subr.bf16.mxu0 0
      %1066 = vmatpush1.bf16.msra.mxu0 %v1050
      %1067 = vmatprep.subr.bf16.mxu0 0
      %1068 = vmatpush1.bf16.msra.mxu0 %v1049
      %1069 = vmatprep.subr.bf16.mxu0 0
      %1070 = vmatpush1.bf16.msra.mxu0 %v1048
      %1071 = vmatprep.subr.bf16.mxu0 0
      %1072 = vmatpush1.bf16.msra.mxu0 %v1047
      %1073 = vmatprep.subr.bf16.mxu0 0
      %1074 = vmatpush1.bf16.msra.mxu0 %v1046
      %1075 = vmatprep.subr.bf16.mxu0 0
      %1076 = vmatpush1.bf16.msra.mxu0 %v1045
      %1077 = vmatprep.subr.bf16.mxu0 0
      %1078 = vmatpush2.bf16.msra.mxu0 0
      %1079 = vmatprep.subr.bf16.mxu0 0
      %1080 = vmatpush2.bf16.msra.mxu0 0
      %1081 = vmatprep.subr.bf16.mxu0 0
      %1082 = vmatpush2.bf16.msra.mxu0 0
      %1083 = vmatprep.subr.bf16.mxu0 0
      %1084 = vmatpush2.bf16.msra.mxu0 0
      %1085 = vmatprep.subr.bf16.mxu0 0
      %1086 = vmatpush2.bf16.msra.mxu0 0
      %1087 = vmatprep.subr.bf16.mxu0 0
      %1088 = vmatpush2.bf16.msra.mxu0 0
      %1089 = vmatprep.subr.bf16.mxu0 0
      %1090 = vmatpush2.bf16.msra.mxu0 0
      %1091 = vmatprep.subr.bf16.mxu0 0
      %1092 = vmatpush2.bf16.msra.mxu0 0
      %1093 = vmatprep.mubr.bf16.mxu0 0
      %1094 = vmatmul.mubr.bf16.gmra.mxu0 %v525
      %v1095 = vpop.f32.mrf.mxu0
      %v1096 = vadd.f32 %v1011, %v1095
      %v1097 = vpop.f32.mrf.mxu0
      %v1098 = vpop.f32.mrf.mxu0
      %v1099 = vadd.f32 %v1011, %v1098
      %v1100 = vpop.f32.mrf.mxu0
      %1101 = vdwg.mxu0
      %s1102 = scalar_lea.vmem %s6, 64
      %v1103 = vld [vmem:[%s1102] sm:$0xf]
      %v1104 = vld [vmem:[%s1102 + $0x4] sm:$0xf]
      %v1105 = vld [vmem:[%s1102 + $0x8] sm:$0xf]
      %v1106 = vld [vmem:[%s1102 + $0xc] sm:$0xf]
      %v1107 = vld [vmem:[%s1102 + $0x10] sm:$0xf]
      %v1108 = vld [vmem:[%s1102 + $0x14] sm:$0xf]
      %v1109 = vld [vmem:[%s1102 + $0x18] sm:$0xf]
      %v1110 = vld [vmem:[%s1102 + $0x1c] sm:$0xf]
      %v1111 = vld [vmem:[%s1102 + $0x20] sm:$0xf]
      %v1112 = vld [vmem:[%s1102 + $0x24] sm:$0xf]
      %v1113 = vld [vmem:[%s1102 + $0x28] sm:$0xf]
      %v1114 = vld [vmem:[%s1102 + $0x2c] sm:$0xf]
      %v1115 = vld [vmem:[%s1102 + $0x30] sm:$0xf]
      %v1116 = vld [vmem:[%s1102 + $0x34] sm:$0xf]
      %v1117 = vld [vmem:[%s1102 + $0x38] sm:$0xf]
      %v1118 = vld [vmem:[%s1102 + $0x3c] sm:$0xf]
      %s1119 = scalar_lea.vmem %s9, 1
      %v1120 = vld [vmem:[%s1119] sm:$0x1]
      %v1122 = vlaneseq
      %v1123 = vshrl.u32 %v1122, 7
      %v1124 = vsub.s32 0, %v1123
      %v1125 = vrot.slane %v1120, %v1124
      %v1143 = vunpack.c.l.b16 %v1103
      %v1144 = vunpack.c.l.b16 %v1104
      %v1145 = vunpack.c.l.b16 %v1105
      %v1146 = vunpack.c.l.b16 %v1106
      %v1147 = vunpack.c.l.b16 %v1107
      %v1148 = vunpack.c.l.b16 %v1108
      %v1149 = vunpack.c.l.b16 %v1109
      %v1150 = vunpack.c.l.b16 %v1110
      %v1151 = vunpack.c.l.b16 %v1111
      %v1152 = vunpack.c.l.b16 %v1112
      %v1153 = vunpack.c.l.b16 %v1113
      %v1154 = vunpack.c.l.b16 %v1114
      %v1155 = vunpack.c.l.b16 %v1115
      %v1156 = vunpack.c.l.b16 %v1116
      %v1157 = vunpack.c.l.b16 %v1117
      %v1158 = vunpack.c.l.b16 %v1118
      %v1159 = vpack.c.b16 %v1144, %v1143
      %v1160 = vpack.c.b16 %v1146, %v1145
      %v1161 = vpack.c.b16 %v1148, %v1147
      %v1162 = vpack.c.b16 %v1150, %v1149
      %v1163 = vpack.c.b16 %v1152, %v1151
      %v1164 = vpack.c.b16 %v1154, %v1153
      %v1165 = vpack.c.b16 %v1156, %v1155
      %v1166 = vpack.c.b16 %v1158, %v1157
      %1175 = vmatprep.subr.bf16.mxu0 0
      %1176 = vmatpush1.bf16.msra.mxu0 %v1166
      %1177 = vmatprep.subr.bf16.mxu0 0
      %1178 = vmatpush1.bf16.msra.mxu0 %v1165
      %1179 = vmatprep.subr.bf16.mxu0 0
      %1180 = vmatpush1.bf16.msra.mxu0 %v1164
      %1181 = vmatprep.subr.bf16.mxu0 0
      %1182 = vmatpush1.bf16.msra.mxu0 %v1163
      %1183 = vmatprep.subr.bf16.mxu0 0
      %1184 = vmatpush1.bf16.msra.mxu0 %v1162
      %1185 = vmatprep.subr.bf16.mxu0 0
      %1186 = vmatpush1.bf16.msra.mxu0 %v1161
      %1187 = vmatprep.subr.bf16.mxu0 0
      %1188 = vmatpush1.bf16.msra.mxu0 %v1160
      %1189 = vmatprep.subr.bf16.mxu0 0
      %1190 = vmatpush1.bf16.msra.mxu0 %v1159
      %1191 = vmatprep.subr.bf16.mxu0 0
      %1192 = vmatpush2.bf16.msra.mxu0 0
      %1193 = vmatprep.subr.bf16.mxu0 0
      %1194 = vmatpush2.bf16.msra.mxu0 0
      %1195 = vmatprep.subr.bf16.mxu0 0
      %1196 = vmatpush2.bf16.msra.mxu0 0
      %1197 = vmatprep.subr.bf16.mxu0 0
      %1198 = vmatpush2.bf16.msra.mxu0 0
      %1199 = vmatprep.subr.bf16.mxu0 0
      %1200 = vmatpush2.bf16.msra.mxu0 0
      %1201 = vmatprep.subr.bf16.mxu0 0
      %1202 = vmatpush2.bf16.msra.mxu0 0
      %1203 = vmatprep.subr.bf16.mxu0 0
      %1204 = vmatpush2.bf16.msra.mxu0 0
      %1205 = vmatprep.subr.bf16.mxu0 0
      %1206 = vmatpush2.bf16.msra.mxu0 0
      %1207 = vmatprep.mubr.bf16.mxu0 0
      %1208 = vmatmul.mubr.bf16.gmra.mxu0 %v525
      %v1209 = vpop.f32.mrf.mxu0
      %v1210 = vadd.f32 %v1125, %v1209
      %v1211 = vpop.f32.mrf.mxu0
      %v1212 = vpop.f32.mrf.mxu0
      %v1213 = vadd.f32 %v1125, %v1212
      %v1214 = vpop.f32.mrf.mxu0
      %1215 = vdwg.mxu0
      %s1216 = scalar_lea.vmem %s7, 64
      %v1217 = vld [vmem:[%s1216] sm:$0xf]
      %v1218 = vld [vmem:[%s1216 + $0x4] sm:$0xf]
      %v1219 = vld [vmem:[%s1216 + $0x8] sm:$0xf]
      %v1220 = vld [vmem:[%s1216 + $0xc] sm:$0xf]
      %v1221 = vld [vmem:[%s1216 + $0x10] sm:$0xf]
      %v1222 = vld [vmem:[%s1216 + $0x14] sm:$0xf]
      %v1223 = vld [vmem:[%s1216 + $0x18] sm:$0xf]
      %v1224 = vld [vmem:[%s1216 + $0x1c] sm:$0xf]
      %v1225 = vld [vmem:[%s1216 + $0x20] sm:$0xf]
      %v1226 = vld [vmem:[%s1216 + $0x24] sm:$0xf]
      %v1227 = vld [vmem:[%s1216 + $0x28] sm:$0xf]
      %v1228 = vld [vmem:[%s1216 + $0x2c] sm:$0xf]
      %v1229 = vld [vmem:[%s1216 + $0x30] sm:$0xf]
      %v1230 = vld [vmem:[%s1216 + $0x34] sm:$0xf]
      %v1231 = vld [vmem:[%s1216 + $0x38] sm:$0xf]
      %v1232 = vld [vmem:[%s1216 + $0x3c] sm:$0xf]
      %s1233 = scalar_lea.vmem %s10, 1
      %v1234 = vld [vmem:[%s1233] sm:$0x1]
      %v1236 = vlaneseq
      %v1237 = vshrl.u32 %v1236, 7
      %v1238 = vsub.s32 0, %v1237
      %v1239 = vrot.slane %v1234, %v1238
      %v1257 = vunpack.c.l.b16 %v1217
      %v1258 = vunpack.c.l.b16 %v1218
      %v1259 = vunpack.c.l.b16 %v1219
      %v1260 = vunpack.c.l.b16 %v1220
      %v1261 = vunpack.c.l.b16 %v1221
      %v1262 = vunpack.c.l.b16 %v1222
      %v1263 = vunpack.c.l.b16 %v1223
      %v1264 = vunpack.c.l.b16 %v1224
      %v1265 = vunpack.c.l.b16 %v1225
      %v1266 = vunpack.c.l.b16 %v1226
      %v1267 = vunpack.c.l.b16 %v1227
      %v1268 = vunpack.c.l.b16 %v1228
      %v1269 = vunpack.c.l.b16 %v1229
      %v1270 = vunpack.c.l.b16 %v1230
      %v1271 = vunpack.c.l.b16 %v1231
      %v1272 = vunpack.c.l.b16 %v1232
      %v1273 = vpack.c.b16 %v1258, %v1257
      %v1274 = vpack.c.b16 %v1260, %v1259
      %v1275 = vpack.c.b16 %v1262, %v1261
      %v1276 = vpack.c.b16 %v1264, %v1263
      %v1277 = vpack.c.b16 %v1266, %v1265
      %v1278 = vpack.c.b16 %v1268, %v1267
      %v1279 = vpack.c.b16 %v1270, %v1269
      %v1280 = vpack.c.b16 %v1272, %v1271
      %1289 = vmatprep.subr.bf16.mxu0 0
      %1290 = vmatpush1.bf16.msra.mxu0 %v1280
      %1291 = vmatprep.subr.bf16.mxu0 0
      %1292 = vmatpush1.bf16.msra.mxu0 %v1279
      %1293 = vmatprep.subr.bf16.mxu0 0
      %1294 = vmatpush1.bf16.msra.mxu0 %v1278
      %1295 = vmatprep.subr.bf16.mxu0 0
      %1296 = vmatpush1.bf16.msra.mxu0 %v1277
      %1297 = vmatprep.subr.bf16.mxu0 0
      %1298 = vmatpush1.bf16.msra.mxu0 %v1276
      %1299 = vmatprep.subr.bf16.mxu0 0
      %1300 = vmatpush1.bf16.msra.mxu0 %v1275
      %1301 = vmatprep.subr.bf16.mxu0 0
      %1302 = vmatpush1.bf16.msra.mxu0 %v1274
      %1303 = vmatprep.subr.bf16.mxu0 0
      %1304 = vmatpush1.bf16.msra.mxu0 %v1273
      %1305 = vmatprep.subr.bf16.mxu0 0
      %1306 = vmatpush2.bf16.msra.mxu0 0
      %1307 = vmatprep.subr.bf16.mxu0 0
      %1308 = vmatpush2.bf16.msra.mxu0 0
      %1309 = vmatprep.subr.bf16.mxu0 0
      %1310 = vmatpush2.bf16.msra.mxu0 0
      %1311 = vmatprep.subr.bf16.mxu0 0
      %1312 = vmatpush2.bf16.msra.mxu0 0
      %1313 = vmatprep.subr.bf16.mxu0 0
      %1314 = vmatpush2.bf16.msra.mxu0 0
      %1315 = vmatprep.subr.bf16.mxu0 0
      %1316 = vmatpush2.bf16.msra.mxu0 0
      %1317 = vmatprep.subr.bf16.mxu0 0
      %1318 = vmatpush2.bf16.msra.mxu0 0
      %1319 = vmatprep.subr.bf16.mxu0 0
      %1320 = vmatpush2.bf16.msra.mxu0 0
      %1321 = vmatprep.mubr.bf16.mxu0 0
      %1322 = vmatmul.mubr.bf16.gmra.mxu0 %v525
      %v1323 = vpop.f32.mrf.mxu0
      %v1324 = vadd.f32 %v1239, %v1323
      %v1325 = vpop.f32.mrf.mxu0
      %v1326 = vpop.f32.mrf.mxu0
      %v1327 = vadd.f32 %v1239, %v1326
      %v1328 = vpop.f32.mrf.mxu0
      %1329 = vdwg.mxu0
      %v1330 = vmul.f32 %v1096, 0.17677669
      %v1331 = vmul.f32 %v1099, 0.17677669
      %v1332 = vpack.c.bf16 %v1331, %v1330
      %v1333 = vpack.c.bf16 %v1213, %v1210
      %v1335 = vsel %vm866, %v1332, 0
      %v1338 = vsel %vm866, %v1333, 0
      %1340 = vmatprep.subr.bf16.mxu0 0
      %1341 = vmatpush1.bf16.xpose.msra.mxu0 0
      %1342 = vmatprep.subr.bf16.mxu0 0
      %1343 = vmatpush1.bf16.xpose.msra.mxu0 0
      %1344 = vmatprep.subr.bf16.mxu0 0
      %1345 = vmatpush1.bf16.xpose.msra.mxu0 0
      %1346 = vmatprep.subr.bf16.mxu0 0
      %1347 = vmatpush1.bf16.xpose.msra.mxu0 0
      %1348 = vmatprep.subr.bf16.mxu0 0
      %1349 = vmatpush1.bf16.xpose.msra.mxu0 0
      %1350 = vmatprep.subr.bf16.mxu0 0
      %1351 = vmatpush1.bf16.xpose.msra.mxu0 0
      %1352 = vmatprep.subr.bf16.mxu0 0
      %1353 = vmatpush1.bf16.xpose.msra.mxu0 0
      %1354 = vmatprep.subr.bf16.mxu0 0
      %1355 = vmatpush1.bf16.xpose.msra.mxu0 %v1338
      %1356 = vmatprep.subr.bf16.mxu0 0
      %1357 = vmatpush2.bf16.xpose.msra.mxu0 0
      %1358 = vmatprep.subr.bf16.mxu0 0
      %1359 = vmatpush2.bf16.xpose.msra.mxu0 0
      %1360 = vmatprep.subr.bf16.mxu0 0
      %1361 = vmatpush2.bf16.xpose.msra.mxu0 0
      %1362 = vmatprep.subr.bf16.mxu0 0
      %1363 = vmatpush2.bf16.xpose.msra.mxu0 0
      %1364 = vmatprep.subr.bf16.mxu0 0
      %1365 = vmatpush2.bf16.xpose.msra.mxu0 0
      %1366 = vmatprep.subr.bf16.mxu0 0
      %1367 = vmatpush2.bf16.xpose.msra.mxu0 0
      %1368 = vmatprep.subr.bf16.mxu0 0
      %1369 = vmatpush2.bf16.xpose.msra.mxu0 0
      %1370 = vmatprep.subr.bf16.mxu0 0
      %1371 = vmatpush2.bf16.xpose.msra.mxu0 0
      %1372 = vmatprep.mubr.bf16.mxu0 0
      %1373 = vmatmul.mubr.bf16.gmra.mxu0 %v1335
      %v1374 = vpop.f32.mrf.mxu0
      %v1375 = vadd.f32 0.0, %v1374
      %v1376 = vpop.f32.mrf.mxu0
      %v1377 = vpop.f32.mrf.mxu0
      %v1378 = vadd.f32 0.0, %v1377
      %v1379 = vpop.f32.mrf.mxu0
      %1380 = vdwg.mxu0
      %v1381 = vsel %vm914, %v1375, -inf
      %1382 = vmax.xlane.f32.xlu0 %v1381
      %v1383 = vpop.xlane.xlu0 %1382
      %v1384 = vsel %vm914, %v1378, -inf
      %1385 = vmax.xlane.f32.xlu0 %v1384
      %v1386 = vpop.xlane.xlu0 %1385
      %v1387 = vsub.f32 %v1375, %v1383
      %v1388 = vsub.f32 %v1378, %v1386
      %v1389 = vmul.f32 %v1387, 1.442695
      %v1390 = vpow.pop %v1389
      %v1391 = vmul.f32 %v1388, 1.442695
      %v1392 = vpow.pop %v1391
      %v1393 = vsel %vm914, %v1390, 0.0
      %1394 = vadd.xlane.f32.xlu0 %v1393
      %v1395 = vpop.xlane.xlu0 %1394
      %v1396 = vsel %vm914, %v1392, 0.0
      %1397 = vadd.xlane.f32.xlu0 %v1396
      %v1398 = vpop.xlane.xlu0 %1397
      %v1399 = vrcp.pop %v1395
      %v1400 = vrcp.pop %v1398
      %v1401 = vmul.f32 %v1390, %v1399
      %v1402 = vmul.f32 %v1392, %v1400
      %v1403 = vpack.c.bf16 %v1402, %v1401
      %v1404 = vpack.c.bf16 %v1327, %v1324
      %v1406 = vsel %vm914, %v1403, 0
      %1408 = vmatprep.subr.bf16.mxu0 0
      %1409 = vmatpush1.bf16.msra.mxu0 0
      %1410 = vmatprep.subr.bf16.mxu0 0
      %1411 = vmatpush1.bf16.msra.mxu0 0
      %1412 = vmatprep.subr.bf16.mxu0 0
      %1413 = vmatpush1.bf16.msra.mxu0 0
      %1414 = vmatprep.subr.bf16.mxu0 0
      %1415 = vmatpush1.bf16.msra.mxu0 0
      %1416 = vmatprep.subr.bf16.mxu0 0
      %1417 = vmatpush1.bf16.msra.mxu0 0
      %1418 = vmatprep.subr.bf16.mxu0 0
      %1419 = vmatpush1.bf16.msra.mxu0 0
      %1420 = vmatprep.subr.bf16.mxu0 0
      %1421 = vmatpush1.bf16.msra.mxu0 0
      %1422 = vmatprep.subr.bf16.mxu0 0
      %1423 = vmatpush1.bf16.msra.mxu0 %v1404
      %1424 = vmatprep.subr.bf16.mxu0 0
      %1425 = vmatpush2.bf16.msra.mxu0 0
      %1426 = vmatprep.subr.bf16.mxu0 0
      %1427 = vmatpush2.bf16.msra.mxu0 0
      %1428 = vmatprep.subr.bf16.mxu0 0
      %1429 = vmatpush2.bf16.msra.mxu0 0
      %1430 = vmatprep.subr.bf16.mxu0 0
      %1431 = vmatpush2.bf16.msra.mxu0 0
      %1432 = vmatprep.subr.bf16.mxu0 0
      %1433 = vmatpush2.bf16.msra.mxu0 0
      %1434 = vmatprep.subr.bf16.mxu0 0
      %1435 = vmatpush2.bf16.msra.mxu0 0
      %1436 = vmatprep.subr.bf16.mxu0 0
      %1437 = vmatpush2.bf16.msra.mxu0 0
      %1438 = vmatprep.subr.bf16.mxu0 0
      %1439 = vmatpush2.bf16.msra.mxu0 0
      %1440 = vmatprep.mubr.bf16.mxu0 0
      %1441 = vmatmul.mubr.bf16.gmra.mxu0 %v1406
      %v1442 = vpop.f32.mrf.mxu0
      %v1443 = vadd.f32 0.0, %v1442
      %v1444 = vpop.f32.mrf.mxu0
      %v1445 = vpop.f32.mrf.mxu0
      %v1446 = vadd.f32 0.0, %v1445
      %v1447 = vpop.f32.mrf.mxu0
      %1448 = vdwg.mxu0
      %v1449 = vpack.c.bf16 %v1446, %v1443
      %s1450 = scalar_lea.vmem %s11, 16
      %v1451 = vld [vmem:[%s1450] sm:$0xf]
      %v1452 = vld [vmem:[%s1450 + $0x4] sm:$0xf]
      %v1453 = vld [vmem:[%s1450 + $0x8] sm:$0xf]
      %v1454 = vld [vmem:[%s1450 + $0xc] sm:$0xf]
      %v1459 = vunpack.c.l.b16 %v1451
      %v1460 = vunpack.c.l.b16 %v1452
      %v1461 = vunpack.c.l.b16 %v1453
      %v1462 = vunpack.c.l.b16 %v1454
      %v1463 = vpack.c.b16 %v1460, %v1459
      %v1464 = vpack.c.b16 %v1462, %v1461
      %v1468 = vsel %vm866, %v1449, 0
      %1470 = vmatprep.subr.bf16.mxu0 0
      %1471 = vmatpush1.bf16.msra.mxu0 0
      %1472 = vmatprep.subr.bf16.mxu0 0
      %1473 = vmatpush1.bf16.msra.mxu0 0
      %1474 = vmatprep.subr.bf16.mxu0 0
      %1475 = vmatpush1.bf16.msra.mxu0 0
      %1476 = vmatprep.subr.bf16.mxu0 0
      %1477 = vmatpush1.bf16.msra.mxu0 0
      %1478 = vmatprep.subr.bf16.mxu0 0
      %1479 = vmatpush1.bf16.msra.mxu0 0
      %1480 = vmatprep.subr.bf16.mxu0 0
      %1481 = vmatpush1.bf16.msra.mxu0 0
      %1482 = vmatprep.subr.bf16.mxu0 0
      %1483 = vmatpush1.bf16.msra.mxu0 %v1464
      %1484 = vmatprep.subr.bf16.mxu0 0
      %1485 = vmatpush1.bf16.msra.mxu0 %v1463
      %1486 = vmatprep.subr.bf16.mxu0 0
      %1487 = vmatpush2.bf16.msra.mxu0 0
      %1488 = vmatprep.subr.bf16.mxu0 0
      %1489 = vmatpush2.bf16.msra.mxu0 0
      %1490 = vmatprep.subr.bf16.mxu0 0
      %1491 = vmatpush2.bf16.msra.mxu0 0
      %1492 = vmatprep.subr.bf16.mxu0 0
      %1493 = vmatpush2.bf16.msra.mxu0 0
      %1494 = vmatprep.subr.bf16.mxu0 0
      %1495 = vmatpush2.bf16.msra.mxu0 0
      %1496 = vmatprep.subr.bf16.mxu0 0
      %1497 = vmatpush2.bf16.msra.mxu0 0
      %1498 = vmatprep.subr.bf16.mxu0 0
      %1499 = vmatpush2.bf16.msra.mxu0 0
      %1500 = vmatprep.subr.bf16.mxu0 0
      %1501 = vmatpush2.bf16.msra.mxu0 0
      %1502 = vmatprep.mubr.bf16.mxu0 0
      %1503 = vmatmul.mubr.bf16.gmra.mxu0 %v1468
      %v1504 = vpop.f32.mrf.mxu0
      %v1505 = vadd.f32 0.0, %v1504
      %v1506 = vpop.f32.mrf.mxu0
      %v1507 = vpop.f32.mrf.mxu0
      %v1508 = vadd.f32 0.0, %v1507
      %v1509 = vpop.f32.mrf.mxu0
      %1510 = vdwg.mxu0
      %v1515 = vunpack.c.l.b16 %v984
      %v1516 = vunpack.c.l.b16 %v985
      %v1517 = vunpack.c.l.b16 %v986
      %v1518 = vunpack.c.l.b16 %v987
      %v1519 = vpack.c.b16 %v1516, %v1515
      %v1520 = vpack.c.b16 %v1518, %v1517
      %v1524 = vsel %vm866, %v983, 0
      %1526 = vmatprep.subr.bf16.mxu0 0
      %1527 = vmatpush1.bf16.msra.mxu0 0
      %1528 = vmatprep.subr.bf16.mxu0 0
      %1529 = vmatpush1.bf16.msra.mxu0 0
      %1530 = vmatprep.subr.bf16.mxu0 0
      %1531 = vmatpush1.bf16.msra.mxu0 0
      %1532 = vmatprep.subr.bf16.mxu0 0
      %1533 = vmatpush1.bf16.msra.mxu0 0
      %1534 = vmatprep.subr.bf16.mxu0 0
      %1535 = vmatpush1.bf16.msra.mxu0 0
      %1536 = vmatprep.subr.bf16.mxu0 0
      %1537 = vmatpush1.bf16.msra.mxu0 0
      %1538 = vmatprep.subr.bf16.mxu0 0
      %1539 = vmatpush1.bf16.msra.mxu0 %v1520
      %1540 = vmatprep.subr.bf16.mxu0 0
      %1541 = vmatpush1.bf16.msra.mxu0 %v1519
      %1542 = vmatprep.subr.bf16.mxu0 0
      %1543 = vmatpush2.bf16.msra.mxu0 0
      %1544 = vmatprep.subr.bf16.mxu0 0
      %1545 = vmatpush2.bf16.msra.mxu0 0
      %1546 = vmatprep.subr.bf16.mxu0 0
      %1547 = vmatpush2.bf16.msra.mxu0 0
      %1548 = vmatprep.subr.bf16.mxu0 0
      %1549 = vmatpush2.bf16.msra.mxu0 0
      %1550 = vmatprep.subr.bf16.mxu0 0
      %1551 = vmatpush2.bf16.msra.mxu0 0
      %1552 = vmatprep.subr.bf16.mxu0 0
      %1553 = vmatpush2.bf16.msra.mxu0 0
      %1554 = vmatprep.subr.bf16.mxu0 0
      %1555 = vmatpush2.bf16.msra.mxu0 0
      %1556 = vmatprep.subr.bf16.mxu0 0
      %1557 = vmatpush2.bf16.msra.mxu0 0
      %1558 = vmatprep.mubr.bf16.mxu0 0
      %1559 = vmatmul.mubr.bf16.gmra.mxu0 %v1524
      %v1560 = vpop.f32.mrf.mxu0
      %v1561 = vadd.f32 %v1505, %v1560
      %v1562 = vpop.f32.mrf.mxu0
      %v1563 = vpop.f32.mrf.mxu0
      %v1564 = vadd.f32 %v1508, %v1563
      %v1565 = vpop.f32.mrf.mxu0
      %1566 = vdwg.mxu0
      %s1567 = scalar_lea.vmem %s5, 128
      %v1568 = vld [vmem:[%s1567] sm:$0xf]
      %v1569 = vld [vmem:[%s1567 + $0x4] sm:$0xf]
      %v1570 = vld [vmem:[%s1567 + $0x8] sm:$0xf]
      %v1571 = vld [vmem:[%s1567 + $0xc] sm:$0xf]
      %v1572 = vld [vmem:[%s1567 + $0x10] sm:$0xf]
      %v1573 = vld [vmem:[%s1567 + $0x14] sm:$0xf]
      %v1574 = vld [vmem:[%s1567 + $0x18] sm:$0xf]
      %v1575 = vld [vmem:[%s1567 + $0x1c] sm:$0xf]
      %v1576 = vld [vmem:[%s1567 + $0x20] sm:$0xf]
      %v1577 = vld [vmem:[%s1567 + $0x24] sm:$0xf]
      %v1578 = vld [vmem:[%s1567 + $0x28] sm:$0xf]
      %v1579 = vld [vmem:[%s1567 + $0x2c] sm:$0xf]
      %v1580 = vld [vmem:[%s1567 + $0x30] sm:$0xf]
      %v1581 = vld [vmem:[%s1567 + $0x34] sm:$0xf]
      %v1582 = vld [vmem:[%s1567 + $0x38] sm:$0xf]
      %v1583 = vld [vmem:[%s1567 + $0x3c] sm:$0xf]
      %s1584 = scalar_lea.vmem %s8, 2
      %v1585 = vld [vmem:[%s1584] sm:$0x1]
      %v1587 = vlaneseq
      %v1588 = vshrl.u32 %v1587, 7
      %v1589 = vsub.s32 0, %v1588
      %v1590 = vrot.slane %v1585, %v1589
      %v1608 = vunpack.c.l.b16 %v1568
      %v1609 = vunpack.c.l.b16 %v1569
      %v1610 = vunpack.c.l.b16 %v1570
      %v1611 = vunpack.c.l.b16 %v1571
      %v1612 = vunpack.c.l.b16 %v1572
      %v1613 = vunpack.c.l.b16 %v1573
      %v1614 = vunpack.c.l.b16 %v1574
      %v1615 = vunpack.c.l.b16 %v1575
      %v1616 = vunpack.c.l.b16 %v1576
      %v1617 = vunpack.c.l.b16 %v1577
      %v1618 = vunpack.c.l.b16 %v1578
      %v1619 = vunpack.c.l.b16 %v1579
      %v1620 = vunpack.c.l.b16 %v1580
      %v1621 = vunpack.c.l.b16 %v1581
      %v1622 = vunpack.c.l.b16 %v1582
      %v1623 = vunpack.c.l.b16 %v1583
      %v1624 = vpack.c.b16 %v1609, %v1608
      %v1625 = vpack.c.b16 %v1611, %v1610
      %v1626 = vpack.c.b16 %v1613, %v1612
      %v1627 = vpack.c.b16 %v1615, %v1614
      %v1628 = vpack.c.b16 %v1617, %v1616
      %v1629 = vpack.c.b16 %v1619, %v1618
      %v1630 = vpack.c.b16 %v1621, %v1620
      %v1631 = vpack.c.b16 %v1623, %v1622
      %1640 = vmatprep.subr.bf16.mxu0 0
      %1641 = vmatpush1.bf16.msra.mxu0 %v1631
      %1642 = vmatprep.subr.bf16.mxu0 0
      %1643 = vmatpush1.bf16.msra.mxu0 %v1630
      %1644 = vmatprep.subr.bf16.mxu0 0
      %1645 = vmatpush1.bf16.msra.mxu0 %v1629
      %1646 = vmatprep.subr.bf16.mxu0 0
      %1647 = vmatpush1.bf16.msra.mxu0 %v1628
      %1648 = vmatprep.subr.bf16.mxu0 0
      %1649 = vmatpush1.bf16.msra.mxu0 %v1627
      %1650 = vmatprep.subr.bf16.mxu0 0
      %1651 = vmatpush1.bf16.msra.mxu0 %v1626
      %1652 = vmatprep.subr.bf16.mxu0 0
      %1653 = vmatpush1.bf16.msra.mxu0 %v1625
      %1654 = vmatprep.subr.bf16.mxu0 0
      %1655 = vmatpush1.bf16.msra.mxu0 %v1624
      %1656 = vmatprep.subr.bf16.mxu0 0
      %1657 = vmatpush2.bf16.msra.mxu0 0
      %1658 = vmatprep.subr.bf16.mxu0 0
      %1659 = vmatpush2.bf16.msra.mxu0 0
      %1660 = vmatprep.subr.bf16.mxu0 0
      %1661 = vmatpush2.bf16.msra.mxu0 0
      %1662 = vmatprep.subr.bf16.mxu0 0
      %1663 = vmatpush2.bf16.msra.mxu0 0
      %1664 = vmatprep.subr.bf16.mxu0 0
      %1665 = vmatpush2.bf16.msra.mxu0 0
      %1666 = vmatprep.subr.bf16.mxu0 0
      %1667 = vmatpush2.bf16.msra.mxu0 0
      %1668 = vmatprep.subr.bf16.mxu0 0
      %1669 = vmatpush2.bf16.msra.mxu0 0
      %1670 = vmatprep.subr.bf16.mxu0 0
      %1671 = vmatpush2.bf16.msra.mxu0 0
      %1672 = vmatprep.mubr.bf16.mxu0 0
      %1673 = vmatmul.mubr.bf16.gmra.mxu0 %v525
      %v1674 = vpop.f32.mrf.mxu0
      %v1675 = vadd.f32 %v1590, %v1674
      %v1676 = vpop.f32.mrf.mxu0
      %v1677 = vpop.f32.mrf.mxu0
      %v1678 = vadd.f32 %v1590, %v1677
      %v1679 = vpop.f32.mrf.mxu0
      %1680 = vdwg.mxu0
      %s1681 = scalar_lea.vmem %s6, 128
      %v1682 = vld [vmem:[%s1681] sm:$0xf]
      %v1683 = vld [vmem:[%s1681 + $0x4] sm:$0xf]
      %v1684 = vld [vmem:[%s1681 + $0x8] sm:$0xf]
      %v1685 = vld [vmem:[%s1681 + $0xc] sm:$0xf]
      %v1686 = vld [vmem:[%s1681 + $0x10] sm:$0xf]
      %v1687 = vld [vmem:[%s1681 + $0x14] sm:$0xf]
      %v1688 = vld [vmem:[%s1681 + $0x18] sm:$0xf]
      %v1689 = vld [vmem:[%s1681 + $0x1c] sm:$0xf]
      %v1690 = vld [vmem:[%s1681 + $0x20] sm:$0xf]
      %v1691 = vld [vmem:[%s1681 + $0x24] sm:$0xf]
      %v1692 = vld [vmem:[%s1681 + $0x28] sm:$0xf]
      %v1693 = vld [vmem:[%s1681 + $0x2c] sm:$0xf]
      %v1694 = vld [vmem:[%s1681 + $0x30] sm:$0xf]
      %v1695 = vld [vmem:[%s1681 + $0x34] sm:$0xf]
      %v1696 = vld [vmem:[%s1681 + $0x38] sm:$0xf]
      %v1697 = vld [vmem:[%s1681 + $0x3c] sm:$0xf]
      %s1698 = scalar_lea.vmem %s9, 2
      %v1699 = vld [vmem:[%s1698] sm:$0x1]
      %v1701 = vlaneseq
      %v1702 = vshrl.u32 %v1701, 7
      %v1703 = vsub.s32 0, %v1702
      %v1704 = vrot.slane %v1699, %v1703
      %v1722 = vunpack.c.l.b16 %v1682
      %v1723 = vunpack.c.l.b16 %v1683
      %v1724 = vunpack.c.l.b16 %v1684
      %v1725 = vunpack.c.l.b16 %v1685
      %v1726 = vunpack.c.l.b16 %v1686
      %v1727 = vunpack.c.l.b16 %v1687
      %v1728 = vunpack.c.l.b16 %v1688
      %v1729 = vunpack.c.l.b16 %v1689
      %v1730 = vunpack.c.l.b16 %v1690
      %v1731 = vunpack.c.l.b16 %v1691
      %v1732 = vunpack.c.l.b16 %v1692
      %v1733 = vunpack.c.l.b16 %v1693
      %v1734 = vunpack.c.l.b16 %v1694
      %v1735 = vunpack.c.l.b16 %v1695
      %v1736 = vunpack.c.l.b16 %v1696
      %v1737 = vunpack.c.l.b16 %v1697
      %v1738 = vpack.c.b16 %v1723, %v1722
      %v1739 = vpack.c.b16 %v1725, %v1724
      %v1740 = vpack.c.b16 %v1727, %v1726
      %v1741 = vpack.c.b16 %v1729, %v1728
      %v1742 = vpack.c.b16 %v1731, %v1730
      %v1743 = vpack.c.b16 %v1733, %v1732
      %v1744 = vpack.c.b16 %v1735, %v1734
      %v1745 = vpack.c.b16 %v1737, %v1736
      %1754 = vmatprep.subr.bf16.mxu0 0
      %1755 = vmatpush1.bf16.msra.mxu0 %v1745
      %1756 = vmatprep.subr.bf16.mxu0 0
      %1757 = vmatpush1.bf16.msra.mxu0 %v1744
      %1758 = vmatprep.subr.bf16.mxu0 0
      %1759 = vmatpush1.bf16.msra.mxu0 %v1743
      %1760 = vmatprep.subr.bf16.mxu0 0
      %1761 = vmatpush1.bf16.msra.mxu0 %v1742
      %1762 = vmatprep.subr.bf16.mxu0 0
      %1763 = vmatpush1.bf16.msra.mxu0 %v1741
      %1764 = vmatprep.subr.bf16.mxu0 0
      %1765 = vmatpush1.bf16.msra.mxu0 %v1740
      %1766 = vmatprep.subr.bf16.mxu0 0
      %1767 = vmatpush1.bf16.msra.mxu0 %v1739
      %1768 = vmatprep.subr.bf16.mxu0 0
      %1769 = vmatpush1.bf16.msra.mxu0 %v1738
      %1770 = vmatprep.subr.bf16.mxu0 0
      %1771 = vmatpush2.bf16.msra.mxu0 0
      %1772 = vmatprep.subr.bf16.mxu0 0
      %1773 = vmatpush2.bf16.msra.mxu0 0
      %1774 = vmatprep.subr.bf16.mxu0 0
      %1775 = vmatpush2.bf16.msra.mxu0 0
      %1776 = vmatprep.subr.bf16.mxu0 0
      %1777 = vmatpush2.bf16.msra.mxu0 0
      %1778 = vmatprep.subr.bf16.mxu0 0
      %1779 = vmatpush2.bf16.msra.mxu0 0
      %1780 = vmatprep.subr.bf16.mxu0 0
      %1781 = vmatpush2.bf16.msra.mxu0 0
      %1782 = vmatprep.subr.bf16.mxu0 0
      %1783 = vmatpush2.bf16.msra.mxu0 0
      %1784 = vmatprep.subr.bf16.mxu0 0
      %1785 = vmatpush2.bf16.msra.mxu0 0
      %1786 = vmatprep.mubr.bf16.mxu0 0
      %1787 = vmatmul.mubr.bf16.gmra.mxu0 %v525
      %v1788 = vpop.f32.mrf.mxu0
      %v1789 = vadd.f32 %v1704, %v1788
      %v1790 = vpop.f32.mrf.mxu0
      %v1791 = vpop.f32.mrf.mxu0
      %v1792 = vadd.f32 %v1704, %v1791
      %v1793 = vpop.f32.mrf.mxu0
      %1794 = vdwg.mxu0
      %s1795 = scalar_lea.vmem %s7, 128
      %v1796 = vld [vmem:[%s1795] sm:$0xf]
      %v1797 = vld [vmem:[%s1795 + $0x4] sm:$0xf]
      %v1798 = vld [vmem:[%s1795 + $0x8] sm:$0xf]
      %v1799 = vld [vmem:[%s1795 + $0xc] sm:$0xf]
      %v1800 = vld [vmem:[%s1795 + $0x10] sm:$0xf]
      %v1801 = vld [vmem:[%s1795 + $0x14] sm:$0xf]
      %v1802 = vld [vmem:[%s1795 + $0x18] sm:$0xf]
      %v1803 = vld [vmem:[%s1795 + $0x1c] sm:$0xf]
      %v1804 = vld [vmem:[%s1795 + $0x20] sm:$0xf]
      %v1805 = vld [vmem:[%s1795 + $0x24] sm:$0xf]
      %v1806 = vld [vmem:[%s1795 + $0x28] sm:$0xf]
      %v1807 = vld [vmem:[%s1795 + $0x2c] sm:$0xf]
      %v1808 = vld [vmem:[%s1795 + $0x30] sm:$0xf]
      %v1809 = vld [vmem:[%s1795 + $0x34] sm:$0xf]
      %v1810 = vld [vmem:[%s1795 + $0x38] sm:$0xf]
      %v1811 = vld [vmem:[%s1795 + $0x3c] sm:$0xf]
      %s1812 = scalar_lea.vmem %s10, 2
      %v1813 = vld [vmem:[%s1812] sm:$0x1]
      %v1815 = vlaneseq
      %v1816 = vshrl.u32 %v1815, 7
      %v1817 = vsub.s32 0, %v1816
      %v1818 = vrot.slane %v1813, %v1817
      %v1836 = vunpack.c.l.b16 %v1796
      %v1837 = vunpack.c.l.b16 %v1797
      %v1838 = vunpack.c.l.b16 %v1798
      %v1839 = vunpack.c.l.b16 %v1799
      %v1840 = vunpack.c.l.b16 %v1800
      %v1841 = vunpack.c.l.b16 %v1801
      %v1842 = vunpack.c.l.b16 %v1802
      %v1843 = vunpack.c.l.b16 %v1803
      %v1844 = vunpack.c.l.b16 %v1804
      %v1845 = vunpack.c.l.b16 %v1805
      %v1846 = vunpack.c.l.b16 %v1806
      %v1847 = vunpack.c.l.b16 %v1807
      %v1848 = vunpack.c.l.b16 %v1808
      %v1849 = vunpack.c.l.b16 %v1809
      %v1850 = vunpack.c.l.b16 %v1810
      %v1851 = vunpack.c.l.b16 %v1811
      %v1852 = vpack.c.b16 %v1837, %v1836
      %v1853 = vpack.c.b16 %v1839, %v1838
      %v1854 = vpack.c.b16 %v1841, %v1840
      %v1855 = vpack.c.b16 %v1843, %v1842
      %v1856 = vpack.c.b16 %v1845, %v1844
      %v1857 = vpack.c.b16 %v1847, %v1846
      %v1858 = vpack.c.b16 %v1849, %v1848
      %v1859 = vpack.c.b16 %v1851, %v1850
      %1868 = vmatprep.subr.bf16.mxu0 0
      %1869 = vmatpush1.bf16.msra.mxu0 %v1859
      %1870 = vmatprep.subr.bf16.mxu0 0
      %1871 = vmatpush1.bf16.msra.mxu0 %v1858
      %1872 = vmatprep.subr.bf16.mxu0 0
      %1873 = vmatpush1.bf16.msra.mxu0 %v1857
      %1874 = vmatprep.subr.bf16.mxu0 0
      %1875 = vmatpush1.bf16.msra.mxu0 %v1856
      %1876 = vmatprep.subr.bf16.mxu0 0
      %1877 = vmatpush1.bf16.msra.mxu0 %v1855
      %1878 = vmatprep.subr.bf16.mxu0 0
      %1879 = vmatpush1.bf16.msra.mxu0 %v1854
      %1880 = vmatprep.subr.bf16.mxu0 0
      %1881 = vmatpush1.bf16.msra.mxu0 %v1853
      %1882 = vmatprep.subr.bf16.mxu0 0
      %1883 = vmatpush1.bf16.msra.mxu0 %v1852
      %1884 = vmatprep.subr.bf16.mxu0 0
      %1885 = vmatpush2.bf16.msra.mxu0 0
      %1886 = vmatprep.subr.bf16.mxu0 0
      %1887 = vmatpush2.bf16.msra.mxu0 0
      %1888 = vmatprep.subr.bf16.mxu0 0
      %1889 = vmatpush2.bf16.msra.mxu0 0
      %1890 = vmatprep.subr.bf16.mxu0 0
      %1891 = vmatpush2.bf16.msra.mxu0 0
      %1892 = vmatprep.subr.bf16.mxu0 0
      %1893 = vmatpush2.bf16.msra.mxu0 0
      %1894 = vmatprep.subr.bf16.mxu0 0
      %1895 = vmatpush2.bf16.msra.mxu0 0
      %1896 = vmatprep.subr.bf16.mxu0 0
      %1897 = vmatpush2.bf16.msra.mxu0 0
      %1898 = vmatprep.subr.bf16.mxu0 0
      %1899 = vmatpush2.bf16.msra.mxu0 0
      %1900 = vmatprep.mubr.bf16.mxu0 0
      %1901 = vmatmul.mubr.bf16.gmra.mxu0 %v525
      %v1902 = vpop.f32.mrf.mxu0
      %v1903 = vadd.f32 %v1818, %v1902
      %v1904 = vpop.f32.mrf.mxu0
      %v1905 = vpop.f32.mrf.mxu0
      %v1906 = vadd.f32 %v1818, %v1905
      %v1907 = vpop.f32.mrf.mxu0
      %1908 = vdwg.mxu0
      %v1909 = vmul.f32 %v1675, 0.17677669
      %v1910 = vmul.f32 %v1678, 0.17677669
      %v1911 = vpack.c.bf16 %v1910, %v1909
      %v1912 = vpack.c.bf16 %v1792, %v1789
      %v1914 = vsel %vm866, %v1911, 0
      %v1917 = vsel %vm866, %v1912, 0
      %1919 = vmatprep.subr.bf16.mxu0 0
      %1920 = vmatpush1.bf16.xpose.msra.mxu0 0
      %1921 = vmatprep.subr.bf16.mxu0 0
      %1922 = vmatpush1.bf16.xpose.msra.mxu0 0
      %1923 = vmatprep.subr.bf16.mxu0 0
      %1924 = vmatpush1.bf16.xpose.msra.mxu0 0
      %1925 = vmatprep.subr.bf16.mxu0 0
      %1926 = vmatpush1.bf16.xpose.msra.mxu0 0
      %1927 = vmatprep.subr.bf16.mxu0 0
      %1928 = vmatpush1.bf16.xpose.msra.mxu0 0
      %1929 = vmatprep.subr.bf16.mxu0 0
      %1930 = vmatpush1.bf16.xpose.msra.mxu0 0
      %1931 = vmatprep.subr.bf16.mxu0 0
      %1932 = vmatpush1.bf16.xpose.msra.mxu0 0
      %1933 = vmatprep.subr.bf16.mxu0 0
      %1934 = vmatpush1.bf16.xpose.msra.mxu0 %v1917
      %1935 = vmatprep.subr.bf16.mxu0 0
      %1936 = vmatpush2.bf16.xpose.msra.mxu0 0
      %1937 = vmatprep.subr.bf16.mxu0 0
      %1938 = vmatpush2.bf16.xpose.msra.mxu0 0
      %1939 = vmatprep.subr.bf16.mxu0 0
      %1940 = vmatpush2.bf16.xpose.msra.mxu0 0
      %1941 = vmatprep.subr.bf16.mxu0 0
      %1942 = vmatpush2.bf16.xpose.msra.mxu0 0
      %1943 = vmatprep.subr.bf16.mxu0 0
      %1944 = vmatpush2.bf16.xpose.msra.mxu0 0
      %1945 = vmatprep.subr.bf16.mxu0 0
      %1946 = vmatpush2.bf16.xpose.msra.mxu0 0
      %1947 = vmatprep.subr.bf16.mxu0 0
      %1948 = vmatpush2.bf16.xpose.msra.mxu0 0
      %1949 = vmatprep.subr.bf16.mxu0 0
      %1950 = vmatpush2.bf16.xpose.msra.mxu0 0
      %1951 = vmatprep.mubr.bf16.mxu0 0
      %1952 = vmatmul.mubr.bf16.gmra.mxu0 %v1914
      %v1953 = vpop.f32.mrf.mxu0
      %v1954 = vadd.f32 0.0, %v1953
      %v1955 = vpop.f32.mrf.mxu0
      %v1956 = vpop.f32.mrf.mxu0
      %v1957 = vadd.f32 0.0, %v1956
      %v1958 = vpop.f32.mrf.mxu0
      %1959 = vdwg.mxu0
      %v1960 = vsel %vm914, %v1954, -inf
      %1961 = vmax.xlane.f32.xlu0 %v1960
      %v1962 = vpop.xlane.xlu0 %1961
      %v1963 = vsel %vm914, %v1957, -inf
      %1964 = vmax.xlane.f32.xlu0 %v1963
      %v1965 = vpop.xlane.xlu0 %1964
      %v1966 = vsub.f32 %v1954, %v1962
      %v1967 = vsub.f32 %v1957, %v1965
      %v1968 = vmul.f32 %v1966, 1.442695
      %v1969 = vpow.pop %v1968
      %v1970 = vmul.f32 %v1967, 1.442695
      %v1971 = vpow.pop %v1970
      %v1972 = vsel %vm914, %v1969, 0.0
      %1973 = vadd.xlane.f32.xlu0 %v1972
      %v1974 = vpop.xlane.xlu0 %1973
      %v1975 = vsel %vm914, %v1971, 0.0
      %1976 = vadd.xlane.f32.xlu0 %v1975
      %v1977 = vpop.xlane.xlu0 %1976
      %v1978 = vrcp.pop %v1974
      %v1979 = vrcp.pop %v1977
      %v1980 = vmul.f32 %v1969, %v1978
      %v1981 = vmul.f32 %v1971, %v1979
      %v1982 = vpack.c.bf16 %v1981, %v1980
      %v1983 = vpack.c.bf16 %v1906, %v1903
      %v1985 = vsel %vm914, %v1982, 0
      %1987 = vmatprep.subr.bf16.mxu0 0
      %1988 = vmatpush1.bf16.msra.mxu0 0
      %1989 = vmatprep.subr.bf16.mxu0 0
      %1990 = vmatpush1.bf16.msra.mxu0 0
      %1991 = vmatprep.subr.bf16.mxu0 0
      %1992 = vmatpush1.bf16.msra.mxu0 0
      %1993 = vmatprep.subr.bf16.mxu0 0
      %1994 = vmatpush1.bf16.msra.mxu0 0
      %1995 = vmatprep.subr.bf16.mxu0 0
      %1996 = vmatpush1.bf16.msra.mxu0 0
      %1997 = vmatprep.subr.bf16.mxu0 0
      %1998 = vmatpush1.bf16.msra.mxu0 0
      %1999 = vmatprep.subr.bf16.mxu0 0
      %2000 = vmatpush1.bf16.msra.mxu0 0
      %2001 = vmatprep.subr.bf16.mxu0 0
      %2002 = vmatpush1.bf16.msra.mxu0 %v1983
      %2003 = vmatprep.subr.bf16.mxu0 0
      %2004 = vmatpush2.bf16.msra.mxu0 0
      %2005 = vmatprep.subr.bf16.mxu0 0
      %2006 = vmatpush2.bf16.msra.mxu0 0
      %2007 = vmatprep.subr.bf16.mxu0 0
      %2008 = vmatpush2.bf16.msra.mxu0 0
      %2009 = vmatprep.subr.bf16.mxu0 0
      %2010 = vmatpush2.bf16.msra.mxu0 0
      %2011 = vmatprep.subr.bf16.mxu0 0
      %2012 = vmatpush2.bf16.msra.mxu0 0
      %2013 = vmatprep.subr.bf16.mxu0 0
      %2014 = vmatpush2.bf16.msra.mxu0 0
      %2015 = vmatprep.subr.bf16.mxu0 0
      %2016 = vmatpush2.bf16.msra.mxu0 0
      %2017 = vmatprep.subr.bf16.mxu0 0
      %2018 = vmatpush2.bf16.msra.mxu0 0
      %2019 = vmatprep.mubr.bf16.mxu0 0
      %2020 = vmatmul.mubr.bf16.gmra.mxu0 %v1985
      %v2021 = vpop.f32.mrf.mxu0
      %v2022 = vadd.f32 0.0, %v2021
      %v2023 = vpop.f32.mrf.mxu0
      %v2024 = vpop.f32.mrf.mxu0
      %v2025 = vadd.f32 0.0, %v2024
      %v2026 = vpop.f32.mrf.mxu0
      %2027 = vdwg.mxu0
      %v2028 = vpack.c.bf16 %v2025, %v2022
      %s2029 = scalar_lea.vmem %s11, 32
      %v2030 = vld [vmem:[%s2029] sm:$0xf]
      %v2031 = vld [vmem:[%s2029 + $0x4] sm:$0xf]
      %v2032 = vld [vmem:[%s2029 + $0x8] sm:$0xf]
      %v2033 = vld [vmem:[%s2029 + $0xc] sm:$0xf]
      %v2038 = vunpack.c.l.b16 %v2030
      %v2039 = vunpack.c.l.b16 %v2031
      %v2040 = vunpack.c.l.b16 %v2032
      %v2041 = vunpack.c.l.b16 %v2033
      %v2042 = vpack.c.b16 %v2039, %v2038
      %v2043 = vpack.c.b16 %v2041, %v2040
      %v2047 = vsel %vm866, %v2028, 0
      %2049 = vmatprep.subr.bf16.mxu0 0
      %2050 = vmatpush1.bf16.msra.mxu0 0
      %2051 = vmatprep.subr.bf16.mxu0 0
      %2052 = vmatpush1.bf16.msra.mxu0 0
      %2053 = vmatprep.subr.bf16.mxu0 0
      %2054 = vmatpush1.bf16.msra.mxu0 0
      %2055 = vmatprep.subr.bf16.mxu0 0
      %2056 = vmatpush1.bf16.msra.mxu0 0
      %2057 = vmatprep.subr.bf16.mxu0 0
      %2058 = vmatpush1.bf16.msra.mxu0 0
      %2059 = vmatprep.subr.bf16.mxu0 0
      %2060 = vmatpush1.bf16.msra.mxu0 0
      %2061 = vmatprep.subr.bf16.mxu0 0
      %2062 = vmatpush1.bf16.msra.mxu0 %v2043
      %2063 = vmatprep.subr.bf16.mxu0 0
      %2064 = vmatpush1.bf16.msra.mxu0 %v2042
      %2065 = vmatprep.subr.bf16.mxu0 0
      %2066 = vmatpush2.bf16.msra.mxu0 0
      %2067 = vmatprep.subr.bf16.mxu0 0
      %2068 = vmatpush2.bf16.msra.mxu0 0
      %2069 = vmatprep.subr.bf16.mxu0 0
      %2070 = vmatpush2.bf16.msra.mxu0 0
      %2071 = vmatprep.subr.bf16.mxu0 0
      %2072 = vmatpush2.bf16.msra.mxu0 0
      %2073 = vmatprep.subr.bf16.mxu0 0
      %2074 = vmatpush2.bf16.msra.mxu0 0
      %2075 = vmatprep.subr.bf16.mxu0 0
      %2076 = vmatpush2.bf16.msra.mxu0 0
      %2077 = vmatprep.subr.bf16.mxu0 0
      %2078 = vmatpush2.bf16.msra.mxu0 0
      %2079 = vmatprep.subr.bf16.mxu0 0
      %2080 = vmatpush2.bf16.msra.mxu0 0
      %2081 = vmatprep.mubr.bf16.mxu0 0
      %2082 = vmatmul.mubr.bf16.gmra.mxu0 %v2047
      %v2083 = vpop.f32.mrf.mxu0
      %v2084 = vadd.f32 0.0, %v2083
      %v2085 = vpop.f32.mrf.mxu0
      %v2086 = vpop.f32.mrf.mxu0
      %v2087 = vadd.f32 0.0, %v2086
      %v2088 = vpop.f32.mrf.mxu0
      %2089 = vdwg.mxu0
      %v2090 = vadd.f32 %v1561, %v2084
      %v2091 = vadd.f32 %v1564, %v2087
      %s2092 = scalar_lea.vmem %s5, 192
      %v2093 = vld [vmem:[%s2092] sm:$0xf]
      %v2094 = vld [vmem:[%s2092 + $0x4] sm:$0xf]
      %v2095 = vld [vmem:[%s2092 + $0x8] sm:$0xf]
      %v2096 = vld [vmem:[%s2092 + $0xc] sm:$0xf]
      %v2097 = vld [vmem:[%s2092 + $0x10] sm:$0xf]
      %v2098 = vld [vmem:[%s2092 + $0x14] sm:$0xf]
      %v2099 = vld [vmem:[%s2092 + $0x18] sm:$0xf]
      %v2100 = vld [vmem:[%s2092 + $0x1c] sm:$0xf]
      %v2101 = vld [vmem:[%s2092 + $0x20] sm:$0xf]
      %v2102 = vld [vmem:[%s2092 + $0x24] sm:$0xf]
      %v2103 = vld [vmem:[%s2092 + $0x28] sm:$0xf]
      %v2104 = vld [vmem:[%s2092 + $0x2c] sm:$0xf]
      %v2105 = vld [vmem:[%s2092 + $0x30] sm:$0xf]
      %v2106 = vld [vmem:[%s2092 + $0x34] sm:$0xf]
      %v2107 = vld [vmem:[%s2092 + $0x38] sm:$0xf]
      %v2108 = vld [vmem:[%s2092 + $0x3c] sm:$0xf]
      %s2109 = scalar_lea.vmem %s8, 3
      %v2110 = vld [vmem:[%s2109] sm:$0x1]
      %v2112 = vlaneseq
      %v2113 = vshrl.u32 %v2112, 7
      %v2114 = vsub.s32 0, %v2113
      %v2115 = vrot.slane %v2110, %v2114
      %v2133 = vunpack.c.l.b16 %v2093
      %v2134 = vunpack.c.l.b16 %v2094
      %v2135 = vunpack.c.l.b16 %v2095
      %v2136 = vunpack.c.l.b16 %v2096
      %v2137 = vunpack.c.l.b16 %v2097
      %v2138 = vunpack.c.l.b16 %v2098
      %v2139 = vunpack.c.l.b16 %v2099
      %v2140 = vunpack.c.l.b16 %v2100
      %v2141 = vunpack.c.l.b16 %v2101
      %v2142 = vunpack.c.l.b16 %v2102
      %v2143 = vunpack.c.l.b16 %v2103
      %v2144 = vunpack.c.l.b16 %v2104
      %v2145 = vunpack.c.l.b16 %v2105
      %v2146 = vunpack.c.l.b16 %v2106
      %v2147 = vunpack.c.l.b16 %v2107
      %v2148 = vunpack.c.l.b16 %v2108
      %v2149 = vpack.c.b16 %v2134, %v2133
      %v2150 = vpack.c.b16 %v2136, %v2135
      %v2151 = vpack.c.b16 %v2138, %v2137
      %v2152 = vpack.c.b16 %v2140, %v2139
      %v2153 = vpack.c.b16 %v2142, %v2141
      %v2154 = vpack.c.b16 %v2144, %v2143
      %v2155 = vpack.c.b16 %v2146, %v2145
      %v2156 = vpack.c.b16 %v2148, %v2147
      %2165 = vmatprep.subr.bf16.mxu0 0
      %2166 = vmatpush1.bf16.msra.mxu0 %v2156
      %2167 = vmatprep.subr.bf16.mxu0 0
      %2168 = vmatpush1.bf16.msra.mxu0 %v2155
      %2169 = vmatprep.subr.bf16.mxu0 0
      %2170 = vmatpush1.bf16.msra.mxu0 %v2154
      %2171 = vmatprep.subr.bf16.mxu0 0
      %2172 = vmatpush1.bf16.msra.mxu0 %v2153
      %2173 = vmatprep.subr.bf16.mxu0 0
      %2174 = vmatpush1.bf16.msra.mxu0 %v2152
      %2175 = vmatprep.subr.bf16.mxu0 0
      %2176 = vmatpush1.bf16.msra.mxu0 %v2151
      %2177 = vmatprep.subr.bf16.mxu0 0
      %2178 = vmatpush1.bf16.msra.mxu0 %v2150
      %2179 = vmatprep.subr.bf16.mxu0 0
      %2180 = vmatpush1.bf16.msra.mxu0 %v2149
      %2181 = vmatprep.subr.bf16.mxu0 0
      %2182 = vmatpush2.bf16.msra.mxu0 0
      %2183 = vmatprep.subr.bf16.mxu0 0
      %2184 = vmatpush2.bf16.msra.mxu0 0
      %2185 = vmatprep.subr.bf16.mxu0 0
      %2186 = vmatpush2.bf16.msra.mxu0 0
      %2187 = vmatprep.subr.bf16.mxu0 0
      %2188 = vmatpush2.bf16.msra.mxu0 0
      %2189 = vmatprep.subr.bf16.mxu0 0
      %2190 = vmatpush2.bf16.msra.mxu0 0
      %2191 = vmatprep.subr.bf16.mxu0 0
      %2192 = vmatpush2.bf16.msra.mxu0 0
      %2193 = vmatprep.subr.bf16.mxu0 0
      %2194 = vmatpush2.bf16.msra.mxu0 0
      %2195 = vmatprep.subr.bf16.mxu0 0
      %2196 = vmatpush2.bf16.msra.mxu0 0
      %2197 = vmatprep.mubr.bf16.mxu0 0
      %2198 = vmatmul.mubr.bf16.gmra.mxu0 %v525
      %v2199 = vpop.f32.mrf.mxu0
      %v2200 = vadd.f32 %v2115, %v2199
      %v2201 = vpop.f32.mrf.mxu0
      %v2202 = vpop.f32.mrf.mxu0
      %v2203 = vadd.f32 %v2115, %v2202
      %v2204 = vpop.f32.mrf.mxu0
      %2205 = vdwg.mxu0
      %s2206 = scalar_lea.vmem %s6, 192
      %v2207 = vld [vmem:[%s2206] sm:$0xf]
      %v2208 = vld [vmem:[%s2206 + $0x4] sm:$0xf]
      %v2209 = vld [vmem:[%s2206 + $0x8] sm:$0xf]
      %v2210 = vld [vmem:[%s2206 + $0xc] sm:$0xf]
      %v2211 = vld [vmem:[%s2206 + $0x10] sm:$0xf]
      %v2212 = vld [vmem:[%s2206 + $0x14] sm:$0xf]
      %v2213 = vld [vmem:[%s2206 + $0x18] sm:$0xf]
      %v2214 = vld [vmem:[%s2206 + $0x1c] sm:$0xf]
      %v2215 = vld [vmem:[%s2206 + $0x20] sm:$0xf]
      %v2216 = vld [vmem:[%s2206 + $0x24] sm:$0xf]
      %v2217 = vld [vmem:[%s2206 + $0x28] sm:$0xf]
      %v2218 = vld [vmem:[%s2206 + $0x2c] sm:$0xf]
      %v2219 = vld [vmem:[%s2206 + $0x30] sm:$0xf]
      %v2220 = vld [vmem:[%s2206 + $0x34] sm:$0xf]
      %v2221 = vld [vmem:[%s2206 + $0x38] sm:$0xf]
      %v2222 = vld [vmem:[%s2206 + $0x3c] sm:$0xf]
      %s2223 = scalar_lea.vmem %s9, 3
      %v2224 = vld [vmem:[%s2223] sm:$0x1]
      %v2226 = vlaneseq
      %v2227 = vshrl.u32 %v2226, 7
      %v2228 = vsub.s32 0, %v2227
      %v2229 = vrot.slane %v2224, %v2228
      %v2247 = vunpack.c.l.b16 %v2207
      %v2248 = vunpack.c.l.b16 %v2208
      %v2249 = vunpack.c.l.b16 %v2209
      %v2250 = vunpack.c.l.b16 %v2210
      %v2251 = vunpack.c.l.b16 %v2211
      %v2252 = vunpack.c.l.b16 %v2212
      %v2253 = vunpack.c.l.b16 %v2213
      %v2254 = vunpack.c.l.b16 %v2214
      %v2255 = vunpack.c.l.b16 %v2215
      %v2256 = vunpack.c.l.b16 %v2216
      %v2257 = vunpack.c.l.b16 %v2217
      %v2258 = vunpack.c.l.b16 %v2218
      %v2259 = vunpack.c.l.b16 %v2219
      %v2260 = vunpack.c.l.b16 %v2220
      %v2261 = vunpack.c.l.b16 %v2221
      %v2262 = vunpack.c.l.b16 %v2222
      %v2263 = vpack.c.b16 %v2248, %v2247
      %v2264 = vpack.c.b16 %v2250, %v2249
      %v2265 = vpack.c.b16 %v2252, %v2251
      %v2266 = vpack.c.b16 %v2254, %v2253
      %v2267 = vpack.c.b16 %v2256, %v2255
      %v2268 = vpack.c.b16 %v2258, %v2257
      %v2269 = vpack.c.b16 %v2260, %v2259
      %v2270 = vpack.c.b16 %v2262, %v2261
      %2279 = vmatprep.subr.bf16.mxu0 0
      %2280 = vmatpush1.bf16.msra.mxu0 %v2270
      %2281 = vmatprep.subr.bf16.mxu0 0
      %2282 = vmatpush1.bf16.msra.mxu0 %v2269
      %2283 = vmatprep.subr.bf16.mxu0 0
      %2284 = vmatpush1.bf16.msra.mxu0 %v2268
      %2285 = vmatprep.subr.bf16.mxu0 0
      %2286 = vmatpush1.bf16.msra.mxu0 %v2267
      %2287 = vmatprep.subr.bf16.mxu0 0
      %2288 = vmatpush1.bf16.msra.mxu0 %v2266
      %2289 = vmatprep.subr.bf16.mxu0 0
      %2290 = vmatpush1.bf16.msra.mxu0 %v2265
      %2291 = vmatprep.subr.bf16.mxu0 0
      %2292 = vmatpush1.bf16.msra.mxu0 %v2264
      %2293 = vmatprep.subr.bf16.mxu0 0
      %2294 = vmatpush1.bf16.msra.mxu0 %v2263
      %2295 = vmatprep.subr.bf16.mxu0 0
      %2296 = vmatpush2.bf16.msra.mxu0 0
      %2297 = vmatprep.subr.bf16.mxu0 0
      %2298 = vmatpush2.bf16.msra.mxu0 0
      %2299 = vmatprep.subr.bf16.mxu0 0
      %2300 = vmatpush2.bf16.msra.mxu0 0
      %2301 = vmatprep.subr.bf16.mxu0 0
      %2302 = vmatpush2.bf16.msra.mxu0 0
      %2303 = vmatprep.subr.bf16.mxu0 0
      %2304 = vmatpush2.bf16.msra.mxu0 0
      %2305 = vmatprep.subr.bf16.mxu0 0
      %2306 = vmatpush2.bf16.msra.mxu0 0
      %2307 = vmatprep.subr.bf16.mxu0 0
      %2308 = vmatpush2.bf16.msra.mxu0 0
      %2309 = vmatprep.subr.bf16.mxu0 0
      %2310 = vmatpush2.bf16.msra.mxu0 0
      %2311 = vmatprep.mubr.bf16.mxu0 0
      %2312 = vmatmul.mubr.bf16.gmra.mxu0 %v525
      %v2313 = vpop.f32.mrf.mxu0
      %v2314 = vadd.f32 %v2229, %v2313
      %v2315 = vpop.f32.mrf.mxu0
      %v2316 = vpop.f32.mrf.mxu0
      %v2317 = vadd.f32 %v2229, %v2316
      %v2318 = vpop.f32.mrf.mxu0
      %2319 = vdwg.mxu0
      %s2320 = scalar_lea.vmem %s7, 192
      %v2321 = vld [vmem:[%s2320] sm:$0xf]
      %v2322 = vld [vmem:[%s2320 + $0x4] sm:$0xf]
      %v2323 = vld [vmem:[%s2320 + $0x8] sm:$0xf]
      %v2324 = vld [vmem:[%s2320 + $0xc] sm:$0xf]
      %v2325 = vld [vmem:[%s2320 + $0x10] sm:$0xf]
      %v2326 = vld [vmem:[%s2320 + $0x14] sm:$0xf]
      %v2327 = vld [vmem:[%s2320 + $0x18] sm:$0xf]
      %v2328 = vld [vmem:[%s2320 + $0x1c] sm:$0xf]
      %v2329 = vld [vmem:[%s2320 + $0x20] sm:$0xf]
      %v2330 = vld [vmem:[%s2320 + $0x24] sm:$0xf]
      %v2331 = vld [vmem:[%s2320 + $0x28] sm:$0xf]
      %v2332 = vld [vmem:[%s2320 + $0x2c] sm:$0xf]
      %v2333 = vld [vmem:[%s2320 + $0x30] sm:$0xf]
      %v2334 = vld [vmem:[%s2320 + $0x34] sm:$0xf]
      %v2335 = vld [vmem:[%s2320 + $0x38] sm:$0xf]
      %v2336 = vld [vmem:[%s2320 + $0x3c] sm:$0xf]
      %s2337 = scalar_lea.vmem %s10, 3
      %v2338 = vld [vmem:[%s2337] sm:$0x1]
      %v2340 = vlaneseq
      %v2341 = vshrl.u32 %v2340, 7
      %v2342 = vsub.s32 0, %v2341
      %v2343 = vrot.slane %v2338, %v2342
      %v2361 = vunpack.c.l.b16 %v2321
      %v2362 = vunpack.c.l.b16 %v2322
      %v2363 = vunpack.c.l.b16 %v2323
      %v2364 = vunpack.c.l.b16 %v2324
      %v2365 = vunpack.c.l.b16 %v2325
      %v2366 = vunpack.c.l.b16 %v2326
      %v2367 = vunpack.c.l.b16 %v2327
      %v2368 = vunpack.c.l.b16 %v2328
      %v2369 = vunpack.c.l.b16 %v2329
      %v2370 = vunpack.c.l.b16 %v2330
      %v2371 = vunpack.c.l.b16 %v2331
      %v2372 = vunpack.c.l.b16 %v2332
      %v2373 = vunpack.c.l.b16 %v2333
      %v2374 = vunpack.c.l.b16 %v2334
      %v2375 = vunpack.c.l.b16 %v2335
      %v2376 = vunpack.c.l.b16 %v2336
      %v2377 = vpack.c.b16 %v2362, %v2361
      %v2378 = vpack.c.b16 %v2364, %v2363
      %v2379 = vpack.c.b16 %v2366, %v2365
      %v2380 = vpack.c.b16 %v2368, %v2367
      %v2381 = vpack.c.b16 %v2370, %v2369
      %v2382 = vpack.c.b16 %v2372, %v2371
      %v2383 = vpack.c.b16 %v2374, %v2373
      %v2384 = vpack.c.b16 %v2376, %v2375
      %2393 = vmatprep.subr.bf16.mxu0 0
      %2394 = vmatpush1.bf16.msra.mxu0 %v2384
      %2395 = vmatprep.subr.bf16.mxu0 0
      %2396 = vmatpush1.bf16.msra.mxu0 %v2383
      %2397 = vmatprep.subr.bf16.mxu0 0
      %2398 = vmatpush1.bf16.msra.mxu0 %v2382
      %2399 = vmatprep.subr.bf16.mxu0 0
      %2400 = vmatpush1.bf16.msra.mxu0 %v2381
      %2401 = vmatprep.subr.bf16.mxu0 0
      %2402 = vmatpush1.bf16.msra.mxu0 %v2380
      %2403 = vmatprep.subr.bf16.mxu0 0
      %2404 = vmatpush1.bf16.msra.mxu0 %v2379
      %2405 = vmatprep.subr.bf16.mxu0 0
      %2406 = vmatpush1.bf16.msra.mxu0 %v2378
      %2407 = vmatprep.subr.bf16.mxu0 0
      %2408 = vmatpush1.bf16.msra.mxu0 %v2377
      %2409 = vmatprep.subr.bf16.mxu0 0
      %2410 = vmatpush2.bf16.msra.mxu0 0
      %2411 = vmatprep.subr.bf16.mxu0 0
      %2412 = vmatpush2.bf16.msra.mxu0 0
      %2413 = vmatprep.subr.bf16.mxu0 0
      %2414 = vmatpush2.bf16.msra.mxu0 0
      %2415 = vmatprep.subr.bf16.mxu0 0
      %2416 = vmatpush2.bf16.msra.mxu0 0
      %2417 = vmatprep.subr.bf16.mxu0 0
      %2418 = vmatpush2.bf16.msra.mxu0 0
      %2419 = vmatprep.subr.bf16.mxu0 0
      %2420 = vmatpush2.bf16.msra.mxu0 0
      %2421 = vmatprep.subr.bf16.mxu0 0
      %2422 = vmatpush2.bf16.msra.mxu0 0
      %2423 = vmatprep.subr.bf16.mxu0 0
      %2424 = vmatpush2.bf16.msra.mxu0 0
      %2425 = vmatprep.mubr.bf16.mxu0 0
      %2426 = vmatmul.mubr.bf16.gmra.mxu0 %v525
      %v2427 = vpop.f32.mrf.mxu0
      %v2428 = vadd.f32 %v2343, %v2427
      %v2429 = vpop.f32.mrf.mxu0
      %v2430 = vpop.f32.mrf.mxu0
      %v2431 = vadd.f32 %v2343, %v2430
      %v2432 = vpop.f32.mrf.mxu0
      %2433 = vdwg.mxu0
      %v2434 = vmul.f32 %v2200, 0.17677669
      %v2435 = vmul.f32 %v2203, 0.17677669
      %v2436 = vpack.c.bf16 %v2435, %v2434
      %v2437 = vpack.c.bf16 %v2317, %v2314
      %v2439 = vsel %vm866, %v2436, 0
      %v2442 = vsel %vm866, %v2437, 0
      %2444 = vmatprep.subr.bf16.mxu0 0
      %2445 = vmatpush1.bf16.xpose.msra.mxu0 0
      %2446 = vmatprep.subr.bf16.mxu0 0
      %2447 = vmatpush1.bf16.xpose.msra.mxu0 0
      %2448 = vmatprep.subr.bf16.mxu0 0
      %2449 = vmatpush1.bf16.xpose.msra.mxu0 0
      %2450 = vmatprep.subr.bf16.mxu0 0
      %2451 = vmatpush1.bf16.xpose.msra.mxu0 0
      %2452 = vmatprep.subr.bf16.mxu0 0
      %2453 = vmatpush1.bf16.xpose.msra.mxu0 0
      %2454 = vmatprep.subr.bf16.mxu0 0
      %2455 = vmatpush1.bf16.xpose.msra.mxu0 0
      %2456 = vmatprep.subr.bf16.mxu0 0
      %2457 = vmatpush1.bf16.xpose.msra.mxu0 0
      %2458 = vmatprep.subr.bf16.mxu0 0
      %2459 = vmatpush1.bf16.xpose.msra.mxu0 %v2442
      %2460 = vmatprep.subr.bf16.mxu0 0
      %2461 = vmatpush2.bf16.xpose.msra.mxu0 0
      %2462 = vmatprep.subr.bf16.mxu0 0
      %2463 = vmatpush2.bf16.xpose.msra.mxu0 0
      %2464 = vmatprep.subr.bf16.mxu0 0
      %2465 = vmatpush2.bf16.xpose.msra.mxu0 0
      %2466 = vmatprep.subr.bf16.mxu0 0
      %2467 = vmatpush2.bf16.xpose.msra.mxu0 0
      %2468 = vmatprep.subr.bf16.mxu0 0
      %2469 = vmatpush2.bf16.xpose.msra.mxu0 0
      %2470 = vmatprep.subr.bf16.mxu0 0
      %2471 = vmatpush2.bf16.xpose.msra.mxu0 0
      %2472 = vmatprep.subr.bf16.mxu0 0
      %2473 = vmatpush2.bf16.xpose.msra.mxu0 0
      %2474 = vmatprep.subr.bf16.mxu0 0
      %2475 = vmatpush2.bf16.xpose.msra.mxu0 0
      %2476 = vmatprep.mubr.bf16.mxu0 0
      %2477 = vmatmul.mubr.bf16.gmra.mxu0 %v2439
      %v2478 = vpop.f32.mrf.mxu0
      %v2479 = vadd.f32 0.0, %v2478
      %v2480 = vpop.f32.mrf.mxu0
      %v2481 = vpop.f32.mrf.mxu0
      %v2482 = vadd.f32 0.0, %v2481
      %v2483 = vpop.f32.mrf.mxu0
      %2484 = vdwg.mxu0
      %v2485 = vsel %vm914, %v2479, -inf
      %2486 = vmax.xlane.f32.xlu0 %v2485
      %v2487 = vpop.xlane.xlu0 %2486
      %v2488 = vsel %vm914, %v2482, -inf
      %2489 = vmax.xlane.f32.xlu0 %v2488
      %v2490 = vpop.xlane.xlu0 %2489
      %v2491 = vsub.f32 %v2479, %v2487
      %v2492 = vsub.f32 %v2482, %v2490
      %v2493 = vmul.f32 %v2491, 1.442695
      %v2494 = vpow.pop %v2493
      %v2495 = vmul.f32 %v2492, 1.442695
      %v2496 = vpow.pop %v2495
      %v2497 = vsel %vm914, %v2494, 0.0
      %2498 = vadd.xlane.f32.xlu0 %v2497
      %v2499 = vpop.xlane.xlu0 %2498
      %v2500 = vsel %vm914, %v2496, 0.0
      %2501 = vadd.xlane.f32.xlu0 %v2500
      %v2502 = vpop.xlane.xlu0 %2501
      %v2503 = vrcp.pop %v2499
      %v2504 = vrcp.pop %v2502
      %v2505 = vmul.f32 %v2494, %v2503
      %v2506 = vmul.f32 %v2496, %v2504
      %v2507 = vpack.c.bf16 %v2506, %v2505
      %v2508 = vpack.c.bf16 %v2431, %v2428
      %v2510 = vsel %vm914, %v2507, 0
      %2512 = vmatprep.subr.bf16.mxu0 0
      %2513 = vmatpush1.bf16.msra.mxu0 0
      %2514 = vmatprep.subr.bf16.mxu0 0
      %2515 = vmatpush1.bf16.msra.mxu0 0
      %2516 = vmatprep.subr.bf16.mxu0 0
      %2517 = vmatpush1.bf16.msra.mxu0 0
      %2518 = vmatprep.subr.bf16.mxu0 0
      %2519 = vmatpush1.bf16.msra.mxu0 0
      %2520 = vmatprep.subr.bf16.mxu0 0
      %2521 = vmatpush1.bf16.msra.mxu0 0
      %2522 = vmatprep.subr.bf16.mxu0 0
      %2523 = vmatpush1.bf16.msra.mxu0 0
      %2524 = vmatprep.subr.bf16.mxu0 0
      %2525 = vmatpush1.bf16.msra.mxu0 0
      %2526 = vmatprep.subr.bf16.mxu0 0
      %2527 = vmatpush1.bf16.msra.mxu0 %v2508
      %2528 = vmatprep.subr.bf16.mxu0 0
      %2529 = vmatpush2.bf16.msra.mxu0 0
      %2530 = vmatprep.subr.bf16.mxu0 0
      %2531 = vmatpush2.bf16.msra.mxu0 0
      %2532 = vmatprep.subr.bf16.mxu0 0
      %2533 = vmatpush2.bf16.msra.mxu0 0
      %2534 = vmatprep.subr.bf16.mxu0 0
      %2535 = vmatpush2.bf16.msra.mxu0 0
      %2536 = vmatprep.subr.bf16.mxu0 0
      %2537 = vmatpush2.bf16.msra.mxu0 0
      %2538 = vmatprep.subr.bf16.mxu0 0
      %2539 = vmatpush2.bf16.msra.mxu0 0
      %2540 = vmatprep.subr.bf16.mxu0 0
      %2541 = vmatpush2.bf16.msra.mxu0 0
      %2542 = vmatprep.subr.bf16.mxu0 0
      %2543 = vmatpush2.bf16.msra.mxu0 0
      %2544 = vmatprep.mubr.bf16.mxu0 0
      %2545 = vmatmul.mubr.bf16.gmra.mxu0 %v2510
      %v2546 = vpop.f32.mrf.mxu0
      %v2547 = vadd.f32 0.0, %v2546
      %v2548 = vpop.f32.mrf.mxu0
      %v2549 = vpop.f32.mrf.mxu0
      %v2550 = vadd.f32 0.0, %v2549
      %v2551 = vpop.f32.mrf.mxu0
      %2552 = vdwg.mxu0
      %v2553 = vpack.c.bf16 %v2550, %v2547
      %s2554 = scalar_lea.vmem %s11, 48
      %v2555 = vld [vmem:[%s2554] sm:$0xf]
      %v2556 = vld [vmem:[%s2554 + $0x4] sm:$0xf]
      %v2557 = vld [vmem:[%s2554 + $0x8] sm:$0xf]
      %v2558 = vld [vmem:[%s2554 + $0xc] sm:$0xf]
      %v2563 = vunpack.c.l.b16 %v2555
      %v2564 = vunpack.c.l.b16 %v2556
      %v2565 = vunpack.c.l.b16 %v2557
      %v2566 = vunpack.c.l.b16 %v2558
      %v2567 = vpack.c.b16 %v2564, %v2563
      %v2568 = vpack.c.b16 %v2566, %v2565
      %v2572 = vsel %vm866, %v2553, 0
      %2574 = vmatprep.subr.bf16.mxu0 0
      %2575 = vmatpush1.bf16.msra.mxu0 0
      %2576 = vmatprep.subr.bf16.mxu0 0
      %2577 = vmatpush1.bf16.msra.mxu0 0
      %2578 = vmatprep.subr.bf16.mxu0 0
      %2579 = vmatpush1.bf16.msra.mxu0 0
      %2580 = vmatprep.subr.bf16.mxu0 0
      %2581 = vmatpush1.bf16.msra.mxu0 0
      %2582 = vmatprep.subr.bf16.mxu0 0
      %2583 = vmatpush1.bf16.msra.mxu0 0
      %2584 = vmatprep.subr.bf16.mxu0 0
      %2585 = vmatpush1.bf16.msra.mxu0 0
      %2586 = vmatprep.subr.bf16.mxu0 0
      %2587 = vmatpush1.bf16.msra.mxu0 %v2568
      %2588 = vmatprep.subr.bf16.mxu0 0
      %2589 = vmatpush1.bf16.msra.mxu0 %v2567
      %2590 = vmatprep.subr.bf16.mxu0 0
      %2591 = vmatpush2.bf16.msra.mxu0 0
      %2592 = vmatprep.subr.bf16.mxu0 0
      %2593 = vmatpush2.bf16.msra.mxu0 0
      %2594 = vmatprep.subr.bf16.mxu0 0
      %2595 = vmatpush2.bf16.msra.mxu0 0
      %2596 = vmatprep.subr.bf16.mxu0 0
      %2597 = vmatpush2.bf16.msra.mxu0 0
      %2598 = vmatprep.subr.bf16.mxu0 0
      %2599 = vmatpush2.bf16.msra.mxu0 0
      %2600 = vmatprep.subr.bf16.mxu0 0
      %2601 = vmatpush2.bf16.msra.mxu0 0
      %2602 = vmatprep.subr.bf16.mxu0 0
      %2603 = vmatpush2.bf16.msra.mxu0 0
      %2604 = vmatprep.subr.bf16.mxu0 0
      %2605 = vmatpush2.bf16.msra.mxu0 0
      %2606 = vmatprep.mubr.bf16.mxu0 0
      %2607 = vmatmul.mubr.bf16.gmra.mxu0 %v2572
      %v2608 = vpop.f32.mrf.mxu0
      %v2609 = vadd.f32 0.0, %v2608
      %v2610 = vpop.f32.mrf.mxu0
      %v2611 = vpop.f32.mrf.mxu0
      %v2612 = vadd.f32 0.0, %v2611
      %v2613 = vpop.f32.mrf.mxu0
      %2614 = vdwg.mxu0
      %v2615 = vadd.f32 %v2090, %v2609
      %v2616 = vadd.f32 %v2091, %v2612
      %v2617 = vadd.f32 %v442, %v2615
      %v2618 = vadd.f32 %v443, %v2616
      %v2619 = vld [vmem:[%s12] sm:$0x1]
      %v2621 = vlaneseq
      %v2622 = vshrl.u32 %v2621, 7
      %v2623 = vsub.s32 0, %v2622
      %v2624 = vrot.slane %v2619, %v2623
      %v2626 = vadd.f32 %v2617, %v2624
      %v2627 = vadd.f32 %v2618, %v2624
      %2628 = vst [vmem:[%s440] sm:$0xff] %v2626
      %2629 = vst [vmem:[%s440 + $0x8] sm:$0xff] %v2627
      %p2630 = scmp.lt.s32.totalorder %s24, 1
      %s2631 = scalar_select %p2630, %s24, 1
      %s2632 = smul.addr %s2631, 2
      %s2633 = smul.addr %s2632, 8
      %s2634 = scalar_lea.vmem %s13, %s2633
      // Predicated region
      $region73: #{diffusion_transformer.9} parent=71 // pred_check
        %p2635 = pneg %p320
      $region74: #{diffusion_transformer.9} parent=71 // pred_check_branch
        %2637 = sbr.rel (%p2635) target = $region76
      $region75: #{diffusion_transformer.9} parent=71 // pred_region
        _
      $region76: #{diffusion_transformer.9} parent=71 // pred_fallthru
        _
    $region72: #{diffusion_transformer.9} parent=5 // pred_fallthru
      _
    %p2638 = scmp.le.s32.totalorder 2, %s19
    // Predicated region
    $region77: #{diffusion_transformer.9} parent=5 // pred_check
      %p2639 = pneg %p2638
    $region78: #{diffusion_transformer.9} parent=5 // pred_check_branch
      %2641 = sbr.rel (%p2639) target = $region80
    $region79: #{diffusion_transformer.9} parent=5 // pred_region
      %s2642 = ssub.s32 %s19, 2
      // Predicated region
      $region81: #{diffusion_transformer.9} parent=79 // pred_check
        %p2643 = pneg %p326
      $region82: #{diffusion_transformer.9} parent=79 // pred_check_branch
        %2645 = sbr.rel (%p2643) target = $region84
      $region83: #{diffusion_transformer.9} parent=79 // pred_region
        %p2646 = scmp.lt.s32.totalorder %s25, 1
        %s2647 = scalar_select %p2646, %s25, 1
        %s2648 = smul.addr %s2647, 2
        %s2649 = smul.addr %s2648, 8
        %s2650 = scalar_lea.vmem %s13, %s2649
      $region84: #{diffusion_transformer.9} parent=79 // pred_fallthru
        _
    $region80: #{diffusion_transformer.9} parent=5 // pred_fallthru
      _
  $region6: #{diffusion_transformer.9} parent=0 // loop_footer
    %s23 = sadd.s32 1, %s19
  $region7: #{diffusion_transformer.9} parent=0 // loop_footer_branch
    %18 = sbr.rel target = $region3
  $region8: #{diffusion_transformer.9} parent=0 // loop_exit
    _

</llo_original>
